<compile_context>
chip_gen: v7x
topology: tpu7x:2x2x1
jax: 0.10.0
libtpu: 0.0.40
codegen_flags: <defaults>
</compile_context>

<pallas_src>
import functools

import jax
import jax.numpy as jnp
from jax.experimental import pallas as pl
from jax.experimental.pallas import tpu as pltpu


# ---------------------------------------------------------------------------
# Pallas kernels: single-shot matmul (full K) + folded-BN epilogue
# ---------------------------------------------------------------------------
def _mm_bn_kernel(relu, x_ref, w_ref, scale_ref, shift_ref, o_ref):
    y = jnp.dot(x_ref[...], w_ref[...], preferred_element_type=jnp.float32)
    y = y * scale_ref[...] + shift_ref[...]
    if relu:
        y = jnp.maximum(y, 0.0)
    o_ref[...] = y.astype(o_ref.dtype)


def _mm_bn_add_kernel(relu, x_ref, w_ref, scale_ref, shift_ref, res_ref, o_ref):
    # plain residual add (no per-channel scale/shift on the residual stream)
    y = jnp.dot(x_ref[...], w_ref[...], preferred_element_type=jnp.float32)
    y = y * scale_ref[...] + shift_ref[...]
    y = y + res_ref[...].astype(jnp.float32)
    if relu:
        y = jnp.maximum(y, 0.0)
    o_ref[...] = y.astype(o_ref.dtype)


def _mm_bn_addbn_kernel(relu, x_ref, w_ref, scale_ref, shift_ref,
                        res_ref, rscale_ref, rshift_ref, o_ref):
    # residual stream gets its own folded-BN scale/shift (out4 + bn3(x1) case)
    y = jnp.dot(x_ref[...], w_ref[...], preferred_element_type=jnp.float32)
    y = y * scale_ref[...] + shift_ref[...]
    y = y + res_ref[...].astype(jnp.float32) * rscale_ref[...] + rshift_ref[...]
    if relu:
        y = jnp.maximum(y, 0.0)
    o_ref[...] = y.astype(o_ref.dtype)


def _pick_tile(n, candidates=(512, 256, 128)):
    for t in candidates:
        if n % t == 0:
            return t
    return n


def fused_matmul_bn(x, w, scale, shift, residual=None, res_scale=None,
                    res_shift=None, relu=False, out_dtype=None):
    """out = relu?( (x @ w) * scale + shift [+ residual (*rscale + rshift)] ).

    x: (M, K); w: (K, Nout).  Full-K blocks (no reduction grid axis), bf16
    MXU operands, f32 epilogue.  Grid (M//tm, Nout//tn) both 'parallel'.
    """
    M, K = x.shape
    Kw, Nout = w.shape
    assert K == Kw
    tm = _pick_tile(M, (256, 128))
    tn = _pick_tile(Nout, (256, 128))
    assert M % tm == 0 and Nout % tn == 0
    out_dtype = out_dtype or x.dtype

    xb = x.astype(jnp.bfloat16)
    wb = w.astype(jnp.bfloat16)
    scale2 = scale.reshape(1, Nout).astype(jnp.float32)
    shift2 = shift.reshape(1, Nout).astype(jnp.float32)

    in_specs = [
        pl.BlockSpec((tm, K), lambda i, j: (i, 0)),
        pl.BlockSpec((K, tn), lambda i, j: (0, j)),
        pl.BlockSpec((1, tn), lambda i, j: (0, j)),
        pl.BlockSpec((1, tn), lambda i, j: (0, j)),
    ]
    args = [xb, wb, scale2, shift2]

    if residual is None:
        kernel = functools.partial(_mm_bn_kernel, relu)
    else:
        in_specs.append(pl.BlockSpec((tm, tn), lambda i, j: (i, j)))
        args.append(residual.astype(jnp.bfloat16))
        if res_scale is not None:
            in_specs += [pl.BlockSpec((1, tn), lambda i, j: (0, j)),
                         pl.BlockSpec((1, tn), lambda i, j: (0, j))]
            args += [res_scale.reshape(1, Nout).astype(jnp.float32),
                     res_shift.reshape(1, Nout).astype(jnp.float32)]
            kernel = functools.partial(_mm_bn_addbn_kernel, relu)
        else:
            kernel = functools.partial(_mm_bn_add_kernel, relu)

    return pl.pallas_call(
        kernel,
        out_shape=jax.ShapeDtypeStruct((M, Nout), out_dtype),
        grid_spec=pltpu.PrefetchScalarGridSpec(
            num_scalar_prefetch=0,
            grid=(M // tm, Nout // tn),
            in_specs=in_specs,
            out_specs=pl.BlockSpec((tm, tn), lambda i, j: (i, j)),
        ),
        compiler_params=pltpu.CompilerParams(
            dimension_semantics=("parallel", "parallel")),
    )(*args)


# ---------------------------------------------------------------------------
# Pallas 3x3 conv (pad=1, stride=1) + folded BN + ReLU, no im2col in HBM.
# One grid step per image; 9 shifted-window matmuls accumulated in-kernel.
# ---------------------------------------------------------------------------
def _conv3x3_bn_kernel(relu, H, W, xp_ref, w_ref, scale_ref, shift_ref, o_ref):
    cout = o_ref.shape[-1]
    x = xp_ref[0].astype(jnp.float32)          # (H+2, W+2, C)
    acc = jnp.zeros((H * W, cout), jnp.float32)
    for dy in range(3):
        for dx in range(3):
            patch = x[dy:dy + H, dx:dx + W, :]              # (H, W, C)
            patch = patch.reshape(H * W, patch.shape[-1])   # (H*W, C)
            acc = acc + jnp.dot(patch.astype(jnp.bfloat16),
                                w_ref[dy * 3 + dx],
                                preferred_element_type=jnp.float32)
    y = acc * scale_ref[...] + shift_ref[...]
    if relu:
        y = jnp.maximum(y, 0.0)
    o_ref[...] = y.astype(o_ref.dtype)


def conv3x3_bn(x_nhwc, w9, scale, shift, relu=True, out_dtype=jnp.bfloat16):
    """x_nhwc: (N, H, W, C); w9: (9, C, Cout).  Returns (N*H*W, Cout)."""
    N, H, W, C = x_nhwc.shape
    Cout = w9.shape[-1]
    Hp, Wp = H + 2, W + 2
    xp = jnp.pad(x_nhwc.astype(jnp.bfloat16), ((0, 0), (1, 1), (1, 1), (0, 0)))
    scale2 = scale.reshape(1, Cout).astype(jnp.float32)
    shift2 = shift.reshape(1, Cout).astype(jnp.float32)

    kernel = functools.partial(_conv3x3_bn_kernel, relu, H, W)
    return pl.pallas_call(
        kernel,
        out_shape=jax.ShapeDtypeStruct((N * H * W, Cout), out_dtype),
        grid_spec=pltpu.PrefetchScalarGridSpec(
            num_scalar_prefetch=0,
            grid=(N,),
            in_specs=[
                pl.BlockSpec((1, Hp, Wp, C), lambda n: (n, 0, 0, 0)),
                pl.BlockSpec((9, C, Cout), lambda n: (0, 0, 0)),
                pl.BlockSpec((1, Cout), lambda n: (0, 0)),
                pl.BlockSpec((1, Cout), lambda n: (0, 0)),
            ],
            out_specs=pl.BlockSpec((H * W, Cout), lambda n: (n, 0)),
        ),
        compiler_params=pltpu.CompilerParams(
            dimension_semantics=("parallel",)),
    )(xp, w9.astype(jnp.bfloat16), scale2, shift2)


# ---------------------------------------------------------------------------
# JAX glue
# ---------------------------------------------------------------------------
def bn_fold(gamma, beta, mean, var, eps):
    scale = gamma / jnp.sqrt(var + eps)
    shift = beta - mean * scale
    return scale, shift


def _conv1x1_weight(key, cout, cin):
    # kaiming_normal_(mode='fan_out', relu): std = sqrt(2 / (cout * kh * kw))
    std = (2.0 / cout) ** 0.5
    w = jax.random.normal(key, (cout, cin), jnp.float32) * std
    return w.T.astype(jnp.bfloat16)          # (cin, cout) matmul weight


def _conv3x3_weight(key, cout, cin):
    std = (2.0 / (cout * 9)) ** 0.5
    w = jax.random.normal(key, (cout, cin, 3, 3), jnp.float32) * std
    # (cout, cin, kh, kw) -> (kh, kw, cin, cout) -> (9, cin, cout), tap = dy*3+dx
    return jnp.transpose(w, (2, 3, 1, 0)).reshape(9, cin, cout).astype(jnp.bfloat16)


def _bn_params(c):
    # gamma=1, beta=0, running_mean=0, running_var=1 (torch init)
    return (jnp.ones((c,), jnp.float32), jnp.zeros((c,), jnp.float32),
            jnp.zeros((c,), jnp.float32), jnp.ones((c,), jnp.float32))


def init_params(key):
    keys = jax.random.split(key, 7)
    return {
        'w2': _conv1x1_weight(keys[0], 512, 256),
        'w7': _conv1x1_weight(keys[1], 128, 512),
        'w10': _conv3x3_weight(keys[2], 128, 128),
        'w13': _conv1x1_weight(keys[3], 512, 128),
        'w17': _conv1x1_weight(keys[4], 128, 512),
        'w20': _conv3x3_weight(keys[5], 128, 128),
        'w23': _conv1x1_weight(keys[6], 512, 128),
        'bn3': _bn_params(512), 'bn4': _bn_params(512),
        'bn8': _bn_params(128), 'bn11': _bn_params(128),
        'bn14': _bn_params(512), 'bn18': _bn_params(128),
        'bn21': _bn_params(128), 'bn24': _bn_params(512),
    }


def stage3_forward(params, input0, input1):
    """input0: (N, 256, H, W) NCHW; input1: (N, 512, H/2, W/2) NCHW."""
    eps = 1e-5
    x0 = jnp.transpose(input0, (0, 2, 3, 1))  # (N, H, W, 256)
    x1 = jnp.transpose(input1, (0, 2, 3, 1))  # (N, H2, W2, 512)
    N, H, W, _ = x0.shape
    H2, W2 = H // 2, W // 2
    M = N * H2 * W2

    # layer2: 1x1 conv stride 2 == spatial subsample + matmul
    # TODO(synk): the stride-2 subsample could be folded into the kernel's
    #             BlockSpec instead of a host-side strided slice (minor cost).
    x0s = x0[:, ::2, ::2, :].reshape(M, 256)
    x1f = x1.reshape(M, 512)

    s3, b3 = bn_fold(*params['bn3'], eps)
    s4, b4 = bn_fold(*params['bn4'], eps)
    # out6 = relu( bn4(conv2(x0)) + bn3(x1) )
    out6 = fused_matmul_bn(x0s, params['w2'], s4, b4,
                           residual=x1f, res_scale=s3, res_shift=b3,
                           relu=True, out_dtype=jnp.bfloat16)

    # bottleneck block 1
    s8, b8 = bn_fold(*params['bn8'], eps)
    out9 = fused_matmul_bn(out6, params['w7'], s8, b8, relu=True,
                           out_dtype=jnp.bfloat16)

    s11, b11 = bn_fold(*params['bn11'], eps)
    out12 = conv3x3_bn(out9.reshape(N, H2, W2, 128), params['w10'], s11, b11,
                       relu=True, out_dtype=jnp.bfloat16)

    s14, b14 = bn_fold(*params['bn14'], eps)
    # out16 = relu( bn14(conv13(out12)) + out6 )   (plain residual add)
    out16 = fused_matmul_bn(out12, params['w13'], s14, b14,
                            residual=out6, relu=True, out_dtype=jnp.float32)
    out16_b = out16.astype(jnp.bfloat16)

    # bottleneck block 2 (tail has no residual / no relu)
    s18, b18 = bn_fold(*params['bn18'], eps)
    out19 = fused_matmul_bn(out16_b, params['w17'], s18, b18, relu=True,
                            out_dtype=jnp.bfloat16)

    s21, b21 = bn_fold(*params['bn21'], eps)
    out22 = conv3x3_bn(out19.reshape(N, H2, W2, 128), params['w20'], s21, b21,
                       relu=True, out_dtype=jnp.bfloat16)

    s24, b24 = bn_fold(*params['bn24'], eps)
    out24 = fused_matmul_bn(out22, params['w23'], s24, b24, relu=False,
                            out_dtype=jnp.float32)

    out16_nchw = jnp.transpose(out16.reshape(N, H2, W2, 512), (0, 3, 1, 2))
    out24_nchw = jnp.transpose(out24.reshape(N, H2, W2, 512), (0, 3, 1, 2))
    return out16_nchw, out24_nchw


if __name__ == "__main__":
    key = jax.random.PRNGKey(0)
    k0, k1, kp = jax.random.split(key, 3)

    # Small spatial size; channel counts fixed by the module (256/512/128).
    N, H, W = 2, 16, 16
    H2, W2 = H // 2, W // 2
    input0 = jax.random.normal(k0, (N, 256, H, W), jnp.float32)
    input1 = jax.random.normal(k1, (N, 512, H2, W2), jnp.float32)

    params = init_params(kp)
    fwd = jax.jit(stage3_forward)
    out16, out24 = fwd(params, input0, input1)
    jax.block_until_ready((out16, out24))

    assert out16.shape == (N, 512, H2, W2), out16.shape
    assert out24.shape == (N, 512, H2, W2), out24.shape
    assert out16.dtype == jnp.float32 and out24.dtype == jnp.float32
    print("KERNEL_OK")
</pallas_src>

<mosaic_0001>
module attributes {stable_mosaic.version = 11 : i64} {
  func.func @_mm_bn_kernel(%arg0: i32, %arg1: i32, %arg2: memref<128x512xbf16, #tpu.memory_space<vmem>>, %arg3: memref<512x128xbf16, #tpu.memory_space<vmem>>, %arg4: memref<1x128xf32, #tpu.memory_space<vmem>>, %arg5: memref<1x128xf32, #tpu.memory_space<vmem>>, %arg6: memref<128x128xbf16, #tpu.memory_space<vmem>>) attributes {dimension_semantics = [#tpu.dimension_semantics<parallel>, #tpu.dimension_semantics<parallel>], iteration_bounds = array<i64: 1, 1>, scalar_prefetch = 0 : i64, scratch_operands = 0 : i64, tpu.core_type = #tpu.core_type<tc>, window_params = [{transform_indices = @transform_0, window_bounds = array<i64: 128, 512>}, {transform_indices = @transform_1, window_bounds = array<i64: 512, 128>}, {transform_indices = @transform_2, window_bounds = array<i64: 1, 128>}, {transform_indices = @transform_3, window_bounds = array<i64: 1, 128>}, {transform_indices = @transform_4, window_bounds = array<i64: 128, 128>}]} {
    %c0 = arith.constant 0 : index
    %c0_0 = arith.constant 0 : index
    %0 = vector.load %arg2[%c0, %c0_0] : memref<128x512xbf16, #tpu.memory_space<vmem>>, vector<128x512xbf16>
    %c0_1 = arith.constant 0 : index
    %c0_2 = arith.constant 0 : index
    %1 = vector.load %arg3[%c0_1, %c0_2] : memref<512x128xbf16, #tpu.memory_space<vmem>>, vector<512x128xbf16>
    %cst = arith.constant dense<0.000000e+00> : vector<128x128xf32>
    %2 = tpu.matmul %0, %1, %cst {dimension_numbers = #tpu.dot_dimension_numbers<[1], [0], [0], [1], [0, 0, 1, 1], [], []>} : vector<128x512xbf16>, vector<512x128xbf16>, vector<128x128xf32> -> vector<128x128xf32>
    %c0_3 = arith.constant 0 : index
    %c0_4 = arith.constant 0 : index
    %3 = vector.load %arg4[%c0_3, %c0_4] : memref<1x128xf32, #tpu.memory_space<vmem>>, vector<1x128xf32>
    %4 = vector.broadcast %3 : vector<1x128xf32> to vector<128x128xf32>
    %5 = arith.mulf %2, %4 : vector<128x128xf32>
    %c0_5 = arith.constant 0 : index
    %c0_6 = arith.constant 0 : index
    %6 = vector.load %arg5[%c0_5, %c0_6] : memref<1x128xf32, #tpu.memory_space<vmem>>, vector<1x128xf32>
    %7 = vector.broadcast %6 : vector<1x128xf32> to vector<128x128xf32>
    %8 = arith.addf %5, %7 : vector<128x128xf32>
    %cst_7 = arith.constant 0.000000e+00 : f32
    %9 = vector.broadcast %cst_7 : f32 to vector<128x128xf32>
    %10 = arith.maximumf %8, %9 : vector<128x128xf32>
    %11 = arith.truncf %10 : vector<128x128xf32> to vector<128x128xbf16>
    %c0_8 = arith.constant 0 : index
    %c0_9 = arith.constant 0 : index
    %12 = vector.load %arg6[%c0_8, %c0_9] : memref<128x128xbf16, #tpu.memory_space<vmem>>, vector<128x128xbf16>
    tpu.vector_store %arg6[%c0_8, %c0_9], %11 {strides = array<i32>} : memref<128x128xbf16, #tpu.memory_space<vmem>>, vector<128x128xbf16>,
    return
  }
  func.func @transform_0(%arg0: i32, %arg1: i32) -> (i32, i32) {
    %c0_i32 = arith.constant 0 : i32
    %c0_i32_0 = arith.constant 0 : i32
    return %arg0, %c0_i32 : i32, i32
  }
  func.func @transform_1(%arg0: i32, %arg1: i32) -> (i32, i32) {
    %c0_i32 = arith.constant 0 : i32
    %c0_i32_0 = arith.constant 0 : i32
    return %c0_i32, %arg1 : i32, i32
  }
  func.func @transform_2(%arg0: i32, %arg1: i32) -> (i32, i32) {
    %c0_i32 = arith.constant 0 : i32
    %c0_i32_0 = arith.constant 0 : i32
    return %c0_i32, %arg1 : i32, i32
  }
  func.func @transform_3(%arg0: i32, %arg1: i32) -> (i32, i32) {
    %c0_i32 = arith.constant 0 : i32
    %c0_i32_0 = arith.constant 0 : i32
    return %c0_i32, %arg1 : i32, i32
  }
  func.func @transform_4(%arg0: i32, %arg1: i32) -> (i32, i32) {
    %c0_i32 = arith.constant 0 : i32
    return %arg0, %arg1 : i32, i32
  }
}

module attributes {stable_mosaic.version = 11 : i64} {
  func.func @_mm_bn_addbn_kernel(%arg0: i32, %arg1: i32, %arg2: memref<128x256xbf16, #tpu.memory_space<vmem>>, %arg3: memref<256x256xbf16, #tpu.memory_space<vmem>>, %arg4: memref<1x256xf32, #tpu.memory_space<vmem>>, %arg5: memref<1x256xf32, #tpu.memory_space<vmem>>, %arg6: memref<128x256xbf16, #tpu.memory_space<vmem>>, %arg7: memref<1x256xf32, #tpu.memory_space<vmem>>, %arg8: memref<1x256xf32, #tpu.memory_space<vmem>>, %arg9: memref<128x256xbf16, #tpu.memory_space<vmem>>) attributes {dimension_semantics = [#tpu.dimension_semantics<parallel>, #tpu.dimension_semantics<parallel>], iteration_bounds = array<i64: 1, 2>, scalar_prefetch = 0 : i64, scratch_operands = 0 : i64, tpu.core_type = #tpu.core_type<tc>, window_params = [{transform_indices = @transform_0, window_bounds = array<i64: 128, 256>}, {transform_indices = @transform_1, window_bounds = array<i64: 256, 256>}, {transform_indices = @transform_2, window_bounds = array<i64: 1, 256>}, {transform_indices = @transform_3, window_bounds = array<i64: 1, 256>}, {transform_indices = @transform_4, window_bounds = array<i64: 128, 256>}, {transform_indices = @transform_5, window_bounds = array<i64: 1, 256>}, {transform_indices = @transform_6, window_bounds = array<i64: 1, 256>}, {transform_indices = @transform_7, window_bounds = array<i64: 128, 256>}]} {
    %c0 = arith.constant 0 : index
    %c0_0 = arith.constant 0 : index
    %0 = vector.load %arg2[%c0, %c0_0] : memref<128x256xbf16, #tpu.memory_space<vmem>>, vector<128x256xbf16>
    %c0_1 = arith.constant 0 : index
    %c0_2 = arith.constant 0 : index
    %1 = vector.load %arg3[%c0_1, %c0_2] : memref<256x256xbf16, #tpu.memory_space<vmem>>, vector<256x256xbf16>
    %cst = arith.constant dense<0.000000e+00> : vector<128x256xf32>
    %2 = tpu.matmul %0, %1, %cst {dimension_numbers = #tpu.dot_dimension_numbers<[1], [0], [0], [1], [0, 0, 1, 1], [], []>} : vector<128x256xbf16>, vector<256x256xbf16>, vector<128x256xf32> -> vector<128x256xf32>
    %c0_3 = arith.constant 0 : index
    %c0_4 = arith.constant 0 : index
    %3 = vector.load %arg4[%c0_3, %c0_4] : memref<1x256xf32, #tpu.memory_space<vmem>>, vector<1x256xf32>
    %4 = vector.broadcast %3 : vector<1x256xf32> to vector<128x256xf32>
    %5 = arith.mulf %2, %4 : vector<128x256xf32>
    %c0_5 = arith.constant 0 : index
    %c0_6 = arith.constant 0 : index
    %6 = vector.load %arg5[%c0_5, %c0_6] : memref<1x256xf32, #tpu.memory_space<vmem>>, vector<1x256xf32>
    %7 = vector.broadcast %6 : vector<1x256xf32> to vector<128x256xf32>
    %8 = arith.addf %5, %7 : vector<128x256xf32>
    %c0_7 = arith.constant 0 : index
    %c0_8 = arith.constant 0 : index
    %9 = vector.load %arg6[%c0_7, %c0_8] : memref<128x256xbf16, #tpu.memory_space<vmem>>, vector<128x256xbf16>
    %10 = arith.extf %9 : vector<128x256xbf16> to vector<128x256xf32>
    %c0_9 = arith.constant 0 : index
    %c0_10 = arith.constant 0 : index
    %11 = vector.load %arg7[%c0_9, %c0_10] : memref<1x256xf32, #tpu.memory_space<vmem>>, vector<1x256xf32>
    %12 = vector.broadcast %11 : vector<1x256xf32> to vector<128x256xf32>
    %13 = arith.mulf %10, %12 : vector<128x256xf32>
    %14 = arith.addf %8, %13 : vector<128x256xf32>
    %c0_11 = arith.constant 0 : index
    %c0_12 = arith.constant 0 : index
    %15 = vector.load %arg8[%c0_11, %c0_12] : memref<1x256xf32, #tpu.memory_space<vmem>>, vector<1x256xf32>
    %16 = vector.broadcast %15 : vector<1x256xf32> to vector<128x256xf32>
    %17 = arith.addf %14, %16 : vector<128x256xf32>
    %cst_13 = arith.constant 0.000000e+00 : f32
    %18 = vector.broadcast %cst_13 : f32 to vector<128x256xf32>
    %19 = arith.maximumf %17, %18 : vector<128x256xf32>
    %20 = arith.truncf %19 : vector<128x256xf32> to vector<128x256xbf16>
    %c0_14 = arith.constant 0 : index
    %c0_15 = arith.constant 0 : index
    %21 = vector.load %arg9[%c0_14, %c0_15] : memref<128x256xbf16, #tpu.memory_space<vmem>>, vector<128x256xbf16>
    tpu.vector_store %arg9[%c0_14, %c0_15], %20 {strides = array<i32>} : memref<128x256xbf16, #tpu.memory_space<vmem>>, vector<128x256xbf16>,
    return
  }
  func.func @transform_0(%arg0: i32, %arg1: i32) -> (i32, i32) {
    %c0_i32 = arith.constant 0 : i32
    %c0_i32_0 = arith.constant 0 : i32
    return %arg0, %c0_i32 : i32, i32
  }
  func.func @transform_1(%arg0: i32, %arg1: i32) -> (i32, i32) {
    %c0_i32 = arith.constant 0 : i32
    %c0_i32_0 = arith.constant 0 : i32
    return %c0_i32, %arg1 : i32, i32
  }
  func.func @transform_2(%arg0: i32, %arg1: i32) -> (i32, i32) {
    %c0_i32 = arith.constant 0 : i32
    %c0_i32_0 = arith.constant 0 : i32
    return %c0_i32, %arg1 : i32, i32
  }
  func.func @transform_3(%arg0: i32, %arg1: i32) -> (i32, i32) {
    %c0_i32 = arith.constant 0 : i32
    %c0_i32_0 = arith.constant 0 : i32
    return %c0_i32, %arg1 : i32, i32
  }
  func.func @transform_4(%arg0: i32, %arg1: i32) -> (i32, i32) {
    %c0_i32 = arith.constant 0 : i32
    return %arg0, %arg1 : i32, i32
  }
  func.func @transform_5(%arg0: i32, %arg1: i32) -> (i32, i32) {
    %c0_i32 = arith.constant 0 : i32
    %c0_i32_0 = arith.constant 0 : i32
    return %c0_i32, %arg1 : i32, i32
  }
  func.func @transform_6(%arg0: i32, %arg1: i32) -> (i32, i32) {
    %c0_i32 = arith.constant 0 : i32
    %c0_i32_0 = arith.constant 0 : i32
    return %c0_i32, %arg1 : i32, i32
  }
  func.func @transform_7(%arg0: i32, %arg1: i32) -> (i32, i32) {
    %c0_i32 = arith.constant 0 : i32
    return %arg0, %arg1 : i32, i32
  }
}

module attributes {stable_mosaic.version = 11 : i64} {
  func.func @_conv3x3_bn_kernel(%arg0: i32, %arg1: memref<1x10x10x128xbf16, #tpu.memory_space<vmem>>, %arg2: memref<9x128x128xbf16, #tpu.memory_space<vmem>>, %arg3: memref<1x128xf32, #tpu.memory_space<vmem>>, %arg4: memref<1x128xf32, #tpu.memory_space<vmem>>, %arg5: memref<64x128xbf16, #tpu.memory_space<vmem>>) attributes {dimension_semantics = [#tpu.dimension_semantics<parallel>], iteration_bounds = array<i64: 2>, scalar_prefetch = 0 : i64, scratch_operands = 0 : i64, tpu.core_type = #tpu.core_type<tc>, window_params = [{transform_indices = @transform_0, window_bounds = array<i64: 1, 10, 10, 128>}, {pipeline_mode = #tpu.pipeline_mode<synchronous>, transform_indices = @transform_1, window_bounds = array<i64: 9, 128, 128>}, {pipeline_mode = #tpu.pipeline_mode<synchronous>, transform_indices = @transform_2, window_bounds = array<i64: 1, 128>}, {pipeline_mode = #tpu.pipeline_mode<synchronous>, transform_indices = @transform_3, window_bounds = array<i64: 1, 128>}, {transform_indices = @transform_4, window_bounds = array<i64: 64, 128>}]} {
    %c0 = arith.constant 0 : index
    %c0_0 = arith.constant 0 : index
    %c0_1 = arith.constant 0 : index
    %c0_2 = arith.constant 0 : index
    %0 = vector.load %arg1[%c0, %c0_0, %c0_1, %c0_2] : memref<1x10x10x128xbf16, #tpu.memory_space<vmem>>, vector<1x10x10x128xbf16>
    %1 = vector.shape_cast %0 : vector<1x10x10x128xbf16> to vector<10x10x128xbf16>
    %2 = arith.extf %1 : vector<10x10x128xbf16> to vector<10x10x128xf32>
    %cst = arith.constant 0.000000e+00 : f32
    %3 = vector.broadcast %cst : f32 to vector<64x128xf32>
    %4 = vector.extract_strided_slice %2 {offsets = [0, 0, 0], sizes = [8, 8, 128], strides = [1, 1, 1]} : vector<10x10x128xf32> to vector<8x8x128xf32>
    %5 = vector.shape_cast %4 : vector<8x8x128xf32> to vector<64x128xf32>
    %6 = arith.truncf %5 : vector<64x128xf32> to vector<64x128xbf16>
    %c0_3 = arith.constant 0 : index
    %c0_4 = arith.constant 0 : index
    %c0_5 = arith.constant 0 : index
    %7 = vector.load %arg2[%c0_3, %c0_4, %c0_5] : memref<9x128x128xbf16, #tpu.memory_space<vmem>>, vector<1x128x128xbf16>
    %8 = vector.shape_cast %7 : vector<1x128x128xbf16> to vector<128x128xbf16>
    %cst_6 = arith.constant dense<0.000000e+00> : vector<64x128xf32>
    %9 = tpu.matmul %6, %8, %cst_6 {dimension_numbers = #tpu.dot_dimension_numbers<[1], [0], [0], [1], [0, 0, 1, 1], [], []>} : vector<64x128xbf16>, vector<128x128xbf16>, vector<64x128xf32> -> vector<64x128xf32>
    %10 = arith.addf %3, %9 : vector<64x128xf32>
    %11 = vector.extract_strided_slice %2 {offsets = [0, 1, 0], sizes = [8, 8, 128], strides = [1, 1, 1]} : vector<10x10x128xf32> to vector<8x8x128xf32>
    %12 = vector.shape_cast %11 : vector<8x8x128xf32> to vector<64x128xf32>
    %13 = arith.truncf %12 : vector<64x128xf32> to vector<64x128xbf16>
    %c1 = arith.constant 1 : index
    %c0_7 = arith.constant 0 : index
    %c0_8 = arith.constant 0 : index
    %14 = vector.load %arg2[%c1, %c0_7, %c0_8] : memref<9x128x128xbf16, #tpu.memory_space<vmem>>, vector<1x128x128xbf16>
    %15 = vector.shape_cast %14 : vector<1x128x128xbf16> to vector<128x128xbf16>
    %cst_9 = arith.constant dense<0.000000e+00> : vector<64x128xf32>
    %16 = tpu.matmul %13, %15, %cst_9 {dimension_numbers = #tpu.dot_dimension_numbers<[1], [0], [0], [1], [0, 0, 1, 1], [], []>} : vector<64x128xbf16>, vector<128x128xbf16>, vector<64x128xf32> -> vector<64x128xf32>
    %17 = arith.addf %10, %16 : vector<64x128xf32>
    %18 = vector.extract_strided_slice %2 {offsets = [0, 2, 0], sizes = [8, 8, 128], strides = [1, 1, 1]} : vector<10x10x128xf32> to vector<8x8x128xf32>
    %19 = vector.shape_cast %18 : vector<8x8x128xf32> to vector<64x128xf32>
    %20 = arith.truncf %19 : vector<64x128xf32> to vector<64x128xbf16>
    %c2 = arith.constant 2 : index
    %c0_10 = arith.constant 0 : index
    %c0_11 = arith.constant 0 : index
    %21 = vector.load %arg2[%c2, %c0_10, %c0_11] : memref<9x128x128xbf16, #tpu.memory_space<vmem>>, vector<1x128x128xbf16>
    %22 = vector.shape_cast %21 : vector<1x128x128xbf16> to vector<128x128xbf16>
    %cst_12 = arith.constant dense<0.000000e+00> : vector<64x128xf32>
    %23 = tpu.matmul %20, %22, %cst_12 {dimension_numbers = #tpu.dot_dimension_numbers<[1], [0], [0], [1], [0, 0, 1, 1], [], []>} : vector<64x128xbf16>, vector<128x128xbf16>, vector<64x128xf32> -> vector<64x128xf32>
    %24 = arith.addf %17, %23 : vector<64x128xf32>
    %25 = vector.extract_strided_slice %2 {offsets = [1, 0, 0], sizes = [8, 8, 128], strides = [1, 1, 1]} : vector<10x10x128xf32> to vector<8x8x128xf32>
    %26 = vector.shape_cast %25 : vector<8x8x128xf32> to vector<64x128xf32>
    %27 = arith.truncf %26 : vector<64x128xf32> to vector<64x128xbf16>
    %c3 = arith.constant 3 : index
    %c0_13 = arith.constant 0 : index
    %c0_14 = arith.constant 0 : index
    %28 = vector.load %arg2[%c3, %c0_13, %c0_14] : memref<9x128x128xbf16, #tpu.memory_space<vmem>>, vector<1x128x128xbf16>
    %29 = vector.shape_cast %28 : vector<1x128x128xbf16> to vector<128x128xbf16>
    %cst_15 = arith.constant dense<0.000000e+00> : vector<64x128xf32>
    %30 = tpu.matmul %27, %29, %cst_15 {dimension_numbers = #tpu.dot_dimension_numbers<[1], [0], [0], [1], [0, 0, 1, 1], [], []>} : vector<64x128xbf16>, vector<128x128xbf16>, vector<64x128xf32> -> vector<64x128xf32>
    %31 = arith.addf %24, %30 : vector<64x128xf32>
    %32 = vector.extract_strided_slice %2 {offsets = [1, 1, 0], sizes = [8, 8, 128], strides = [1, 1, 1]} : vector<10x10x128xf32> to vector<8x8x128xf32>
    %33 = vector.shape_cast %32 : vector<8x8x128xf32> to vector<64x128xf32>
    %34 = arith.truncf %33 : vector<64x128xf32> to vector<64x128xbf16>
    %c4 = arith.constant 4 : index
    %c0_16 = arith.constant 0 : index
    %c0_17 = arith.constant 0 : index
    %35 = vector.load %arg2[%c4, %c0_16, %c0_17] : memref<9x128x128xbf16, #tpu.memory_space<vmem>>, vector<1x128x128xbf16>
    %36 = vector.shape_cast %35 : vector<1x128x128xbf16> to vector<128x128xbf16>
    %cst_18 = arith.constant dense<0.000000e+00> : vector<64x128xf32>
    %37 = tpu.matmul %34, %36, %cst_18 {dimension_numbers = #tpu.dot_dimension_numbers<[1], [0], [0], [1], [0, 0, 1, 1], [], []>} : vector<64x128xbf16>, vector<128x128xbf16>, vector<64x128xf32> -> vector<64x128xf32>
    %38 = arith.addf %31, %37 : vector<64x128xf32>
    %39 = vector.extract_strided_slice %2 {offsets = [1, 2, 0], sizes = [8, 8, 128], strides = [1, 1, 1]} : vector<10x10x128xf32> to vector<8x8x128xf32>
    %40 = vector.shape_cast %39 : vector<8x8x128xf32> to vector<64x128xf32>
    %41 = arith.truncf %40 : vector<64x128xf32> to vector<64x128xbf16>
    %c5 = arith.constant 5 : index
    %c0_19 = arith.constant 0 : index
    %c0_20 = arith.constant 0 : index
    %42 = vector.load %arg2[%c5, %c0_19, %c0_20] : memref<9x128x128xbf16, #tpu.memory_space<vmem>>, vector<1x128x128xbf16>
    %43 = vector.shape_cast %42 : vector<1x128x128xbf16> to vector<128x128xbf16>
    %cst_21 = arith.constant dense<0.000000e+00> : vector<64x128xf32>
    %44 = tpu.matmul %41, %43, %cst_21 {dimension_numbers = #tpu.dot_dimension_numbers<[1], [0], [0], [1], [0, 0, 1, 1], [], []>} : vector<64x128xbf16>, vector<128x128xbf16>, vector<64x128xf32> -> vector<64x128xf32>
    %45 = arith.addf %38, %44 : vector<64x128xf32>
    %46 = vector.extract_strided_slice %2 {offsets = [2, 0, 0], sizes = [8, 8, 128], strides = [1, 1, 1]} : vector<10x10x128xf32> to vector<8x8x128xf32>
    %47 = vector.shape_cast %46 : vector<8x8x128xf32> to vector<64x128xf32>
    %48 = arith.truncf %47 : vector<64x128xf32> to vector<64x128xbf16>
    %c6 = arith.constant 6 : index
    %c0_22 = arith.constant 0 : index
    %c0_23 = arith.constant 0 : index
    %49 = vector.load %arg2[%c6, %c0_22, %c0_23] : memref<9x128x128xbf16, #tpu.memory_space<vmem>>, vector<1x128x128xbf16>
    %50 = vector.shape_cast %49 : vector<1x128x128xbf16> to vector<128x128xbf16>
    %cst_24 = arith.constant dense<0.000000e+00> : vector<64x128xf32>
    %51 = tpu.matmul %48, %50, %cst_24 {dimension_numbers = #tpu.dot_dimension_numbers<[1], [0], [0], [1], [0, 0, 1, 1], [], []>} : vector<64x128xbf16>, vector<128x128xbf16>, vector<64x128xf32> -> vector<64x128xf32>
    %52 = arith.addf %45, %51 : vector<64x128xf32>
    %53 = vector.extract_strided_slice %2 {offsets = [2, 1, 0], sizes = [8, 8, 128], strides = [1, 1, 1]} : vector<10x10x128xf32> to vector<8x8x128xf32>
    %54 = vector.shape_cast %53 : vector<8x8x128xf32> to vector<64x128xf32>
    %55 = arith.truncf %54 : vector<64x128xf32> to vector<64x128xbf16>
    %c7 = arith.constant 7 : index
    %c0_25 = arith.constant 0 : index
    %c0_26 = arith.constant 0 : index
    %56 = vector.load %arg2[%c7, %c0_25, %c0_26] : memref<9x128x128xbf16, #tpu.memory_space<vmem>>, vector<1x128x128xbf16>
    %57 = vector.shape_cast %56 : vector<1x128x128xbf16> to vector<128x128xbf16>
    %cst_27 = arith.constant dense<0.000000e+00> : vector<64x128xf32>
    %58 = tpu.matmul %55, %57, %cst_27 {dimension_numbers = #tpu.dot_dimension_numbers<[1], [0], [0], [1], [0, 0, 1, 1], [], []>} : vector<64x128xbf16>, vector<128x128xbf16>, vector<64x128xf32> -> vector<64x128xf32>
    %59 = arith.addf %52, %58 : vector<64x128xf32>
    %60 = vector.extract_strided_slice %2 {offsets = [2, 2, 0], sizes = [8, 8, 128], strides = [1, 1, 1]} : vector<10x10x128xf32> to vector<8x8x128xf32>
    %61 = vector.shape_cast %60 : vector<8x8x128xf32> to vector<64x128xf32>
    %62 = arith.truncf %61 : vector<64x128xf32> to vector<64x128xbf16>
    %c8 = arith.constant 8 : index
    %c0_28 = arith.constant 0 : index
    %c0_29 = arith.constant 0 : index
    %63 = vector.load %arg2[%c8, %c0_28, %c0_29] : memref<9x128x128xbf16, #tpu.memory_space<vmem>>, vector<1x128x128xbf16>
    %64 = vector.shape_cast %63 : vector<1x128x128xbf16> to vector<128x128xbf16>
    %cst_30 = arith.constant dense<0.000000e+00> : vector<64x128xf32>
    %65 = tpu.matmul %62, %64, %cst_30 {dimension_numbers = #tpu.dot_dimension_numbers<[1], [0], [0], [1], [0, 0, 1, 1], [], []>} : vector<64x128xbf16>, vector<128x128xbf16>, vector<64x128xf32> -> vector<64x128xf32>
    %66 = arith.addf %59, %65 : vector<64x128xf32>
    %c0_31 = arith.constant 0 : index
    %c0_32 = arith.constant 0 : index
    %67 = vector.load %arg3[%c0_31, %c0_32] : memref<1x128xf32, #tpu.memory_space<vmem>>, vector<1x128xf32>
    %68 = vector.broadcast %67 : vector<1x128xf32> to vector<64x128xf32>
    %69 = arith.mulf %66, %68 : vector<64x128xf32>
    %c0_33 = arith.constant 0 : index
    %c0_34 = arith.constant 0 : index
    %70 = vector.load %arg4[%c0_33, %c0_34] : memref<1x128xf32, #tpu.memory_space<vmem>>, vector<1x128xf32>
    %71 = vector.broadcast %70 : vector<1x128xf32> to vector<64x128xf32>
    %72 = arith.addf %69, %71 : vector<64x128xf32>
    %cst_35 = arith.constant 0.000000e+00 : f32
    %73 = vector.broadcast %cst_35 : f32 to vector<64x128xf32>
    %74 = arith.maximumf %72, %73 : vector<64x128xf32>
    %75 = arith.truncf %74 : vector<64x128xf32> to vector<64x128xbf16>
    %c0_36 = arith.constant 0 : index
    %c0_37 = arith.constant 0 : index
    %76 = vector.load %arg5[%c0_36, %c0_37] : memref<64x128xbf16, #tpu.memory_space<vmem>>, vector<64x128xbf16>
    tpu.vector_store %arg5[%c0_36, %c0_37], %75 {strides = array<i32>} : memref<64x128xbf16, #tpu.memory_space<vmem>>, vector<64x128xbf16>,
    return
  }
  func.func @transform_0(%arg0: i32) -> (i32, i32, i32, i32) {
    %c0_i32 = arith.constant 0 : i32
    %c0_i32_0 = arith.constant 0 : i32
    %c0_i32_1 = arith.constant 0 : i32
    %c0_i32_2 = arith.constant 0 : i32
    return %arg0, %c0_i32, %c0_i32_0, %c0_i32_1 : i32, i32, i32, i32
  }
  func.func @transform_1(%arg0: i32) -> (i32, i32, i32) {
    %c0_i32 = arith.constant 0 : i32
    %c0_i32_0 = arith.constant 0 : i32
    %c0_i32_1 = arith.constant 0 : i32
    %c0_i32_2 = arith.constant 0 : i32
    return %c0_i32, %c0_i32_0, %c0_i32_1 : i32, i32, i32
  }
  func.func @transform_2(%arg0: i32) -> (i32, i32) {
    %c0_i32 = arith.constant 0 : i32
    %c0_i32_0 = arith.constant 0 : i32
    %c0_i32_1 = arith.constant 0 : i32
    return %c0_i32, %c0_i32_0 : i32, i32
  }
  func.func @transform_3(%arg0: i32) -> (i32, i32) {
    %c0_i32 = arith.constant 0 : i32
    %c0_i32_0 = arith.constant 0 : i32
    %c0_i32_1 = arith.constant 0 : i32
    return %c0_i32, %c0_i32_0 : i32, i32
  }
  func.func @transform_4(%arg0: i32) -> (i32, i32) {
    %c0_i32 = arith.constant 0 : i32
    %c0_i32_0 = arith.constant 0 : i32
    return %arg0, %c0_i32 : i32, i32
  }
}

module attributes {stable_mosaic.version = 11 : i64} {
  func.func @_mm_bn_add_kernel(%arg0: i32, %arg1: i32, %arg2: memref<128x128xbf16, #tpu.memory_space<vmem>>, %arg3: memref<128x256xbf16, #tpu.memory_space<vmem>>, %arg4: memref<1x256xf32, #tpu.memory_space<vmem>>, %arg5: memref<1x256xf32, #tpu.memory_space<vmem>>, %arg6: memref<128x256xbf16, #tpu.memory_space<vmem>>, %arg7: memref<128x256xf32, #tpu.memory_space<vmem>>) attributes {dimension_semantics = [#tpu.dimension_semantics<parallel>, #tpu.dimension_semantics<parallel>], iteration_bounds = array<i64: 1, 2>, scalar_prefetch = 0 : i64, scratch_operands = 0 : i64, tpu.core_type = #tpu.core_type<tc>, window_params = [{transform_indices = @transform_0, window_bounds = array<i64: 128, 128>}, {transform_indices = @transform_1, window_bounds = array<i64: 128, 256>}, {transform_indices = @transform_2, window_bounds = array<i64: 1, 256>}, {transform_indices = @transform_3, window_bounds = array<i64: 1, 256>}, {transform_indices = @transform_4, window_bounds = array<i64: 128, 256>}, {transform_indices = @transform_5, window_bounds = array<i64: 128, 256>}]} {
    %c0 = arith.constant 0 : index
    %c0_0 = arith.constant 0 : index
    %0 = vector.load %arg2[%c0, %c0_0] : memref<128x128xbf16, #tpu.memory_space<vmem>>, vector<128x128xbf16>
    %c0_1 = arith.constant 0 : index
    %c0_2 = arith.constant 0 : index
    %1 = vector.load %arg3[%c0_1, %c0_2] : memref<128x256xbf16, #tpu.memory_space<vmem>>, vector<128x256xbf16>
    %cst = arith.constant dense<0.000000e+00> : vector<128x256xf32>
    %2 = tpu.matmul %0, %1, %cst {dimension_numbers = #tpu.dot_dimension_numbers<[1], [0], [0], [1], [0, 0, 1, 1], [], []>} : vector<128x128xbf16>, vector<128x256xbf16>, vector<128x256xf32> -> vector<128x256xf32>
    %c0_3 = arith.constant 0 : index
    %c0_4 = arith.constant 0 : index
    %3 = vector.load %arg4[%c0_3, %c0_4] : memref<1x256xf32, #tpu.memory_space<vmem>>, vector<1x256xf32>
    %4 = vector.broadcast %3 : vector<1x256xf32> to vector<128x256xf32>
    %5 = arith.mulf %2, %4 : vector<128x256xf32>
    %c0_5 = arith.constant 0 : index
    %c0_6 = arith.constant 0 : index
    %6 = vector.load %arg5[%c0_5, %c0_6] : memref<1x256xf32, #tpu.memory_space<vmem>>, vector<1x256xf32>
    %7 = vector.broadcast %6 : vector<1x256xf32> to vector<128x256xf32>
    %8 = arith.addf %5, %7 : vector<128x256xf32>
    %c0_7 = arith.constant 0 : index
    %c0_8 = arith.constant 0 : index
    %9 = vector.load %arg6[%c0_7, %c0_8] : memref<128x256xbf16, #tpu.memory_space<vmem>>, vector<128x256xbf16>
    %10 = arith.extf %9 : vector<128x256xbf16> to vector<128x256xf32>
    %11 = arith.addf %8, %10 : vector<128x256xf32>
    %cst_9 = arith.constant 0.000000e+00 : f32
    %12 = vector.broadcast %cst_9 : f32 to vector<128x256xf32>
    %13 = arith.maximumf %11, %12 : vector<128x256xf32>
    %c0_10 = arith.constant 0 : index
    %c0_11 = arith.constant 0 : index
    %14 = vector.load %arg7[%c0_10, %c0_11] : memref<128x256xf32, #tpu.memory_space<vmem>>, vector<128x256xf32>
    tpu.vector_store %arg7[%c0_10, %c0_11], %13 {strides = array<i32>} : memref<128x256xf32, #tpu.memory_space<vmem>>, vector<128x256xf32>,
    return
  }
  func.func @transform_0(%arg0: i32, %arg1: i32) -> (i32, i32) {
    %c0_i32 = arith.constant 0 : i32
    %c0_i32_0 = arith.constant 0 : i32
    return %arg0, %c0_i32 : i32, i32
  }
  func.func @transform_1(%arg0: i32, %arg1: i32) -> (i32, i32) {
    %c0_i32 = arith.constant 0 : i32
    %c0_i32_0 = arith.constant 0 : i32
    return %c0_i32, %arg1 : i32, i32
  }
  func.func @transform_2(%arg0: i32, %arg1: i32) -> (i32, i32) {
    %c0_i32 = arith.constant 0 : i32
    %c0_i32_0 = arith.constant 0 : i32
    return %c0_i32, %arg1 : i32, i32
  }
  func.func @transform_3(%arg0: i32, %arg1: i32) -> (i32, i32) {
    %c0_i32 = arith.constant 0 : i32
    %c0_i32_0 = arith.constant 0 : i32
    return %c0_i32, %arg1 : i32, i32
  }
  func.func @transform_4(%arg0: i32, %arg1: i32) -> (i32, i32) {
    %c0_i32 = arith.constant 0 : i32
    return %arg0, %arg1 : i32, i32
  }
  func.func @transform_5(%arg0: i32, %arg1: i32) -> (i32, i32) {
    %c0_i32 = arith.constant 0 : i32
    return %arg0, %arg1 : i32, i32
  }
}

module attributes {stable_mosaic.version = 11 : i64} {
  func.func @_mm_bn_kernel(%arg0: i32, %arg1: i32, %arg2: memref<128x128xbf16, #tpu.memory_space<vmem>>, %arg3: memref<128x256xbf16, #tpu.memory_space<vmem>>, %arg4: memref<1x256xf32, #tpu.memory_space<vmem>>, %arg5: memref<1x256xf32, #tpu.memory_space<vmem>>, %arg6: memref<128x256xf32, #tpu.memory_space<vmem>>) attributes {dimension_semantics = [#tpu.dimension_semantics<parallel>, #tpu.dimension_semantics<parallel>], iteration_bounds = array<i64: 1, 2>, scalar_prefetch = 0 : i64, scratch_operands = 0 : i64, tpu.core_type = #tpu.core_type<tc>, window_params = [{transform_indices = @transform_0, window_bounds = array<i64: 128, 128>}, {transform_indices = @transform_1, window_bounds = array<i64: 128, 256>}, {transform_indices = @transform_2, window_bounds = array<i64: 1, 256>}, {transform_indices = @transform_3, window_bounds = array<i64: 1, 256>}, {transform_indices = @transform_4, window_bounds = array<i64: 128, 256>}]} {
    %c0 = arith.constant 0 : index
    %c0_0 = arith.constant 0 : index
    %0 = vector.load %arg2[%c0, %c0_0] : memref<128x128xbf16, #tpu.memory_space<vmem>>, vector<128x128xbf16>
    %c0_1 = arith.constant 0 : index
    %c0_2 = arith.constant 0 : index
    %1 = vector.load %arg3[%c0_1, %c0_2] : memref<128x256xbf16, #tpu.memory_space<vmem>>, vector<128x256xbf16>
    %cst = arith.constant dense<0.000000e+00> : vector<128x256xf32>
    %2 = tpu.matmul %0, %1, %cst {dimension_numbers = #tpu.dot_dimension_numbers<[1], [0], [0], [1], [0, 0, 1, 1], [], []>} : vector<128x128xbf16>, vector<128x256xbf16>, vector<128x256xf32> -> vector<128x256xf32>
    %c0_3 = arith.constant 0 : index
    %c0_4 = arith.constant 0 : index
    %3 = vector.load %arg4[%c0_3, %c0_4] : memref<1x256xf32, #tpu.memory_space<vmem>>, vector<1x256xf32>
    %4 = vector.broadcast %3 : vector<1x256xf32> to vector<128x256xf32>
    %5 = arith.mulf %2, %4 : vector<128x256xf32>
    %c0_5 = arith.constant 0 : index
    %c0_6 = arith.constant 0 : index
    %6 = vector.load %arg5[%c0_5, %c0_6] : memref<1x256xf32, #tpu.memory_space<vmem>>, vector<1x256xf32>
    %7 = vector.broadcast %6 : vector<1x256xf32> to vector<128x256xf32>
    %8 = arith.addf %5, %7 : vector<128x256xf32>
    %c0_7 = arith.constant 0 : index
    %c0_8 = arith.constant 0 : index
    %9 = vector.load %arg6[%c0_7, %c0_8] : memref<128x256xf32, #tpu.memory_space<vmem>>, vector<128x256xf32>
    tpu.vector_store %arg6[%c0_7, %c0_8], %8 {strides = array<i32>} : memref<128x256xf32, #tpu.memory_space<vmem>>, vector<128x256xf32>,
    return
  }
  func.func @transform_0(%arg0: i32, %arg1: i32) -> (i32, i32) {
    %c0_i32 = arith.constant 0 : i32
    %c0_i32_0 = arith.constant 0 : i32
    return %arg0, %c0_i32 : i32, i32
  }
  func.func @transform_1(%arg0: i32, %arg1: i32) -> (i32, i32) {
    %c0_i32 = arith.constant 0 : i32
    %c0_i32_0 = arith.constant 0 : i32
    return %c0_i32, %arg1 : i32, i32
  }
  func.func @transform_2(%arg0: i32, %arg1: i32) -> (i32, i32) {
    %c0_i32 = arith.constant 0 : i32
    %c0_i32_0 = arith.constant 0 : i32
    return %c0_i32, %arg1 : i32, i32
  }
  func.func @transform_3(%arg0: i32, %arg1: i32) -> (i32, i32) {
    %c0_i32 = arith.constant 0 : i32
    %c0_i32_0 = arith.constant 0 : i32
    return %c0_i32, %arg1 : i32, i32
  }
  func.func @transform_4(%arg0: i32, %arg1: i32) -> (i32, i32) {
    %c0_i32 = arith.constant 0 : i32
    return %arg0, %arg1 : i32, i32
  }
}

</mosaic_0001>

<llo_original>
// kernel: stage3_forward.8
$region0: #{stage3_forward.8}
  #allocation0 [shape = 'u32[]', space=smem, size = 0x4, offset = 0x4, fixed_abs, tag = 'smem constant byte address 0x4 - core index']
  #allocation1 [shape = 'u32[144,128]{1,0:T(1,128)}', space=vmem, size = 0x12000, scoped, tag = 'internal scratch']
  %s0 = inlined_call_operand.vmem [shape: bf16[128,512], index: 0, kind: input, shape index: {}]
  %s1 = inlined_call_operand.vmem [shape: bf16[512,128], index: 1, kind: input, shape index: {}]
  %s2 = inlined_call_operand.vmem [shape: f32[1,128], index: 2, kind: input, shape index: {}]
  %s3 = inlined_call_operand.vmem [shape: f32[1,128], index: 3, kind: input, shape index: {}]
  %s4 = inlined_call_operand.vmem [shape: bf16[128,128], index: 4, kind: output, shape index: {}]
  %s5 = sld [smem:[#allocation0]]
  $region26: #{stage3_forward.8} parent=0
    _
  %s7 = ssub.s32 1, %s5
  %s8 = scalar_select 0, %s7, %s5
  // Predicated region
  $region2: #{stage3_forward.8} parent=0 // pred_check
    _
  $region3: #{stage3_forward.8} parent=0 // pred_check_branch
    %10 = sbr.rel (0) target = $region5
  $region4: #{stage3_forward.8} parent=0 // pred_region
    _
  $region5: #{stage3_forward.8} parent=0 // pred_fallthru
    _
  // Predicated region
  $region6: #{stage3_forward.8} parent=0 // pred_check
    _
  $region7: #{stage3_forward.8} parent=0 // pred_check_branch
    %12 = sbr.rel (0) target = $region9
  $region8: #{stage3_forward.8} parent=0 // pred_region
    _
  $region9: #{stage3_forward.8} parent=0 // pred_fallthru
    _
  // Predicated region
  $region10: #{stage3_forward.8} parent=0 // pred_check
    _
  $region11: #{stage3_forward.8} parent=0 // pred_check_branch
    %14 = sbr.rel (0) target = $region13
  $region12: #{stage3_forward.8} parent=0 // pred_region
    _
  $region13: #{stage3_forward.8} parent=0 // pred_fallthru
    _
  // Predicated region
  $region14: #{stage3_forward.8} parent=0 // pred_check
    _
  $region15: #{stage3_forward.8} parent=0 // pred_check_branch
    %16 = sbr.rel (0) target = $region17
  $region16: #{stage3_forward.8} parent=0 // pred_region
    _
  $region17: #{stage3_forward.8} parent=0 // pred_fallthru
    _
  %v18 = vld [vmem:[%s0] sm:$0xff]
  %v19 = vld [vmem:[%s0 + $0x8] sm:$0xff]
  %v20 = vld [vmem:[%s0 + $0x10] sm:$0xff]
  %v21 = vld [vmem:[%s0 + $0x18] sm:$0xff]
  %v22 = vld [vmem:[%s0 + $0x20] sm:$0xff]
  %v23 = vld [vmem:[%s0 + $0x28] sm:$0xff]
  %v24 = vld [vmem:[%s0 + $0x30] sm:$0xff]
  %v25 = vld [vmem:[%s0 + $0x38] sm:$0xff]
  %v26 = vld [vmem:[%s0 + $0x40] sm:$0xff]
  %v27 = vld [vmem:[%s0 + $0x48] sm:$0xff]
  %v28 = vld [vmem:[%s0 + $0x50] sm:$0xff]
  %v29 = vld [vmem:[%s0 + $0x58] sm:$0xff]
  %v30 = vld [vmem:[%s0 + $0x60] sm:$0xff]
  %v31 = vld [vmem:[%s0 + $0x68] sm:$0xff]
  %v32 = vld [vmem:[%s0 + $0x70] sm:$0xff]
  %v33 = vld [vmem:[%s0 + $0x78] sm:$0xff]
  %v34 = vld [vmem:[%s0 + $0x80] sm:$0xff]
  %v35 = vld [vmem:[%s0 + $0x88] sm:$0xff]
  %v36 = vld [vmem:[%s0 + $0x90] sm:$0xff]
  %v37 = vld [vmem:[%s0 + $0x98] sm:$0xff]
  %v38 = vld [vmem:[%s0 + $0xa0] sm:$0xff]
  %v39 = vld [vmem:[%s0 + $0xa8] sm:$0xff]
  %v40 = vld [vmem:[%s0 + $0xb0] sm:$0xff]
  %v41 = vld [vmem:[%s0 + $0xb8] sm:$0xff]
  %v42 = vld [vmem:[%s0 + $0xc0] sm:$0xff]
  %v43 = vld [vmem:[%s0 + $0xc8] sm:$0xff]
  %v44 = vld [vmem:[%s0 + $0xd0] sm:$0xff]
  %v45 = vld [vmem:[%s0 + $0xd8] sm:$0xff]
  %v46 = vld [vmem:[%s0 + $0xe0] sm:$0xff]
  %v47 = vld [vmem:[%s0 + $0xe8] sm:$0xff]
  %v48 = vld [vmem:[%s0 + $0xf0] sm:$0xff]
  %v49 = vld [vmem:[%s0 + $0xf8] sm:$0xff]
  %v50 = vld [vmem:[%s1] sm:$0xf]
  %v51 = vld [vmem:[%s1 + $0x4] sm:$0xf]
  %v52 = vld [vmem:[%s1 + $0x8] sm:$0xf]
  %v53 = vld [vmem:[%s1 + $0xc] sm:$0xf]
  %v54 = vld [vmem:[%s1 + $0x10] sm:$0xf]
  %v55 = vld [vmem:[%s1 + $0x14] sm:$0xf]
  %v56 = vld [vmem:[%s1 + $0x18] sm:$0xf]
  %v57 = vld [vmem:[%s1 + $0x1c] sm:$0xf]
  %v58 = vld [vmem:[%s1 + $0x20] sm:$0xf]
  %v59 = vld [vmem:[%s1 + $0x24] sm:$0xf]
  %v60 = vld [vmem:[%s1 + $0x28] sm:$0xf]
  %v61 = vld [vmem:[%s1 + $0x2c] sm:$0xf]
  %v62 = vld [vmem:[%s1 + $0x30] sm:$0xf]
  %v63 = vld [vmem:[%s1 + $0x34] sm:$0xf]
  %v64 = vld [vmem:[%s1 + $0x38] sm:$0xf]
  %v65 = vld [vmem:[%s1 + $0x3c] sm:$0xf]
  %v66 = vld [vmem:[%s1 + $0x40] sm:$0xf]
  %v67 = vld [vmem:[%s1 + $0x44] sm:$0xf]
  %v68 = vld [vmem:[%s1 + $0x48] sm:$0xf]
  %v69 = vld [vmem:[%s1 + $0x4c] sm:$0xf]
  %v70 = vld [vmem:[%s1 + $0x50] sm:$0xf]
  %v71 = vld [vmem:[%s1 + $0x54] sm:$0xf]
  %v72 = vld [vmem:[%s1 + $0x58] sm:$0xf]
  %v73 = vld [vmem:[%s1 + $0x5c] sm:$0xf]
  %v74 = vld [vmem:[%s1 + $0x60] sm:$0xf]
  %v75 = vld [vmem:[%s1 + $0x64] sm:$0xf]
  %v76 = vld [vmem:[%s1 + $0x68] sm:$0xf]
  %v77 = vld [vmem:[%s1 + $0x6c] sm:$0xf]
  %v78 = vld [vmem:[%s1 + $0x70] sm:$0xf]
  %v79 = vld [vmem:[%s1 + $0x74] sm:$0xf]
  %v80 = vld [vmem:[%s1 + $0x78] sm:$0xf]
  %v81 = vld [vmem:[%s1 + $0x7c] sm:$0xf]
  %v82 = vld [vmem:[%s1 + $0x80] sm:$0xf]
  %v83 = vld [vmem:[%s1 + $0x84] sm:$0xf]
  %v84 = vld [vmem:[%s1 + $0x88] sm:$0xf]
  %v85 = vld [vmem:[%s1 + $0x8c] sm:$0xf]
  %v86 = vld [vmem:[%s1 + $0x90] sm:$0xf]
  %v87 = vld [vmem:[%s1 + $0x94] sm:$0xf]
  %v88 = vld [vmem:[%s1 + $0x98] sm:$0xf]
  %v89 = vld [vmem:[%s1 + $0x9c] sm:$0xf]
  %v90 = vld [vmem:[%s1 + $0xa0] sm:$0xf]
  %v91 = vld [vmem:[%s1 + $0xa4] sm:$0xf]
  %v92 = vld [vmem:[%s1 + $0xa8] sm:$0xf]
  %v93 = vld [vmem:[%s1 + $0xac] sm:$0xf]
  %v94 = vld [vmem:[%s1 + $0xb0] sm:$0xf]
  %v95 = vld [vmem:[%s1 + $0xb4] sm:$0xf]
  %v96 = vld [vmem:[%s1 + $0xb8] sm:$0xf]
  %v97 = vld [vmem:[%s1 + $0xbc] sm:$0xf]
  %v98 = vld [vmem:[%s1 + $0xc0] sm:$0xf]
  %v99 = vld [vmem:[%s1 + $0xc4] sm:$0xf]
  %v100 = vld [vmem:[%s1 + $0xc8] sm:$0xf]
  %v101 = vld [vmem:[%s1 + $0xcc] sm:$0xf]
  %v102 = vld [vmem:[%s1 + $0xd0] sm:$0xf]
  %v103 = vld [vmem:[%s1 + $0xd4] sm:$0xf]
  %v104 = vld [vmem:[%s1 + $0xd8] sm:$0xf]
  %v105 = vld [vmem:[%s1 + $0xdc] sm:$0xf]
  %v106 = vld [vmem:[%s1 + $0xe0] sm:$0xf]
  %v107 = vld [vmem:[%s1 + $0xe4] sm:$0xf]
  %v108 = vld [vmem:[%s1 + $0xe8] sm:$0xf]
  %v109 = vld [vmem:[%s1 + $0xec] sm:$0xf]
  %v110 = vld [vmem:[%s1 + $0xf0] sm:$0xf]
  %v111 = vld [vmem:[%s1 + $0xf4] sm:$0xf]
  %v112 = vld [vmem:[%s1 + $0xf8] sm:$0xf]
  %v113 = vld [vmem:[%s1 + $0xfc] sm:$0xf]
  %v146 = vunpack.c.l.b16 %v18
  %v147 = vunpack.c.h.b16 %v18
  %v148 = vunpack.c.l.b16 %v19
  %v149 = vunpack.c.h.b16 %v19
  %v150 = vunpack.c.l.b16 %v20
  %v151 = vunpack.c.h.b16 %v20
  %v152 = vunpack.c.l.b16 %v21
  %v153 = vunpack.c.h.b16 %v21
  %v154 = vunpack.c.l.b16 %v22
  %v155 = vunpack.c.h.b16 %v22
  %v156 = vunpack.c.l.b16 %v23
  %v157 = vunpack.c.h.b16 %v23
  %v158 = vunpack.c.l.b16 %v24
  %v159 = vunpack.c.h.b16 %v24
  %v160 = vunpack.c.l.b16 %v25
  %v161 = vunpack.c.h.b16 %v25
  %v162 = vunpack.c.l.b16 %v26
  %v163 = vunpack.c.h.b16 %v26
  %v164 = vunpack.c.l.b16 %v27
  %v165 = vunpack.c.h.b16 %v27
  %v166 = vunpack.c.l.b16 %v28
  %v167 = vunpack.c.h.b16 %v28
  %v168 = vunpack.c.l.b16 %v29
  %v169 = vunpack.c.h.b16 %v29
  %v170 = vunpack.c.l.b16 %v30
  %v171 = vunpack.c.h.b16 %v30
  %v172 = vunpack.c.l.b16 %v31
  %v173 = vunpack.c.h.b16 %v31
  %v174 = vunpack.c.l.b16 %v32
  %v175 = vunpack.c.h.b16 %v32
  %v176 = vunpack.c.l.b16 %v33
  %v177 = vunpack.c.h.b16 %v33
  %v178 = vunpack.c.l.b16 %v34
  %v179 = vunpack.c.h.b16 %v34
  %v180 = vunpack.c.l.b16 %v35
  %v181 = vunpack.c.h.b16 %v35
  %v182 = vunpack.c.l.b16 %v36
  %v183 = vunpack.c.h.b16 %v36
  %v184 = vunpack.c.l.b16 %v37
  %v185 = vunpack.c.h.b16 %v37
  %v186 = vunpack.c.l.b16 %v38
  %v187 = vunpack.c.h.b16 %v38
  %v188 = vunpack.c.l.b16 %v39
  %v189 = vunpack.c.h.b16 %v39
  %v190 = vunpack.c.l.b16 %v40
  %v191 = vunpack.c.h.b16 %v40
  %v192 = vunpack.c.l.b16 %v41
  %v193 = vunpack.c.h.b16 %v41
  %v194 = vunpack.c.l.b16 %v42
  %v195 = vunpack.c.h.b16 %v42
  %v196 = vunpack.c.l.b16 %v43
  %v197 = vunpack.c.h.b16 %v43
  %v198 = vunpack.c.l.b16 %v44
  %v199 = vunpack.c.h.b16 %v44
  %v200 = vunpack.c.l.b16 %v45
  %v201 = vunpack.c.h.b16 %v45
  %v202 = vunpack.c.l.b16 %v46
  %v203 = vunpack.c.h.b16 %v46
  %v204 = vunpack.c.l.b16 %v47
  %v205 = vunpack.c.h.b16 %v47
  %v206 = vunpack.c.l.b16 %v48
  %v207 = vunpack.c.h.b16 %v48
  %v208 = vunpack.c.l.b16 %v49
  %v209 = vunpack.c.h.b16 %v49
  %v210 = vpack.c.b16 %v150, %v146
  %v211 = vpack.c.b16 %v151, %v147
  %v212 = vpack.c.b16 %v152, %v148
  %v213 = vpack.c.b16 %v153, %v149
  %v214 = vpack.c.b16 %v158, %v154
  %v215 = vpack.c.b16 %v159, %v155
  %v216 = vpack.c.b16 %v160, %v156
  %v217 = vpack.c.b16 %v161, %v157
  %v218 = vpack.c.b16 %v166, %v162
  %v219 = vpack.c.b16 %v167, %v163
  %v220 = vpack.c.b16 %v168, %v164
  %v221 = vpack.c.b16 %v169, %v165
  %v222 = vpack.c.b16 %v174, %v170
  %v223 = vpack.c.b16 %v175, %v171
  %v224 = vpack.c.b16 %v176, %v172
  %v225 = vpack.c.b16 %v177, %v173
  %v226 = vpack.c.b16 %v182, %v178
  %v227 = vpack.c.b16 %v183, %v179
  %v228 = vpack.c.b16 %v184, %v180
  %v229 = vpack.c.b16 %v185, %v181
  %v230 = vpack.c.b16 %v190, %v186
  %v231 = vpack.c.b16 %v191, %v187
  %v232 = vpack.c.b16 %v192, %v188
  %v233 = vpack.c.b16 %v193, %v189
  %v234 = vpack.c.b16 %v198, %v194
  %v235 = vpack.c.b16 %v199, %v195
  %v236 = vpack.c.b16 %v200, %v196
  %v237 = vpack.c.b16 %v201, %v197
  %v238 = vpack.c.b16 %v206, %v202
  %v239 = vpack.c.b16 %v207, %v203
  %v240 = vpack.c.b16 %v208, %v204
  %v241 = vpack.c.b16 %v209, %v205
  %v338 = vunpack.c.l.b16 %v50
  %v339 = vunpack.c.l.b16 %v51
  %v340 = vunpack.c.l.b16 %v52
  %v341 = vunpack.c.l.b16 %v53
  %v342 = vunpack.c.l.b16 %v54
  %v343 = vunpack.c.l.b16 %v55
  %v344 = vunpack.c.l.b16 %v56
  %v345 = vunpack.c.l.b16 %v57
  %v346 = vunpack.c.l.b16 %v58
  %v347 = vunpack.c.l.b16 %v59
  %v348 = vunpack.c.l.b16 %v60
  %v349 = vunpack.c.l.b16 %v61
  %v350 = vunpack.c.l.b16 %v62
  %v351 = vunpack.c.l.b16 %v63
  %v352 = vunpack.c.l.b16 %v64
  %v353 = vunpack.c.l.b16 %v65
  %v354 = vunpack.c.l.b16 %v66
  %v355 = vunpack.c.l.b16 %v67
  %v356 = vunpack.c.l.b16 %v68
  %v357 = vunpack.c.l.b16 %v69
  %v358 = vunpack.c.l.b16 %v70
  %v359 = vunpack.c.l.b16 %v71
  %v360 = vunpack.c.l.b16 %v72
  %v361 = vunpack.c.l.b16 %v73
  %v362 = vunpack.c.l.b16 %v74
  %v363 = vunpack.c.l.b16 %v75
  %v364 = vunpack.c.l.b16 %v76
  %v365 = vunpack.c.l.b16 %v77
  %v366 = vunpack.c.l.b16 %v78
  %v367 = vunpack.c.l.b16 %v79
  %v368 = vunpack.c.l.b16 %v80
  %v369 = vunpack.c.l.b16 %v81
  %v370 = vunpack.c.l.b16 %v82
  %v371 = vunpack.c.l.b16 %v83
  %v372 = vunpack.c.l.b16 %v84
  %v373 = vunpack.c.l.b16 %v85
  %v374 = vunpack.c.l.b16 %v86
  %v375 = vunpack.c.l.b16 %v87
  %v376 = vunpack.c.l.b16 %v88
  %v377 = vunpack.c.l.b16 %v89
  %v378 = vunpack.c.l.b16 %v90
  %v379 = vunpack.c.l.b16 %v91
  %v380 = vunpack.c.l.b16 %v92
  %v381 = vunpack.c.l.b16 %v93
  %v382 = vunpack.c.l.b16 %v94
  %v383 = vunpack.c.l.b16 %v95
  %v384 = vunpack.c.l.b16 %v96
  %v385 = vunpack.c.l.b16 %v97
  %v386 = vunpack.c.l.b16 %v98
  %v387 = vunpack.c.l.b16 %v99
  %v388 = vunpack.c.l.b16 %v100
  %v389 = vunpack.c.l.b16 %v101
  %v390 = vunpack.c.l.b16 %v102
  %v391 = vunpack.c.l.b16 %v103
  %v392 = vunpack.c.l.b16 %v104
  %v393 = vunpack.c.l.b16 %v105
  %v394 = vunpack.c.l.b16 %v106
  %v395 = vunpack.c.l.b16 %v107
  %v396 = vunpack.c.l.b16 %v108
  %v397 = vunpack.c.l.b16 %v109
  %v398 = vunpack.c.l.b16 %v110
  %v399 = vunpack.c.l.b16 %v111
  %v400 = vunpack.c.l.b16 %v112
  %v401 = vunpack.c.l.b16 %v113
  %v402 = vpack.c.b16 %v339, %v338
  %v403 = vpack.c.b16 %v341, %v340
  %v404 = vpack.c.b16 %v343, %v342
  %v405 = vpack.c.b16 %v345, %v344
  %v406 = vpack.c.b16 %v347, %v346
  %v407 = vpack.c.b16 %v349, %v348
  %v408 = vpack.c.b16 %v351, %v350
  %v409 = vpack.c.b16 %v353, %v352
  %v410 = vpack.c.b16 %v355, %v354
  %v411 = vpack.c.b16 %v357, %v356
  %v412 = vpack.c.b16 %v359, %v358
  %v413 = vpack.c.b16 %v361, %v360
  %v414 = vpack.c.b16 %v363, %v362
  %v415 = vpack.c.b16 %v365, %v364
  %v416 = vpack.c.b16 %v367, %v366
  %v417 = vpack.c.b16 %v369, %v368
  %v418 = vpack.c.b16 %v371, %v370
  %v419 = vpack.c.b16 %v373, %v372
  %v420 = vpack.c.b16 %v375, %v374
  %v421 = vpack.c.b16 %v377, %v376
  %v422 = vpack.c.b16 %v379, %v378
  %v423 = vpack.c.b16 %v381, %v380
  %v424 = vpack.c.b16 %v383, %v382
  %v425 = vpack.c.b16 %v385, %v384
  %v426 = vpack.c.b16 %v387, %v386
  %v427 = vpack.c.b16 %v389, %v388
  %v428 = vpack.c.b16 %v391, %v390
  %v429 = vpack.c.b16 %v393, %v392
  %v430 = vpack.c.b16 %v395, %v394
  %v431 = vpack.c.b16 %v397, %v396
  %v432 = vpack.c.b16 %v399, %v398
  %v433 = vpack.c.b16 %v401, %v400
  %466 = vmatprep.subr.bf16.mxu0 0
  %467 = vmatpush1.bf16.msra.mxu0 %v402
  %468 = vmatprep.subr.bf16.mxu0 0
  %469 = vmatpush1.bf16.msra.mxu0 %v403
  %470 = vmatprep.subr.bf16.mxu0 0
  %471 = vmatpush1.bf16.msra.mxu0 %v404
  %472 = vmatprep.subr.bf16.mxu0 0
  %473 = vmatpush1.bf16.msra.mxu0 %v405
  %474 = vmatprep.subr.bf16.mxu0 0
  %475 = vmatpush1.bf16.msra.mxu0 %v406
  %476 = vmatprep.subr.bf16.mxu0 0
  %477 = vmatpush1.bf16.msra.mxu0 %v407
  %478 = vmatprep.subr.bf16.mxu0 0
  %479 = vmatpush1.bf16.msra.mxu0 %v408
  %480 = vmatprep.subr.bf16.mxu0 0
  %481 = vmatpush1.bf16.msra.mxu0 %v409
  %482 = vmatprep.subr.bf16.mxu0 0
  %483 = vmatpush1.bf16.msra.mxu0 %v410
  %484 = vmatprep.subr.bf16.mxu0 0
  %485 = vmatpush1.bf16.msra.mxu0 %v411
  %486 = vmatprep.subr.bf16.mxu0 0
  %487 = vmatpush1.bf16.msra.mxu0 %v412
  %488 = vmatprep.subr.bf16.mxu0 0
  %489 = vmatpush1.bf16.msra.mxu0 %v413
  %490 = vmatprep.subr.bf16.mxu0 0
  %491 = vmatpush1.bf16.msra.mxu0 %v414
  %492 = vmatprep.subr.bf16.mxu0 0
  %493 = vmatpush1.bf16.msra.mxu0 %v415
  %494 = vmatprep.subr.bf16.mxu0 0
  %495 = vmatpush1.bf16.msra.mxu0 %v416
  %496 = vmatprep.subr.bf16.mxu0 0
  %497 = vmatpush1.bf16.msra.mxu0 %v417
  %498 = vmatprep.mubr.bf16.mxu0 %v211
  %499 = vmatmul.mubr.bf16.gmra.mrb[0].mxu0 %v210
  %v500 = vpop.f32.mrb[0].mxu0
  %v501 = vadd.f32 0.0, %v500
  %v502 = vpop.f32.mrb[0].mxu0
  %v503 = vpop.f32.mrb[0].mxu0
  %v504 = vadd.f32 0.0, %v503
  %v505 = vpop.f32.mrb[0].mxu0
  %506 = vmatprep.mubr.bf16.mxu0 %v215
  %507 = vmatmul.mubr.bf16.gmra.mrb[0].mxu0 %v214
  %v508 = vpop.f32.mrb[0].mxu0
  %v509 = vadd.f32 0.0, %v508
  %v510 = vpop.f32.mrb[0].mxu0
  %v511 = vpop.f32.mrb[0].mxu0
  %v512 = vadd.f32 0.0, %v511
  %v513 = vpop.f32.mrb[0].mxu0
  %514 = vmatprep.mubr.bf16.mxu0 %v219
  %515 = vmatmul.mubr.bf16.gmra.mrb[0].mxu0 %v218
  %v516 = vpop.f32.mrb[0].mxu0
  %v517 = vadd.f32 0.0, %v516
  %v518 = vpop.f32.mrb[0].mxu0
  %v519 = vpop.f32.mrb[0].mxu0
  %v520 = vadd.f32 0.0, %v519
  %v521 = vpop.f32.mrb[0].mxu0
  %522 = vmatprep.mubr.bf16.mxu0 %v223
  %523 = vmatmul.mubr.bf16.gmra.mrb[0].mxu0 %v222
  %v524 = vpop.f32.mrb[0].mxu0
  %v525 = vadd.f32 0.0, %v524
  %v526 = vpop.f32.mrb[0].mxu0
  %v527 = vpop.f32.mrb[0].mxu0
  %v528 = vadd.f32 0.0, %v527
  %v529 = vpop.f32.mrb[0].mxu0
  %530 = vmatprep.mubr.bf16.mxu0 %v227
  %531 = vmatmul.mubr.bf16.gmra.mrb[0].mxu0 %v226
  %v532 = vpop.f32.mrb[0].mxu0
  %v533 = vadd.f32 0.0, %v532
  %v534 = vpop.f32.mrb[0].mxu0
  %v535 = vpop.f32.mrb[0].mxu0
  %v536 = vadd.f32 0.0, %v535
  %v537 = vpop.f32.mrb[0].mxu0
  %538 = vmatprep.mubr.bf16.mxu0 %v231
  %539 = vmatmul.mubr.bf16.gmra.mrb[0].mxu0 %v230
  %v540 = vpop.f32.mrb[0].mxu0
  %v541 = vadd.f32 0.0, %v540
  %v542 = vpop.f32.mrb[0].mxu0
  %v543 = vpop.f32.mrb[0].mxu0
  %v544 = vadd.f32 0.0, %v543
  %v545 = vpop.f32.mrb[0].mxu0
  %546 = vmatprep.mubr.bf16.mxu0 %v235
  %547 = vmatmul.mubr.bf16.gmra.mrb[0].mxu0 %v234
  %v548 = vpop.f32.mrb[0].mxu0
  %v549 = vadd.f32 0.0, %v548
  %v550 = vpop.f32.mrb[0].mxu0
  %v551 = vpop.f32.mrb[0].mxu0
  %v552 = vadd.f32 0.0, %v551
  %v553 = vpop.f32.mrb[0].mxu0
  %554 = vmatprep.mubr.bf16.mxu0 %v239
  %555 = vmatmul.mubr.bf16.gmra.mrb[0].mxu0 %v238
  %v556 = vpop.f32.mrb[0].mxu0
  %v557 = vadd.f32 0.0, %v556
  %v558 = vpop.f32.mrb[0].mxu0
  %v559 = vpop.f32.mrb[0].mxu0
  %v560 = vadd.f32 0.0, %v559
  %v561 = vpop.f32.mrb[0].mxu0
  %562 = vdwg.mxu0
  %563 = vmatprep.subr.bf16.mxu0 0
  %564 = vmatpush1.bf16.msra.mxu0 %v418
  %565 = vmatprep.subr.bf16.mxu0 0
  %566 = vmatpush1.bf16.msra.mxu0 %v419
  %567 = vmatprep.subr.bf16.mxu0 0
  %568 = vmatpush1.bf16.msra.mxu0 %v420
  %569 = vmatprep.subr.bf16.mxu0 0
  %570 = vmatpush1.bf16.msra.mxu0 %v421
  %571 = vmatprep.subr.bf16.mxu0 0
  %572 = vmatpush1.bf16.msra.mxu0 %v422
  %573 = vmatprep.subr.bf16.mxu0 0
  %574 = vmatpush1.bf16.msra.mxu0 %v423
  %575 = vmatprep.subr.bf16.mxu0 0
  %576 = vmatpush1.bf16.msra.mxu0 %v424
  %577 = vmatprep.subr.bf16.mxu0 0
  %578 = vmatpush1.bf16.msra.mxu0 %v425
  %579 = vmatprep.subr.bf16.mxu0 0
  %580 = vmatpush1.bf16.msra.mxu0 %v426
  %581 = vmatprep.subr.bf16.mxu0 0
  %582 = vmatpush1.bf16.msra.mxu0 %v427
  %583 = vmatprep.subr.bf16.mxu0 0
  %584 = vmatpush1.bf16.msra.mxu0 %v428
  %585 = vmatprep.subr.bf16.mxu0 0
  %586 = vmatpush1.bf16.msra.mxu0 %v429
  %587 = vmatprep.subr.bf16.mxu0 0
  %588 = vmatpush1.bf16.msra.mxu0 %v430
  %589 = vmatprep.subr.bf16.mxu0 0
  %590 = vmatpush1.bf16.msra.mxu0 %v431
  %591 = vmatprep.subr.bf16.mxu0 0
  %592 = vmatpush1.bf16.msra.mxu0 %v432
  %593 = vmatprep.subr.bf16.mxu0 0
  %594 = vmatpush1.bf16.msra.mxu0 %v433
  %595 = vmatprep.mubr.bf16.mxu0 %v213
  %596 = vmatmul.mubr.bf16.gmra.mrb[0].mxu0 %v212
  %v597 = vpop.f32.mrb[0].mxu0
  %v598 = vadd.f32 %v501, %v597
  %v599 = vpop.f32.mrb[0].mxu0
  %v600 = vpop.f32.mrb[0].mxu0
  %v601 = vadd.f32 %v504, %v600
  %v602 = vpop.f32.mrb[0].mxu0
  %603 = vmatprep.mubr.bf16.mxu0 %v217
  %604 = vmatmul.mubr.bf16.gmra.mrb[0].mxu0 %v216
  %v605 = vpop.f32.mrb[0].mxu0
  %v606 = vadd.f32 %v509, %v605
  %v607 = vpop.f32.mrb[0].mxu0
  %v608 = vpop.f32.mrb[0].mxu0
  %v609 = vadd.f32 %v512, %v608
  %v610 = vpop.f32.mrb[0].mxu0
  %611 = vmatprep.mubr.bf16.mxu0 %v221
  %612 = vmatmul.mubr.bf16.gmra.mrb[0].mxu0 %v220
  %v613 = vpop.f32.mrb[0].mxu0
  %v614 = vadd.f32 %v517, %v613
  %v615 = vpop.f32.mrb[0].mxu0
  %v616 = vpop.f32.mrb[0].mxu0
  %v617 = vadd.f32 %v520, %v616
  %v618 = vpop.f32.mrb[0].mxu0
  %619 = vmatprep.mubr.bf16.mxu0 %v225
  %620 = vmatmul.mubr.bf16.gmra.mrb[0].mxu0 %v224
  %v621 = vpop.f32.mrb[0].mxu0
  %v622 = vadd.f32 %v525, %v621
  %v623 = vpop.f32.mrb[0].mxu0
  %v624 = vpop.f32.mrb[0].mxu0
  %v625 = vadd.f32 %v528, %v624
  %v626 = vpop.f32.mrb[0].mxu0
  %627 = vmatprep.mubr.bf16.mxu0 %v229
  %628 = vmatmul.mubr.bf16.gmra.mrb[0].mxu0 %v228
  %v629 = vpop.f32.mrb[0].mxu0
  %v630 = vadd.f32 %v533, %v629
  %v631 = vpop.f32.mrb[0].mxu0
  %v632 = vpop.f32.mrb[0].mxu0
  %v633 = vadd.f32 %v536, %v632
  %v634 = vpop.f32.mrb[0].mxu0
  %635 = vmatprep.mubr.bf16.mxu0 %v233
  %636 = vmatmul.mubr.bf16.gmra.mrb[0].mxu0 %v232
  %v637 = vpop.f32.mrb[0].mxu0
  %v638 = vadd.f32 %v541, %v637
  %v639 = vpop.f32.mrb[0].mxu0
  %v640 = vpop.f32.mrb[0].mxu0
  %v641 = vadd.f32 %v544, %v640
  %v642 = vpop.f32.mrb[0].mxu0
  %643 = vmatprep.mubr.bf16.mxu0 %v237
  %644 = vmatmul.mubr.bf16.gmra.mrb[0].mxu0 %v236
  %v645 = vpop.f32.mrb[0].mxu0
  %v646 = vadd.f32 %v549, %v645
  %v647 = vpop.f32.mrb[0].mxu0
  %v648 = vpop.f32.mrb[0].mxu0
  %v649 = vadd.f32 %v552, %v648
  %v650 = vpop.f32.mrb[0].mxu0
  %651 = vmatprep.mubr.bf16.mxu0 %v241
  %652 = vmatmul.mubr.bf16.gmra.mrb[0].mxu0 %v240
  %v653 = vpop.f32.mrb[0].mxu0
  %v654 = vadd.f32 %v557, %v653
  %v655 = vpop.f32.mrb[0].mxu0
  %v656 = vpop.f32.mrb[0].mxu0
  %v657 = vadd.f32 %v560, %v656
  %v658 = vpop.f32.mrb[0].mxu0
  %659 = vdwg.mxu0
  %v660 = vld [vmem:[%s2] sm:$0x1]
  %v662 = vlaneseq
  %v663 = vshrl.u32 %v662, 7
  %v664 = vsub.s32 0, %v663
  %v665 = vrot.slane %v660, %v664
  %v667 = vmul.f32 %v598, %v665
  %v668 = vmul.f32 %v601, %v665
  %v669 = vmul.f32 %v606, %v665
  %v670 = vmul.f32 %v609, %v665
  %v671 = vmul.f32 %v614, %v665
  %v672 = vmul.f32 %v617, %v665
  %v673 = vmul.f32 %v622, %v665
  %v674 = vmul.f32 %v625, %v665
  %v675 = vmul.f32 %v630, %v665
  %v676 = vmul.f32 %v633, %v665
  %v677 = vmul.f32 %v638, %v665
  %v678 = vmul.f32 %v641, %v665
  %v679 = vmul.f32 %v646, %v665
  %v680 = vmul.f32 %v649, %v665
  %v681 = vmul.f32 %v654, %v665
  %v682 = vmul.f32 %v657, %v665
  %v683 = vld [vmem:[%s3] sm:$0x1]
  %v685 = vlaneseq
  %v686 = vshrl.u32 %v685, 7
  %v687 = vsub.s32 0, %v686
  %v688 = vrot.slane %v683, %v687
  %v690 = vadd.f32 %v667, %v688
  %v691 = vadd.f32 %v668, %v688
  %v692 = vadd.f32 %v669, %v688
  %v693 = vadd.f32 %v670, %v688
  %v694 = vadd.f32 %v671, %v688
  %v695 = vadd.f32 %v672, %v688
  %v696 = vadd.f32 %v673, %v688
  %v697 = vadd.f32 %v674, %v688
  %v698 = vadd.f32 %v675, %v688
  %v699 = vadd.f32 %v676, %v688
  %v700 = vadd.f32 %v677, %v688
  %v701 = vadd.f32 %v678, %v688
  %v702 = vadd.f32 %v679, %v688
  %v703 = vadd.f32 %v680, %v688
  %v704 = vadd.f32 %v681, %v688
  %v705 = vadd.f32 %v682, %v688
  %v706 = vmax.f32 %v690, 0.0
  %v707 = vmax.f32 %v691, 0.0
  %v708 = vmax.f32 %v692, 0.0
  %v709 = vmax.f32 %v693, 0.0
  %v710 = vmax.f32 %v694, 0.0
  %v711 = vmax.f32 %v695, 0.0
  %v712 = vmax.f32 %v696, 0.0
  %v713 = vmax.f32 %v697, 0.0
  %v714 = vmax.f32 %v698, 0.0
  %v715 = vmax.f32 %v699, 0.0
  %v716 = vmax.f32 %v700, 0.0
  %v717 = vmax.f32 %v701, 0.0
  %v718 = vmax.f32 %v702, 0.0
  %v719 = vmax.f32 %v703, 0.0
  %v720 = vmax.f32 %v704, 0.0
  %v721 = vmax.f32 %v705, 0.0
  %v722 = vpack.c.bf16 %v707, %v706
  %v723 = vpack.c.bf16 %v709, %v708
  %v724 = vpack.c.bf16 %v711, %v710
  %v725 = vpack.c.bf16 %v713, %v712
  %v726 = vpack.c.bf16 %v715, %v714
  %v727 = vpack.c.bf16 %v717, %v716
  %v728 = vpack.c.bf16 %v719, %v718
  %v729 = vpack.c.bf16 %v721, %v720
  %v738 = vunpack.c.l.b16 %v722
  %v739 = vunpack.c.h.b16 %v722
  %v740 = vunpack.c.l.b16 %v723
  %v741 = vunpack.c.h.b16 %v723
  %v742 = vunpack.c.l.b16 %v724
  %v743 = vunpack.c.h.b16 %v724
  %v744 = vunpack.c.l.b16 %v725
  %v745 = vunpack.c.h.b16 %v725
  %v746 = vunpack.c.l.b16 %v726
  %v747 = vunpack.c.h.b16 %v726
  %v748 = vunpack.c.l.b16 %v727
  %v749 = vunpack.c.h.b16 %v727
  %v750 = vunpack.c.l.b16 %v728
  %v751 = vunpack.c.h.b16 %v728
  %v752 = vunpack.c.l.b16 %v729
  %v753 = vunpack.c.h.b16 %v729
  %v754 = vpack.c.b16 %v738, %v738
  %v755 = vpack.c.b16 %v739, %v739
  %v756 = vpack.c.b16 %v740, %v740
  %v757 = vpack.c.b16 %v741, %v741
  %v758 = vpack.c.b16 %v742, %v742
  %v759 = vpack.c.b16 %v743, %v743
  %v760 = vpack.c.b16 %v744, %v744
  %v761 = vpack.c.b16 %v745, %v745
  %v762 = vpack.c.b16 %v746, %v746
  %v763 = vpack.c.b16 %v747, %v747
  %v764 = vpack.c.b16 %v748, %v748
  %v765 = vpack.c.b16 %v749, %v749
  %v766 = vpack.c.b16 %v750, %v750
  %v767 = vpack.c.b16 %v751, %v751
  %v768 = vpack.c.b16 %v752, %v752
  %v769 = vpack.c.b16 %v753, %v753
  %786 = vst [vmem:[%s4] sm:$0xf] %v754
  %787 = vst [vmem:[%s4 + $0x4] sm:$0xf] %v755
  %788 = vst [vmem:[%s4 + $0x8] sm:$0xf] %v756
  %789 = vst [vmem:[%s4 + $0xc] sm:$0xf] %v757
  %790 = vst [vmem:[%s4 + $0x10] sm:$0xf] %v758
  %791 = vst [vmem:[%s4 + $0x14] sm:$0xf] %v759
  %792 = vst [vmem:[%s4 + $0x18] sm:$0xf] %v760
  %793 = vst [vmem:[%s4 + $0x1c] sm:$0xf] %v761
  %794 = vst [vmem:[%s4 + $0x20] sm:$0xf] %v762
  %795 = vst [vmem:[%s4 + $0x24] sm:$0xf] %v763
  %796 = vst [vmem:[%s4 + $0x28] sm:$0xf] %v764
  %797 = vst [vmem:[%s4 + $0x2c] sm:$0xf] %v765
  %798 = vst [vmem:[%s4 + $0x30] sm:$0xf] %v766
  %799 = vst [vmem:[%s4 + $0x34] sm:$0xf] %v767
  %800 = vst [vmem:[%s4 + $0x38] sm:$0xf] %v768
  %801 = vst [vmem:[%s4 + $0x3c] sm:$0xf] %v769
  // Predicated region
  $region18: #{stage3_forward.8} parent=0 // pred_check
    _
  $region19: #{stage3_forward.8} parent=0 // pred_check_branch
    %803 = sbr.rel (0) target = $region21
  $region20: #{stage3_forward.8} parent=0 // pred_region
    _
  $region21: #{stage3_forward.8} parent=0 // pred_fallthru
    _
  // Predicated region
  $region22: #{stage3_forward.8} parent=0 // pred_check
    _
  $region23: #{stage3_forward.8} parent=0 // pred_check_branch
    %805 = sbr.rel (0) target = $region25
  $region24: #{stage3_forward.8} parent=0 // pred_region
    _
  $region25: #{stage3_forward.8} parent=0 // pred_fallthru
    _

// kernel: stage3_forward.7
$region0: #{stage3_forward.7}
  #allocation0 [shape = 'u32[]', space=smem, size = 0x4, offset = 0x4, fixed_abs, tag = 'smem constant byte address 0x4 - core index']
  #allocation1 [shape = 'u32[144,128]{1,0:T(1,128)}', space=vmem, size = 0x12000, scoped, tag = 'internal scratch']
  %s0 = inlined_call_operand.vmem [shape: bf16[128,256], index: 0, kind: input, shape index: {}]
  %s1 = inlined_call_operand.vmem [shape: bf16[256,512], index: 1, kind: input, shape index: {}]
  %s2 = inlined_call_operand.vmem [shape: f32[1,512], index: 2, kind: input, shape index: {}]
  %s3 = inlined_call_operand.vmem [shape: f32[1,512], index: 3, kind: input, shape index: {}]
  %s4 = inlined_call_operand.vmem [shape: bf16[128,512], index: 4, kind: input, shape index: {}]
  %s5 = inlined_call_operand.vmem [shape: f32[1,512], index: 5, kind: input, shape index: {}]
  %s6 = inlined_call_operand.vmem [shape: f32[1,512], index: 6, kind: input, shape index: {}]
  %s7 = inlined_call_operand.vmem [shape: bf16[128,512], index: 7, kind: output, shape index: {}]
  %s8 = sld [smem:[#allocation0]]
  $region171: #{stage3_forward.7} parent=0
    _
  %s10 = ssub.s32 1, %s8
  %s11 = scalar_select 0, %s10, %s8
  $region1: #{stage3_forward.7} parent=0
    #allocation2 [shape = 'u8[262144]{0}', space=vmem, size = 0x40000, scoped, tag = 'input window, operand 1']
    #allocation3 [shape = 'u8[131072]{0}', space=vmem, size = 0x20000, scoped, tag = 'input window, operand 4']
    #allocation4 [shape = 'u8[131072]{0}', space=vmem, size = 0x20000, scoped, tag = 'output window, operand 0']
    loop: start=0, step=1, limit=4
    $region2: #{stage3_forward.7} parent=1 // loop_pre_header
      _
    $region3: #{stage3_forward.7} parent=1 // loop_header
      %s13 = sphi 0, %s17
      %p14 = scmp.ge.s32.totalorder %s13, 4
      %s20 = sphi 0, %s32
      %s21 = sphi 0, %s28
      %s22 = sphi 0, %s20
      %s23 = sphi 0, %s21
      %s24 = sphi 0, %s22
      %s25 = sphi 0, %s23
      %s35 = sphi 0, %s37
      %s38 = sphi 0, %s35
      %s39 = sphi 0, %s38
      %s55 = sphi 0, %s39
      %s61 = sphi 0, %s63
      %s64 = sphi 0, %s61
      %s65 = sphi 0, %s64
      %s81 = sphi 0, %s65
      %s87 = sphi 0, %s89
      %s90 = sphi 0, %s87
      %s91 = sphi 0, %s90
      %s107 = sphi 0, %s91
      %s113 = sphi 0, %s115
      %s116 = sphi 0, %s113
      %s117 = sphi 0, %s116
      %s133 = sphi 0, %s117
      %s141 = sphi 0, %s143
      %s144 = sphi 0, %s141
      %s145 = sphi 0, %s144
      %s161 = sphi 0, %s145
      %s167 = sphi 0, %s169
      %s170 = sphi 0, %s167
      %s171 = sphi 0, %s170
      %s187 = sphi 0, %s171
      %s193 = sphi 0, %s195
      %s196 = sphi 0, %s193
      %s197 = sphi 0, %s196
      %s213 = sphi 0, %s197
      %s221 = sphi 0, %s223
      %s224 = sphi 0, %s221
      %s225 = sphi 0, %s224
      %s241 = sphi 0, %s225
    $region4: #{stage3_forward.7} parent=1 // loop_header_branch
      %16 = sbr.rel (%p14) target = $region8
    $region5: #{stage3_forward.7} parent=1 // loop_body
      %s18 = ssub.s32 %s13, 1
      %s19 = ssub.s32 %s13, 2
      %s26 = sadd.s32 1, %s21
      %p27 = scmp.ge.s32.totalorder %s26, 2
      %s28 = scalar_select %p27, 0, %s26
      %s29 = sadd.s32 1, %s20
      %s30 = scalar_select %p27, %s29, %s20
      %p31 = scmp.ge.s32.totalorder %s30, 1
      %s32 = scalar_select %p31, 0, %s30
      %s33 = ssub.s32 %s20, %s32
      %p34 = scmp.eq.s32.totalorder %s33, 0
      %s36 = sadd.s32 %s35, 1
      %s37 = scalar_select %p34, %s35, %s36
      %p40 = pneg %p34
      %p41 = scmp.eq.s32.totalorder %s13, 1
      %p42 = por %p40, %p41
      %p43 = scmp.ne.s32.totalorder %s35, %s38
      %p44 = scmp.eq.s32.totalorder %s13, 0
      %p45 = por %p43, %p44
      %p46 = scmp.ne.s32.totalorder %s35, %s38
      %p47 = scmp.eq.s32.totalorder %s18, 1
      %p48 = por %p46, %p47
      %p49 = scmp.ne.s32.totalorder %s38, %s39
      %p50 = scmp.eq.s32.totalorder %s18, 0
      %p51 = por %p49, %p50
      %p52 = scmp.ne.s32.totalorder %s38, %s39
      %p53 = scmp.eq.s32.totalorder %s19, 1
      %p54 = por %p52, %p53
      %p56 = scmp.ne.s32.totalorder %s39, %s55
      %p57 = scmp.eq.s32.totalorder %s19, 0
      %p58 = por %p56, %p57
      %s59 = ssub.s32 %s21, %s28
      %p60 = scmp.eq.s32.totalorder %s59, 0
      %s62 = sadd.s32 %s61, 1
      %s63 = scalar_select %p60, %s61, %s62
      %p66 = pneg %p60
      %p67 = scmp.eq.s32.totalorder %s13, 1
      %p68 = por %p66, %p67
      %p69 = scmp.ne.s32.totalorder %s61, %s64
      %p70 = scmp.eq.s32.totalorder %s13, 0
      %p71 = por %p69, %p70
      %p72 = scmp.ne.s32.totalorder %s61, %s64
      %p73 = scmp.eq.s32.totalorder %s18, 1
      %p74 = por %p72, %p73
      %p75 = scmp.ne.s32.totalorder %s64, %s65
      %p76 = scmp.eq.s32.totalorder %s18, 0
      %p77 = por %p75, %p76
      %p78 = scmp.ne.s32.totalorder %s64, %s65
      %p79 = scmp.eq.s32.totalorder %s19, 1
      %p80 = por %p78, %p79
      %p82 = scmp.ne.s32.totalorder %s65, %s81
      %p83 = scmp.eq.s32.totalorder %s19, 0
      %p84 = por %p82, %p83
      %s85 = ssub.s32 %s21, %s28
      %p86 = scmp.eq.s32.totalorder %s85, 0
      %s88 = sadd.s32 %s87, 1
      %s89 = scalar_select %p86, %s87, %s88
      %p92 = pneg %p86
      %p93 = scmp.eq.s32.totalorder %s13, 1
      %p94 = por %p92, %p93
      %p95 = scmp.ne.s32.totalorder %s87, %s90
      %p96 = scmp.eq.s32.totalorder %s13, 0
      %p97 = por %p95, %p96
      %p98 = scmp.ne.s32.totalorder %s87, %s90
      %p99 = scmp.eq.s32.totalorder %s18, 1
      %p100 = por %p98, %p99
      %p101 = scmp.ne.s32.totalorder %s90, %s91
      %p102 = scmp.eq.s32.totalorder %s18, 0
      %p103 = por %p101, %p102
      %p104 = scmp.ne.s32.totalorder %s90, %s91
      %p105 = scmp.eq.s32.totalorder %s19, 1
      %p106 = por %p104, %p105
      %p108 = scmp.ne.s32.totalorder %s91, %s107
      %p109 = scmp.eq.s32.totalorder %s19, 0
      %p110 = por %p108, %p109
      %s111 = ssub.s32 %s21, %s28
      %p112 = scmp.eq.s32.totalorder %s111, 0
      %s114 = sadd.s32 %s113, 1
      %s115 = scalar_select %p112, %s113, %s114
      %p118 = pneg %p112
      %p119 = scmp.eq.s32.totalorder %s13, 1
      %p120 = por %p118, %p119
      %p121 = scmp.ne.s32.totalorder %s113, %s116
      %p122 = scmp.eq.s32.totalorder %s13, 0
      %p123 = por %p121, %p122
      %p124 = scmp.ne.s32.totalorder %s113, %s116
      %p125 = scmp.eq.s32.totalorder %s18, 1
      %p126 = por %p124, %p125
      %p127 = scmp.ne.s32.totalorder %s116, %s117
      %p128 = scmp.eq.s32.totalorder %s18, 0
      %p129 = por %p127, %p128
      %p130 = scmp.ne.s32.totalorder %s116, %s117
      %p131 = scmp.eq.s32.totalorder %s19, 1
      %p132 = por %p130, %p131
      %p134 = scmp.ne.s32.totalorder %s117, %s133
      %p135 = scmp.eq.s32.totalorder %s19, 0
      %p136 = por %p134, %p135
      %s137 = ssub.s32 %s20, %s32
      %s138 = ssub.s32 %s21, %s28
      %s139 = sor.u32 %s137, %s138
      %p140 = scmp.eq.s32.totalorder %s139, 0
      %s142 = sadd.s32 %s141, 1
      %s143 = scalar_select %p140, %s141, %s142
      %p146 = pneg %p140
      %p147 = scmp.eq.s32.totalorder %s13, 1
      %p148 = por %p146, %p147
      %p149 = scmp.ne.s32.totalorder %s141, %s144
      %p150 = scmp.eq.s32.totalorder %s13, 0
      %p151 = por %p149, %p150
      %p152 = scmp.ne.s32.totalorder %s141, %s144
      %p153 = scmp.eq.s32.totalorder %s18, 1
      %p154 = por %p152, %p153
      %p155 = scmp.ne.s32.totalorder %s144, %s145
      %p156 = scmp.eq.s32.totalorder %s18, 0
      %p157 = por %p155, %p156
      %p158 = scmp.ne.s32.totalorder %s144, %s145
      %p159 = scmp.eq.s32.totalorder %s19, 1
      %p160 = por %p158, %p159
      %p162 = scmp.ne.s32.totalorder %s145, %s161
      %p163 = scmp.eq.s32.totalorder %s19, 0
      %p164 = por %p162, %p163
      %s165 = ssub.s32 %s21, %s28
      %p166 = scmp.eq.s32.totalorder %s165, 0
      %s168 = sadd.s32 %s167, 1
      %s169 = scalar_select %p166, %s167, %s168
      %p172 = pneg %p166
      %p173 = scmp.eq.s32.totalorder %s13, 1
      %p174 = por %p172, %p173
      %p175 = scmp.ne.s32.totalorder %s167, %s170
      %p176 = scmp.eq.s32.totalorder %s13, 0
      %p177 = por %p175, %p176
      %p178 = scmp.ne.s32.totalorder %s167, %s170
      %p179 = scmp.eq.s32.totalorder %s18, 1
      %p180 = por %p178, %p179
      %p181 = scmp.ne.s32.totalorder %s170, %s171
      %p182 = scmp.eq.s32.totalorder %s18, 0
      %p183 = por %p181, %p182
      %p184 = scmp.ne.s32.totalorder %s170, %s171
      %p185 = scmp.eq.s32.totalorder %s19, 1
      %p186 = por %p184, %p185
      %p188 = scmp.ne.s32.totalorder %s171, %s187
      %p189 = scmp.eq.s32.totalorder %s19, 0
      %p190 = por %p188, %p189
      %s191 = ssub.s32 %s21, %s28
      %p192 = scmp.eq.s32.totalorder %s191, 0
      %s194 = sadd.s32 %s193, 1
      %s195 = scalar_select %p192, %s193, %s194
      %p198 = pneg %p192
      %p199 = scmp.eq.s32.totalorder %s13, 1
      %p200 = por %p198, %p199
      %p201 = scmp.ne.s32.totalorder %s193, %s196
      %p202 = scmp.eq.s32.totalorder %s13, 0
      %p203 = por %p201, %p202
      %p204 = scmp.ne.s32.totalorder %s193, %s196
      %p205 = scmp.eq.s32.totalorder %s18, 1
      %p206 = por %p204, %p205
      %p207 = scmp.ne.s32.totalorder %s196, %s197
      %p208 = scmp.eq.s32.totalorder %s18, 0
      %p209 = por %p207, %p208
      %p210 = scmp.ne.s32.totalorder %s196, %s197
      %p211 = scmp.eq.s32.totalorder %s19, 1
      %p212 = por %p210, %p211
      %p214 = scmp.ne.s32.totalorder %s197, %s213
      %p215 = scmp.eq.s32.totalorder %s19, 0
      %p216 = por %p214, %p215
      %s217 = ssub.s32 %s20, %s32
      %s218 = ssub.s32 %s21, %s28
      %s219 = sor.u32 %s217, %s218
      %p220 = scmp.eq.s32.totalorder %s219, 0
      %s222 = sadd.s32 %s221, 1
      %s223 = scalar_select %p220, %s221, %s222
      %p226 = pneg %p220
      %p227 = scmp.eq.s32.totalorder %s13, 1
      %p228 = por %p226, %p227
      %p229 = scmp.ne.s32.totalorder %s221, %s224
      %p230 = scmp.eq.s32.totalorder %s13, 0
      %p231 = por %p229, %p230
      %p232 = scmp.ne.s32.totalorder %s221, %s224
      %p233 = scmp.eq.s32.totalorder %s18, 1
      %p234 = por %p232, %p233
      %p235 = scmp.ne.s32.totalorder %s224, %s225
      %p236 = scmp.eq.s32.totalorder %s18, 0
      %p237 = por %p235, %p236
      %p238 = scmp.ne.s32.totalorder %s224, %s225
      %p239 = scmp.eq.s32.totalorder %s19, 1
      %p240 = por %p238, %p239
      %p242 = scmp.ne.s32.totalorder %s225, %s241
      %p243 = scmp.eq.s32.totalorder %s19, 0
      %p244 = por %p242, %p243
      %p245 = scmp.le.s32.totalorder 1, %s13
      %p246 = scmp.lt.s32.totalorder %s13, 3
      %p247 = pnand %p245, %p246
      %p248 = pneg %p247
      // Predicated region
      $region9: #{stage3_forward.7} parent=5 // pred_check
        _
      $region10: #{stage3_forward.7} parent=5 // pred_check_branch
        %250 = sbr.rel (%p247) target = $region12
      $region11: #{stage3_forward.7} parent=5 // pred_region
        %s251 = ssub.s32 %s13, 1
        // Predicated region
        $region13: #{stage3_forward.7} parent=11 // pred_check
          %p252 = pneg %p51
        $region14: #{stage3_forward.7} parent=11 // pred_check_branch
          %254 = sbr.rel (%p252) target = $region16
        $region15: #{stage3_forward.7} parent=11 // pred_region
          %s255 = smul.u32 16, %s22
          %p256 = scmp.lt.s32.totalorder %s255, 15
          %s257 = scalar_select %p256, %s255, 15
          %s258 = smul.addr %s257, 2
          %s259 = smul.addr %s258, 4
          %s260 = scalar_lea.vmem %s0, %s259
          %s261 = smul.u32 16, %s22
        $region16: #{stage3_forward.7} parent=11 // pred_fallthru
          _
      $region12: #{stage3_forward.7} parent=5 // pred_fallthru
        _
      %p262 = scmp.lt.s32.totalorder %s13, 2
      // Predicated region
      $region17: #{stage3_forward.7} parent=5 // pred_check
        %p263 = pneg %p262
      $region18: #{stage3_forward.7} parent=5 // pred_check_branch
        %265 = sbr.rel (%p263) target = $region20
      $region19: #{stage3_forward.7} parent=5 // pred_region
        // Predicated region
        $region21: #{stage3_forward.7} parent=19 // pred_check
          %p266 = pneg %p71
        $region22: #{stage3_forward.7} parent=19 // pred_check_branch
          %268 = sbr.rel (%p266) target = $region24
        $region23: #{stage3_forward.7} parent=19 // pred_region
          %s269 = sand.u32 %s61, 1
          %s270 = sand.u32 %s61, 1
          %s271 = smul.addr %s270, 256
          %s272 = scalar_lea.vmem [#allocation2], %s271
          %s273 = smul.u32 2, %s21
          %s274 = smul.addr %s273, 4
          %s275 = scalar_lea.vmem %s1, %s274
          // Predicated region
          $region25: #{stage3_forward.7} parent=23 // pred_check
            _
          $region26: #{stage3_forward.7} parent=23 // pred_check_branch
            %277 = sbr.rel (0) target = $region28
          $region27: #{stage3_forward.7} parent=23 // pred_region
            // Predicated region
            $region29: #{stage3_forward.7} parent=27 // pred_check
              _
            $region30: #{stage3_forward.7} parent=27 // pred_check_branch
              %279 = sbr.rel (0) target = $region32
            $region31: #{stage3_forward.7} parent=27 // pred_region
              // Predicated region
              $region44: #{stage3_forward.7} parent=31 // pred_check
                _
              $region45: #{stage3_forward.7} parent=31 // pred_check_branch
                %356 = sbr.rel (0) target = $region47
              $region46: #{stage3_forward.7} parent=31 // pred_region
                loop: start=0, step=1, limit=1
                $region48: #{stage3_forward.7} parent=46 // loop_pre_header
                  _
                $region49: #{stage3_forward.7} parent=46 // loop_header
                  %s358 = sphi 0, %s362
                  %p359 = scmp.ge.s32.totalorder %s358, 1
                  %s363 = sphi %s275, %s275
                  %s364 = sphi %s272, %s272
                $region50: #{stage3_forward.7} parent=46 // loop_header_branch
                  %361 = sbr.rel (%p359) target = $region54
                $region51: #{stage3_forward.7} parent=46 // loop_body
                  %v365 = vld [vmem:[%s363] sm:$0xff]
                  %366 = vst [vmem:[%s364] sm:$0xff] %v365
                  %v367 = vld [vmem:[%s363 + $0x10] sm:$0xff]
                  %368 = vst [vmem:[%s364 + $0x8] sm:$0xff] %v367
                  %v369 = vld [vmem:[%s363 + $0x20] sm:$0xff]
                  %370 = vst [vmem:[%s364 + $0x10] sm:$0xff] %v369
                  %v371 = vld [vmem:[%s363 + $0x30] sm:$0xff]
                  %372 = vst [vmem:[%s364 + $0x18] sm:$0xff] %v371
                  %v373 = vld [vmem:[%s363 + $0x40] sm:$0xff]
                  %374 = vst [vmem:[%s364 + $0x20] sm:$0xff] %v373
                  %v375 = vld [vmem:[%s363 + $0x50] sm:$0xff]
                  %376 = vst [vmem:[%s364 + $0x28] sm:$0xff] %v375
                  %v377 = vld [vmem:[%s363 + $0x60] sm:$0xff]
                  %378 = vst [vmem:[%s364 + $0x30] sm:$0xff] %v377
                  %v379 = vld [vmem:[%s363 + $0x70] sm:$0xff]
                  %380 = vst [vmem:[%s364 + $0x38] sm:$0xff] %v379
                  %v381 = vld [vmem:[%s363 + $0x80] sm:$0xff]
                  %382 = vst [vmem:[%s364 + $0x40] sm:$0xff] %v381
                  %v383 = vld [vmem:[%s363 + $0x90] sm:$0xff]
                  %384 = vst [vmem:[%s364 + $0x48] sm:$0xff] %v383
                  %v385 = vld [vmem:[%s363 + $0xa0] sm:$0xff]
                  %386 = vst [vmem:[%s364 + $0x50] sm:$0xff] %v385
                  %v387 = vld [vmem:[%s363 + $0xb0] sm:$0xff]
                  %388 = vst [vmem:[%s364 + $0x58] sm:$0xff] %v387
                  %v389 = vld [vmem:[%s363 + $0xc0] sm:$0xff]
                  %390 = vst [vmem:[%s364 + $0x60] sm:$0xff] %v389
                  %v391 = vld [vmem:[%s363 + $0xd0] sm:$0xff]
                  %392 = vst [vmem:[%s364 + $0x68] sm:$0xff] %v391
                  %v393 = vld [vmem:[%s363 + $0xe0] sm:$0xff]
                  %394 = vst [vmem:[%s364 + $0x70] sm:$0xff] %v393
                  %v395 = vld [vmem:[%s363 + $0xf0] sm:$0xff]
                  %396 = vst [vmem:[%s364 + $0x78] sm:$0xff] %v395
                  %v397 = vld [vmem:[%s363 + $0x100] sm:$0xff]
                  %398 = vst [vmem:[%s364 + $0x80] sm:$0xff] %v397
                  %v399 = vld [vmem:[%s363 + $0x110] sm:$0xff]
                  %400 = vst [vmem:[%s364 + $0x88] sm:$0xff] %v399
                  %v401 = vld [vmem:[%s363 + $0x120] sm:$0xff]
                  %402 = vst [vmem:[%s364 + $0x90] sm:$0xff] %v401
                  %v403 = vld [vmem:[%s363 + $0x130] sm:$0xff]
                  %404 = vst [vmem:[%s364 + $0x98] sm:$0xff] %v403
                  %v405 = vld [vmem:[%s363 + $0x140] sm:$0xff]
                  %406 = vst [vmem:[%s364 + $0xa0] sm:$0xff] %v405
                  %v407 = vld [vmem:[%s363 + $0x150] sm:$0xff]
                  %408 = vst [vmem:[%s364 + $0xa8] sm:$0xff] %v407
                  %v409 = vld [vmem:[%s363 + $0x160] sm:$0xff]
                  %410 = vst [vmem:[%s364 + $0xb0] sm:$0xff] %v409
                  %v411 = vld [vmem:[%s363 + $0x170] sm:$0xff]
                  %412 = vst [vmem:[%s364 + $0xb8] sm:$0xff] %v411
                  %v413 = vld [vmem:[%s363 + $0x180] sm:$0xff]
                  %414 = vst [vmem:[%s364 + $0xc0] sm:$0xff] %v413
                  %v415 = vld [vmem:[%s363 + $0x190] sm:$0xff]
                  %416 = vst [vmem:[%s364 + $0xc8] sm:$0xff] %v415
                  %v417 = vld [vmem:[%s363 + $0x1a0] sm:$0xff]
                  %418 = vst [vmem:[%s364 + $0xd0] sm:$0xff] %v417
                  %v419 = vld [vmem:[%s363 + $0x1b0] sm:$0xff]
                  %420 = vst [vmem:[%s364 + $0xd8] sm:$0xff] %v419
                  %v421 = vld [vmem:[%s363 + $0x1c0] sm:$0xff]
                  %422 = vst [vmem:[%s364 + $0xe0] sm:$0xff] %v421
                  %v423 = vld [vmem:[%s363 + $0x1d0] sm:$0xff]
                  %424 = vst [vmem:[%s364 + $0xe8] sm:$0xff] %v423
                  %v425 = vld [vmem:[%s363 + $0x1e0] sm:$0xff]
                  %426 = vst [vmem:[%s364 + $0xf0] sm:$0xff] %v425
                  %v427 = vld [vmem:[%s363 + $0x1f0] sm:$0xff]
                  %428 = vst [vmem:[%s364 + $0xf8] sm:$0xff] %v427
                $region52: #{stage3_forward.7} parent=46 // loop_footer
                  %s362 = sadd.s32 1, %s358
                $region53: #{stage3_forward.7} parent=46 // loop_footer_branch
                  %357 = sbr.rel target = $region49
                $region54: #{stage3_forward.7} parent=46 // loop_exit
                  _
              $region47: #{stage3_forward.7} parent=31 // pred_fallthru
                _
              // Predicated region
              $region55: #{stage3_forward.7} parent=31 // pred_check
                _
              $region56: #{stage3_forward.7} parent=31 // pred_check_branch
                %430 = sbr.rel target = $region58
              $region57: #{stage3_forward.7} parent=31 // pred_region
                _
              $region58: #{stage3_forward.7} parent=31 // pred_fallthru
                _
            $region32: #{stage3_forward.7} parent=27 // pred_fallthru
              _
            // Predicated region
            $region33: #{stage3_forward.7} parent=27 // pred_check
              _
            $region34: #{stage3_forward.7} parent=27 // pred_check_branch
              %281 = sbr.rel target = $region36
            $region35: #{stage3_forward.7} parent=27 // pred_region
              loop: start=0, step=1, limit=1
              $region37: #{stage3_forward.7} parent=35 // loop_pre_header
                _
              $region38: #{stage3_forward.7} parent=35 // loop_header
                %s284 = sphi 0, %s288
                %p285 = scmp.ge.s32.totalorder %s284, 1
                %s289 = sphi %s275, %s275
                %s290 = sphi %s272, %s272
              $region39: #{stage3_forward.7} parent=35 // loop_header_branch
                %287 = sbr.rel (%p285) target = $region43
              $region40: #{stage3_forward.7} parent=35 // loop_body
                %v291 = vld [vmem:[%s289] sm:$0xff]
                %292 = vst [vmem:[%s290] sm:$0xff] %v291
                %v293 = vld [vmem:[%s289 + $0x10] sm:$0xff]
                %294 = vst [vmem:[%s290 + $0x8] sm:$0xff] %v293
                %v295 = vld [vmem:[%s289 + $0x20] sm:$0xff]
                %296 = vst [vmem:[%s290 + $0x10] sm:$0xff] %v295
                %v297 = vld [vmem:[%s289 + $0x30] sm:$0xff]
                %298 = vst [vmem:[%s290 + $0x18] sm:$0xff] %v297
                %v299 = vld [vmem:[%s289 + $0x40] sm:$0xff]
                %300 = vst [vmem:[%s290 + $0x20] sm:$0xff] %v299
                %v301 = vld [vmem:[%s289 + $0x50] sm:$0xff]
                %302 = vst [vmem:[%s290 + $0x28] sm:$0xff] %v301
                %v303 = vld [vmem:[%s289 + $0x60] sm:$0xff]
                %304 = vst [vmem:[%s290 + $0x30] sm:$0xff] %v303
                %v305 = vld [vmem:[%s289 + $0x70] sm:$0xff]
                %306 = vst [vmem:[%s290 + $0x38] sm:$0xff] %v305
                %v307 = vld [vmem:[%s289 + $0x80] sm:$0xff]
                %308 = vst [vmem:[%s290 + $0x40] sm:$0xff] %v307
                %v309 = vld [vmem:[%s289 + $0x90] sm:$0xff]
                %310 = vst [vmem:[%s290 + $0x48] sm:$0xff] %v309
                %v311 = vld [vmem:[%s289 + $0xa0] sm:$0xff]
                %312 = vst [vmem:[%s290 + $0x50] sm:$0xff] %v311
                %v313 = vld [vmem:[%s289 + $0xb0] sm:$0xff]
                %314 = vst [vmem:[%s290 + $0x58] sm:$0xff] %v313
                %v315 = vld [vmem:[%s289 + $0xc0] sm:$0xff]
                %316 = vst [vmem:[%s290 + $0x60] sm:$0xff] %v315
                %v317 = vld [vmem:[%s289 + $0xd0] sm:$0xff]
                %318 = vst [vmem:[%s290 + $0x68] sm:$0xff] %v317
                %v319 = vld [vmem:[%s289 + $0xe0] sm:$0xff]
                %320 = vst [vmem:[%s290 + $0x70] sm:$0xff] %v319
                %v321 = vld [vmem:[%s289 + $0xf0] sm:$0xff]
                %322 = vst [vmem:[%s290 + $0x78] sm:$0xff] %v321
                %v323 = vld [vmem:[%s289 + $0x100] sm:$0xff]
                %324 = vst [vmem:[%s290 + $0x80] sm:$0xff] %v323
                %v325 = vld [vmem:[%s289 + $0x110] sm:$0xff]
                %326 = vst [vmem:[%s290 + $0x88] sm:$0xff] %v325
                %v327 = vld [vmem:[%s289 + $0x120] sm:$0xff]
                %328 = vst [vmem:[%s290 + $0x90] sm:$0xff] %v327
                %v329 = vld [vmem:[%s289 + $0x130] sm:$0xff]
                %330 = vst [vmem:[%s290 + $0x98] sm:$0xff] %v329
                %v331 = vld [vmem:[%s289 + $0x140] sm:$0xff]
                %332 = vst [vmem:[%s290 + $0xa0] sm:$0xff] %v331
                %v333 = vld [vmem:[%s289 + $0x150] sm:$0xff]
                %334 = vst [vmem:[%s290 + $0xa8] sm:$0xff] %v333
                %v335 = vld [vmem:[%s289 + $0x160] sm:$0xff]
                %336 = vst [vmem:[%s290 + $0xb0] sm:$0xff] %v335
                %v337 = vld [vmem:[%s289 + $0x170] sm:$0xff]
                %338 = vst [vmem:[%s290 + $0xb8] sm:$0xff] %v337
                %v339 = vld [vmem:[%s289 + $0x180] sm:$0xff]
                %340 = vst [vmem:[%s290 + $0xc0] sm:$0xff] %v339
                %v341 = vld [vmem:[%s289 + $0x190] sm:$0xff]
                %342 = vst [vmem:[%s290 + $0xc8] sm:$0xff] %v341
                %v343 = vld [vmem:[%s289 + $0x1a0] sm:$0xff]
                %344 = vst [vmem:[%s290 + $0xd0] sm:$0xff] %v343
                %v345 = vld [vmem:[%s289 + $0x1b0] sm:$0xff]
                %346 = vst [vmem:[%s290 + $0xd8] sm:$0xff] %v345
                %v347 = vld [vmem:[%s289 + $0x1c0] sm:$0xff]
                %348 = vst [vmem:[%s290 + $0xe0] sm:$0xff] %v347
                %v349 = vld [vmem:[%s289 + $0x1d0] sm:$0xff]
                %350 = vst [vmem:[%s290 + $0xe8] sm:$0xff] %v349
                %v351 = vld [vmem:[%s289 + $0x1e0] sm:$0xff]
                %352 = vst [vmem:[%s290 + $0xf0] sm:$0xff] %v351
                %v353 = vld [vmem:[%s289 + $0x1f0] sm:$0xff]
                %354 = vst [vmem:[%s290 + $0xf8] sm:$0xff] %v353
              $region41: #{stage3_forward.7} parent=35 // loop_footer
                %s288 = sadd.s32 1, %s284
              $region42: #{stage3_forward.7} parent=35 // loop_footer_branch
                %283 = sbr.rel target = $region38
              $region43: #{stage3_forward.7} parent=35 // loop_exit
                _
            $region36: #{stage3_forward.7} parent=27 // pred_fallthru
              _
          $region28: #{stage3_forward.7} parent=23 // pred_fallthru
            _
          %431 = vnop
        $region24: #{stage3_forward.7} parent=19 // pred_fallthru
          _
        // Predicated region
        $region59: #{stage3_forward.7} parent=19 // pred_check
          %p432 = pneg %p97
        $region60: #{stage3_forward.7} parent=19 // pred_check_branch
          %434 = sbr.rel (%p432) target = $region62
        $region61: #{stage3_forward.7} parent=19 // pred_region
          %s435 = smul.u32 2, %s21
          %p436 = scmp.lt.s32.totalorder %s435, 3
          %s437 = scalar_select %p436, %s435, 3
          %s438 = scalar_lea.vmem %s2, %s437
          %s439 = smul.u32 2, %s21
        $region62: #{stage3_forward.7} parent=19 // pred_fallthru
          _
        // Predicated region
        $region63: #{stage3_forward.7} parent=19 // pred_check
          %p440 = pneg %p123
        $region64: #{stage3_forward.7} parent=19 // pred_check_branch
          %442 = sbr.rel (%p440) target = $region66
        $region65: #{stage3_forward.7} parent=19 // pred_region
          %s443 = smul.u32 2, %s21
          %p444 = scmp.lt.s32.totalorder %s443, 3
          %s445 = scalar_select %p444, %s443, 3
          %s446 = scalar_lea.vmem %s3, %s445
          %s447 = smul.u32 2, %s21
        $region66: #{stage3_forward.7} parent=19 // pred_fallthru
          _
        // Predicated region
        $region67: #{stage3_forward.7} parent=19 // pred_check
          %p448 = pneg %p151
        $region68: #{stage3_forward.7} parent=19 // pred_check_branch
          %450 = sbr.rel (%p448) target = $region70
        $region69: #{stage3_forward.7} parent=19 // pred_region
          %s451 = sand.u32 %s141, 1
          %s452 = sand.u32 %s141, 1
          %s453 = smul.addr %s452, 128
          %s454 = scalar_lea.vmem [#allocation3], %s453
          %s455 = smul.u32 16, %s20
          %s456 = smul.u32 2, %s21
          %s457 = smul.addr %s455, 4
          %s458 = sadd.s32 %s456, %s457
          %s459 = smul.addr %s458, 4
          %s460 = scalar_lea.vmem %s4, %s459
          // Predicated region
          $region71: #{stage3_forward.7} parent=69 // pred_check
            _
          $region72: #{stage3_forward.7} parent=69 // pred_check_branch
            %462 = sbr.rel (0) target = $region74
          $region73: #{stage3_forward.7} parent=69 // pred_region
            // Predicated region
            $region75: #{stage3_forward.7} parent=73 // pred_check
              _
            $region76: #{stage3_forward.7} parent=73 // pred_check_branch
              %464 = sbr.rel (0) target = $region78
            $region77: #{stage3_forward.7} parent=73 // pred_region
              // Predicated region
              $region90: #{stage3_forward.7} parent=77 // pred_check
                _
              $region91: #{stage3_forward.7} parent=77 // pred_check_branch
                %509 = sbr.rel (0) target = $region93
              $region92: #{stage3_forward.7} parent=77 // pred_region
                loop: start=0, step=1, limit=1
                $region94: #{stage3_forward.7} parent=92 // loop_pre_header
                  _
                $region95: #{stage3_forward.7} parent=92 // loop_header
                  %s511 = sphi 0, %s515
                  %p512 = scmp.ge.s32.totalorder %s511, 1
                  %s516 = sphi %s460, %s460
                  %s517 = sphi %s454, %s454
                $region96: #{stage3_forward.7} parent=92 // loop_header_branch
                  %514 = sbr.rel (%p512) target = $region100
                $region97: #{stage3_forward.7} parent=92 // loop_body
                  %v518 = vld [vmem:[%s516] sm:$0xff]
                  %519 = vst [vmem:[%s517] sm:$0xff] %v518
                  %v520 = vld [vmem:[%s516 + $0x10] sm:$0xff]
                  %521 = vst [vmem:[%s517 + $0x8] sm:$0xff] %v520
                  %v522 = vld [vmem:[%s516 + $0x20] sm:$0xff]
                  %523 = vst [vmem:[%s517 + $0x10] sm:$0xff] %v522
                  %v524 = vld [vmem:[%s516 + $0x30] sm:$0xff]
                  %525 = vst [vmem:[%s517 + $0x18] sm:$0xff] %v524
                  %v526 = vld [vmem:[%s516 + $0x40] sm:$0xff]
                  %527 = vst [vmem:[%s517 + $0x20] sm:$0xff] %v526
                  %v528 = vld [vmem:[%s516 + $0x50] sm:$0xff]
                  %529 = vst [vmem:[%s517 + $0x28] sm:$0xff] %v528
                  %v530 = vld [vmem:[%s516 + $0x60] sm:$0xff]
                  %531 = vst [vmem:[%s517 + $0x30] sm:$0xff] %v530
                  %v532 = vld [vmem:[%s516 + $0x70] sm:$0xff]
                  %533 = vst [vmem:[%s517 + $0x38] sm:$0xff] %v532
                  %v534 = vld [vmem:[%s516 + $0x80] sm:$0xff]
                  %535 = vst [vmem:[%s517 + $0x40] sm:$0xff] %v534
                  %v536 = vld [vmem:[%s516 + $0x90] sm:$0xff]
                  %537 = vst [vmem:[%s517 + $0x48] sm:$0xff] %v536
                  %v538 = vld [vmem:[%s516 + $0xa0] sm:$0xff]
                  %539 = vst [vmem:[%s517 + $0x50] sm:$0xff] %v538
                  %v540 = vld [vmem:[%s516 + $0xb0] sm:$0xff]
                  %541 = vst [vmem:[%s517 + $0x58] sm:$0xff] %v540
                  %v542 = vld [vmem:[%s516 + $0xc0] sm:$0xff]
                  %543 = vst [vmem:[%s517 + $0x60] sm:$0xff] %v542
                  %v544 = vld [vmem:[%s516 + $0xd0] sm:$0xff]
                  %545 = vst [vmem:[%s517 + $0x68] sm:$0xff] %v544
                  %v546 = vld [vmem:[%s516 + $0xe0] sm:$0xff]
                  %547 = vst [vmem:[%s517 + $0x70] sm:$0xff] %v546
                  %v548 = vld [vmem:[%s516 + $0xf0] sm:$0xff]
                  %549 = vst [vmem:[%s517 + $0x78] sm:$0xff] %v548
                $region98: #{stage3_forward.7} parent=92 // loop_footer
                  %s515 = sadd.s32 1, %s511
                $region99: #{stage3_forward.7} parent=92 // loop_footer_branch
                  %510 = sbr.rel target = $region95
                $region100: #{stage3_forward.7} parent=92 // loop_exit
                  _
              $region93: #{stage3_forward.7} parent=77 // pred_fallthru
                _
              // Predicated region
              $region101: #{stage3_forward.7} parent=77 // pred_check
                _
              $region102: #{stage3_forward.7} parent=77 // pred_check_branch
                %551 = sbr.rel target = $region104
              $region103: #{stage3_forward.7} parent=77 // pred_region
                _
              $region104: #{stage3_forward.7} parent=77 // pred_fallthru
                _
            $region78: #{stage3_forward.7} parent=73 // pred_fallthru
              _
            // Predicated region
            $region79: #{stage3_forward.7} parent=73 // pred_check
              _
            $region80: #{stage3_forward.7} parent=73 // pred_check_branch
              %466 = sbr.rel target = $region82
            $region81: #{stage3_forward.7} parent=73 // pred_region
              loop: start=0, step=1, limit=1
              $region83: #{stage3_forward.7} parent=81 // loop_pre_header
                _
              $region84: #{stage3_forward.7} parent=81 // loop_header
                %s469 = sphi 0, %s473
                %p470 = scmp.ge.s32.totalorder %s469, 1
                %s474 = sphi %s460, %s460
                %s475 = sphi %s454, %s454
              $region85: #{stage3_forward.7} parent=81 // loop_header_branch
                %472 = sbr.rel (%p470) target = $region89
              $region86: #{stage3_forward.7} parent=81 // loop_body
                %v476 = vld [vmem:[%s474] sm:$0xff]
                %477 = vst [vmem:[%s475] sm:$0xff] %v476
                %v478 = vld [vmem:[%s474 + $0x10] sm:$0xff]
                %479 = vst [vmem:[%s475 + $0x8] sm:$0xff] %v478
                %v480 = vld [vmem:[%s474 + $0x20] sm:$0xff]
                %481 = vst [vmem:[%s475 + $0x10] sm:$0xff] %v480
                %v482 = vld [vmem:[%s474 + $0x30] sm:$0xff]
                %483 = vst [vmem:[%s475 + $0x18] sm:$0xff] %v482
                %v484 = vld [vmem:[%s474 + $0x40] sm:$0xff]
                %485 = vst [vmem:[%s475 + $0x20] sm:$0xff] %v484
                %v486 = vld [vmem:[%s474 + $0x50] sm:$0xff]
                %487 = vst [vmem:[%s475 + $0x28] sm:$0xff] %v486
                %v488 = vld [vmem:[%s474 + $0x60] sm:$0xff]
                %489 = vst [vmem:[%s475 + $0x30] sm:$0xff] %v488
                %v490 = vld [vmem:[%s474 + $0x70] sm:$0xff]
                %491 = vst [vmem:[%s475 + $0x38] sm:$0xff] %v490
                %v492 = vld [vmem:[%s474 + $0x80] sm:$0xff]
                %493 = vst [vmem:[%s475 + $0x40] sm:$0xff] %v492
                %v494 = vld [vmem:[%s474 + $0x90] sm:$0xff]
                %495 = vst [vmem:[%s475 + $0x48] sm:$0xff] %v494
                %v496 = vld [vmem:[%s474 + $0xa0] sm:$0xff]
                %497 = vst [vmem:[%s475 + $0x50] sm:$0xff] %v496
                %v498 = vld [vmem:[%s474 + $0xb0] sm:$0xff]
                %499 = vst [vmem:[%s475 + $0x58] sm:$0xff] %v498
                %v500 = vld [vmem:[%s474 + $0xc0] sm:$0xff]
                %501 = vst [vmem:[%s475 + $0x60] sm:$0xff] %v500
                %v502 = vld [vmem:[%s474 + $0xd0] sm:$0xff]
                %503 = vst [vmem:[%s475 + $0x68] sm:$0xff] %v502
                %v504 = vld [vmem:[%s474 + $0xe0] sm:$0xff]
                %505 = vst [vmem:[%s475 + $0x70] sm:$0xff] %v504
                %v506 = vld [vmem:[%s474 + $0xf0] sm:$0xff]
                %507 = vst [vmem:[%s475 + $0x78] sm:$0xff] %v506
              $region87: #{stage3_forward.7} parent=81 // loop_footer
                %s473 = sadd.s32 1, %s469
              $region88: #{stage3_forward.7} parent=81 // loop_footer_branch
                %468 = sbr.rel target = $region84
              $region89: #{stage3_forward.7} parent=81 // loop_exit
                _
            $region82: #{stage3_forward.7} parent=73 // pred_fallthru
              _
          $region74: #{stage3_forward.7} parent=69 // pred_fallthru
            _
          %552 = vnop
        $region70: #{stage3_forward.7} parent=19 // pred_fallthru
          _
        // Predicated region
        $region105: #{stage3_forward.7} parent=19 // pred_check
          %p553 = pneg %p177
        $region106: #{stage3_forward.7} parent=19 // pred_check_branch
          %555 = sbr.rel (%p553) target = $region108
        $region107: #{stage3_forward.7} parent=19 // pred_region
          %s556 = smul.u32 2, %s21
          %p557 = scmp.lt.s32.totalorder %s556, 3
          %s558 = scalar_select %p557, %s556, 3
          %s559 = scalar_lea.vmem %s5, %s558
          %s560 = smul.u32 2, %s21
        $region108: #{stage3_forward.7} parent=19 // pred_fallthru
          _
        // Predicated region
        $region109: #{stage3_forward.7} parent=19 // pred_check
          %p561 = pneg %p203
        $region110: #{stage3_forward.7} parent=19 // pred_check_branch
          %563 = sbr.rel (%p561) target = $region112
        $region111: #{stage3_forward.7} parent=19 // pred_region
          %s564 = smul.u32 2, %s21
          %p565 = scmp.lt.s32.totalorder %s564, 3
          %s566 = scalar_select %p565, %s564, 3
          %s567 = scalar_lea.vmem %s6, %s566
          %s568 = smul.u32 2, %s21
        $region112: #{stage3_forward.7} parent=19 // pred_fallthru
          _
      $region20: #{stage3_forward.7} parent=5 // pred_fallthru
        _
      %p569 = scmp.le.s32.totalorder 1, %s13
      %p570 = scmp.lt.s32.totalorder %s13, 3
      %p571 = pnand %p569, %p570
      %p572 = pneg %p571
      // Predicated region
      $region113: #{stage3_forward.7} parent=5 // pred_check
        _
      $region114: #{stage3_forward.7} parent=5 // pred_check_branch
        %574 = sbr.rel (%p571) target = $region116
      $region115: #{stage3_forward.7} parent=5 // pred_region
        %s575 = ssub.s32 %s13, 1
        %s576 = sand.u32 %s64, 1
        %s577 = sand.u32 %s64, 1
        %s578 = smul.addr %s577, 256
        %s579 = scalar_lea.vmem [#allocation2], %s578
        // Predicated region
        $region117: #{stage3_forward.7} parent=115 // pred_check
          %p580 = pneg %p77
        $region118: #{stage3_forward.7} parent=115 // pred_check_branch
          %582 = sbr.rel (%p580) target = $region120
        $region119: #{stage3_forward.7} parent=115 // pred_region
          _
        $region120: #{stage3_forward.7} parent=115 // pred_fallthru
          _
        %s583 = sand.u32 %s144, 1
        %s584 = sand.u32 %s144, 1
        %s585 = smul.addr %s584, 128
        %s586 = scalar_lea.vmem [#allocation3], %s585
        // Predicated region
        $region121: #{stage3_forward.7} parent=115 // pred_check
          %p587 = pneg %p157
        $region122: #{stage3_forward.7} parent=115 // pred_check_branch
          %589 = sbr.rel (%p587) target = $region124
        $region123: #{stage3_forward.7} parent=115 // pred_region
          _
        $region124: #{stage3_forward.7} parent=115 // pred_fallthru
          _
        %s590 = smul.u32 16, %s22
        %p591 = scmp.lt.s32.totalorder %s590, 15
        %s592 = scalar_select %p591, %s590, 15
        %s593 = smul.addr %s592, 2
        %s594 = smul.addr %s593, 4
        %s595 = scalar_lea.vmem %s0, %s594
        %p596 = pneg %p51
        %p597 = pneg %p48
        %s598 = sand.u32 %s64, 1
        %s599 = sand.u32 %s64, 1
        %s600 = smul.addr %s599, 256
        %s601 = scalar_lea.vmem [#allocation2], %s600
        %p602 = pneg %p77
        %p603 = pneg %p74
        %s604 = smul.u32 2, %s23
        %p605 = scmp.lt.s32.totalorder %s604, 3
        %s606 = scalar_select %p605, %s604, 3
        %s607 = scalar_lea.vmem %s2, %s606
        %p608 = pneg %p103
        %p609 = pneg %p100
        %s610 = smul.u32 2, %s23
        %p611 = scmp.lt.s32.totalorder %s610, 3
        %s612 = scalar_select %p611, %s610, 3
        %s613 = scalar_lea.vmem %s3, %s612
        %p614 = pneg %p129
        %p615 = pneg %p126
        %s616 = sand.u32 %s144, 1
        %s617 = sand.u32 %s144, 1
        %s618 = smul.addr %s617, 128
        %s619 = scalar_lea.vmem [#allocation3], %s618
        %p620 = pneg %p157
        %p621 = pneg %p154
        %s622 = smul.u32 2, %s23
        %p623 = scmp.lt.s32.totalorder %s622, 3
        %s624 = scalar_select %p623, %s622, 3
        %s625 = scalar_lea.vmem %s5, %s624
        %p626 = pneg %p183
        %p627 = pneg %p180
        %s628 = smul.u32 2, %s23
        %p629 = scmp.lt.s32.totalorder %s628, 3
        %s630 = scalar_select %p629, %s628, 3
        %s631 = scalar_lea.vmem %s6, %s630
        %p632 = pneg %p209
        %p633 = pneg %p206
        %p634 = pneg %p237
        %p635 = pneg %p234
        %s636 = sand.u32 %s224, 1
        %s637 = sand.u32 %s224, 1
        %s638 = smul.addr %s637, 128
        %s639 = scalar_lea.vmem [#allocation4], %s638
        %s640 = smul.u32 16, %s22
        %p641 = scmp.lt.s32.totalorder %s640, 15
        %s642 = scalar_select %p641, %s640, 15
        %s643 = smul.addr %s642, 2
        %s644 = smul.addr %s643, 4
        %s645 = scalar_lea.vmem %s0, %s644
        %s646 = smul.u32 16, %s22
        %s647 = smul.u32 2, %s23
        %s648 = smul.u32 2, %s23
        %p649 = scmp.lt.s32.totalorder %s648, 3
        %s650 = scalar_select %p649, %s648, 3
        %s651 = scalar_lea.vmem %s2, %s650
        %s652 = smul.u32 2, %s23
        %s653 = smul.u32 2, %s23
        %p654 = scmp.lt.s32.totalorder %s653, 3
        %s655 = scalar_select %p654, %s653, 3
        %s656 = scalar_lea.vmem %s3, %s655
        %s657 = smul.u32 2, %s23
        %s658 = smul.u32 16, %s22
        %s659 = smul.u32 2, %s23
        %s660 = smul.u32 2, %s23
        %p661 = scmp.lt.s32.totalorder %s660, 3
        %s662 = scalar_select %p661, %s660, 3
        %s663 = scalar_lea.vmem %s5, %s662
        %s664 = smul.u32 2, %s23
        %s665 = smul.u32 2, %s23
        %p666 = scmp.lt.s32.totalorder %s665, 3
        %s667 = scalar_select %p666, %s665, 3
        %s668 = scalar_lea.vmem %s6, %s667
        %s669 = smul.u32 2, %s23
        %s670 = smul.u32 16, %s22
        %s671 = smul.u32 2, %s23
        %v672 = vld [vmem:[%s645] sm:$0xff]
        %v673 = vld [vmem:[%s645 + $0x8] sm:$0xff]
        %v674 = vld [vmem:[%s645 + $0x10] sm:$0xff]
        %v675 = vld [vmem:[%s645 + $0x18] sm:$0xff]
        %v676 = vld [vmem:[%s645 + $0x20] sm:$0xff]
        %v677 = vld [vmem:[%s645 + $0x28] sm:$0xff]
        %v678 = vld [vmem:[%s645 + $0x30] sm:$0xff]
        %v679 = vld [vmem:[%s645 + $0x38] sm:$0xff]
        %v680 = vld [vmem:[%s645 + $0x40] sm:$0xff]
        %v681 = vld [vmem:[%s645 + $0x48] sm:$0xff]
        %v682 = vld [vmem:[%s645 + $0x50] sm:$0xff]
        %v683 = vld [vmem:[%s645 + $0x58] sm:$0xff]
        %v684 = vld [vmem:[%s645 + $0x60] sm:$0xff]
        %v685 = vld [vmem:[%s645 + $0x68] sm:$0xff]
        %v686 = vld [vmem:[%s645 + $0x70] sm:$0xff]
        %v687 = vld [vmem:[%s645 + $0x78] sm:$0xff]
        %v688 = vld [vmem:[%s579] sm:$0xff]
        %v689 = vld [vmem:[%s579 + $0x8] sm:$0xff]
        %v690 = vld [vmem:[%s579 + $0x10] sm:$0xff]
        %v691 = vld [vmem:[%s579 + $0x18] sm:$0xff]
        %v692 = vld [vmem:[%s579 + $0x20] sm:$0xff]
        %v693 = vld [vmem:[%s579 + $0x28] sm:$0xff]
        %v694 = vld [vmem:[%s579 + $0x30] sm:$0xff]
        %v695 = vld [vmem:[%s579 + $0x38] sm:$0xff]
        %v696 = vld [vmem:[%s579 + $0x40] sm:$0xff]
        %v697 = vld [vmem:[%s579 + $0x48] sm:$0xff]
        %v698 = vld [vmem:[%s579 + $0x50] sm:$0xff]
        %v699 = vld [vmem:[%s579 + $0x58] sm:$0xff]
        %v700 = vld [vmem:[%s579 + $0x60] sm:$0xff]
        %v701 = vld [vmem:[%s579 + $0x68] sm:$0xff]
        %v702 = vld [vmem:[%s579 + $0x70] sm:$0xff]
        %v703 = vld [vmem:[%s579 + $0x78] sm:$0xff]
        %v704 = vld [vmem:[%s579 + $0x80] sm:$0xff]
        %v705 = vld [vmem:[%s579 + $0x88] sm:$0xff]
        %v706 = vld [vmem:[%s579 + $0x90] sm:$0xff]
        %v707 = vld [vmem:[%s579 + $0x98] sm:$0xff]
        %v708 = vld [vmem:[%s579 + $0xa0] sm:$0xff]
        %v709 = vld [vmem:[%s579 + $0xa8] sm:$0xff]
        %v710 = vld [vmem:[%s579 + $0xb0] sm:$0xff]
        %v711 = vld [vmem:[%s579 + $0xb8] sm:$0xff]
        %v712 = vld [vmem:[%s579 + $0xc0] sm:$0xff]
        %v713 = vld [vmem:[%s579 + $0xc8] sm:$0xff]
        %v714 = vld [vmem:[%s579 + $0xd0] sm:$0xff]
        %v715 = vld [vmem:[%s579 + $0xd8] sm:$0xff]
        %v716 = vld [vmem:[%s579 + $0xe0] sm:$0xff]
        %v717 = vld [vmem:[%s579 + $0xe8] sm:$0xff]
        %v718 = vld [vmem:[%s579 + $0xf0] sm:$0xff]
        %v719 = vld [vmem:[%s579 + $0xf8] sm:$0xff]
        %v736 = vunpack.c.l.b16 %v672
        %v737 = vunpack.c.h.b16 %v672
        %v738 = vunpack.c.l.b16 %v673
        %v739 = vunpack.c.h.b16 %v673
        %v740 = vunpack.c.l.b16 %v674
        %v741 = vunpack.c.h.b16 %v674
        %v742 = vunpack.c.l.b16 %v675
        %v743 = vunpack.c.h.b16 %v675
        %v744 = vunpack.c.l.b16 %v676
        %v745 = vunpack.c.h.b16 %v676
        %v746 = vunpack.c.l.b16 %v677
        %v747 = vunpack.c.h.b16 %v677
        %v748 = vunpack.c.l.b16 %v678
        %v749 = vunpack.c.h.b16 %v678
        %v750 = vunpack.c.l.b16 %v679
        %v751 = vunpack.c.h.b16 %v679
        %v752 = vunpack.c.l.b16 %v680
        %v753 = vunpack.c.h.b16 %v680
        %v754 = vunpack.c.l.b16 %v681
        %v755 = vunpack.c.h.b16 %v681
        %v756 = vunpack.c.l.b16 %v682
        %v757 = vunpack.c.h.b16 %v682
        %v758 = vunpack.c.l.b16 %v683
        %v759 = vunpack.c.h.b16 %v683
        %v760 = vunpack.c.l.b16 %v684
        %v761 = vunpack.c.h.b16 %v684
        %v762 = vunpack.c.l.b16 %v685
        %v763 = vunpack.c.h.b16 %v685
        %v764 = vunpack.c.l.b16 %v686
        %v765 = vunpack.c.h.b16 %v686
        %v766 = vunpack.c.l.b16 %v687
        %v767 = vunpack.c.h.b16 %v687
        %v768 = vpack.c.b16 %v738, %v736
        %v769 = vpack.c.b16 %v739, %v737
        %v770 = vpack.c.b16 %v742, %v740
        %v771 = vpack.c.b16 %v743, %v741
        %v772 = vpack.c.b16 %v746, %v744
        %v773 = vpack.c.b16 %v747, %v745
        %v774 = vpack.c.b16 %v750, %v748
        %v775 = vpack.c.b16 %v751, %v749
        %v776 = vpack.c.b16 %v754, %v752
        %v777 = vpack.c.b16 %v755, %v753
        %v778 = vpack.c.b16 %v758, %v756
        %v779 = vpack.c.b16 %v759, %v757
        %v780 = vpack.c.b16 %v762, %v760
        %v781 = vpack.c.b16 %v763, %v761
        %v782 = vpack.c.b16 %v766, %v764
        %v783 = vpack.c.b16 %v767, %v765
        %v832 = vunpack.c.l.b16 %v688
        %v833 = vunpack.c.h.b16 %v688
        %v834 = vunpack.c.l.b16 %v689
        %v835 = vunpack.c.h.b16 %v689
        %v836 = vunpack.c.l.b16 %v690
        %v837 = vunpack.c.h.b16 %v690
        %v838 = vunpack.c.l.b16 %v691
        %v839 = vunpack.c.h.b16 %v691
        %v840 = vunpack.c.l.b16 %v692
        %v841 = vunpack.c.h.b16 %v692
        %v842 = vunpack.c.l.b16 %v693
        %v843 = vunpack.c.h.b16 %v693
        %v844 = vunpack.c.l.b16 %v694
        %v845 = vunpack.c.h.b16 %v694
        %v846 = vunpack.c.l.b16 %v695
        %v847 = vunpack.c.h.b16 %v695
        %v848 = vunpack.c.l.b16 %v696
        %v849 = vunpack.c.h.b16 %v696
        %v850 = vunpack.c.l.b16 %v697
        %v851 = vunpack.c.h.b16 %v697
        %v852 = vunpack.c.l.b16 %v698
        %v853 = vunpack.c.h.b16 %v698
        %v854 = vunpack.c.l.b16 %v699
        %v855 = vunpack.c.h.b16 %v699
        %v856 = vunpack.c.l.b16 %v700
        %v857 = vunpack.c.h.b16 %v700
        %v858 = vunpack.c.l.b16 %v701
        %v859 = vunpack.c.h.b16 %v701
        %v860 = vunpack.c.l.b16 %v702
        %v861 = vunpack.c.h.b16 %v702
        %v862 = vunpack.c.l.b16 %v703
        %v863 = vunpack.c.h.b16 %v703
        %v864 = vunpack.c.l.b16 %v704
        %v865 = vunpack.c.h.b16 %v704
        %v866 = vunpack.c.l.b16 %v705
        %v867 = vunpack.c.h.b16 %v705
        %v868 = vunpack.c.l.b16 %v706
        %v869 = vunpack.c.h.b16 %v706
        %v870 = vunpack.c.l.b16 %v707
        %v871 = vunpack.c.h.b16 %v707
        %v872 = vunpack.c.l.b16 %v708
        %v873 = vunpack.c.h.b16 %v708
        %v874 = vunpack.c.l.b16 %v709
        %v875 = vunpack.c.h.b16 %v709
        %v876 = vunpack.c.l.b16 %v710
        %v877 = vunpack.c.h.b16 %v710
        %v878 = vunpack.c.l.b16 %v711
        %v879 = vunpack.c.h.b16 %v711
        %v880 = vunpack.c.l.b16 %v712
        %v881 = vunpack.c.h.b16 %v712
        %v882 = vunpack.c.l.b16 %v713
        %v883 = vunpack.c.h.b16 %v713
        %v884 = vunpack.c.l.b16 %v714
        %v885 = vunpack.c.h.b16 %v714
        %v886 = vunpack.c.l.b16 %v715
        %v887 = vunpack.c.h.b16 %v715
        %v888 = vunpack.c.l.b16 %v716
        %v889 = vunpack.c.h.b16 %v716
        %v890 = vunpack.c.l.b16 %v717
        %v891 = vunpack.c.h.b16 %v717
        %v892 = vunpack.c.l.b16 %v718
        %v893 = vunpack.c.h.b16 %v718
        %v894 = vunpack.c.l.b16 %v719
        %v895 = vunpack.c.h.b16 %v719
        %v896 = vpack.c.b16 %v834, %v832
        %v897 = vpack.c.b16 %v835, %v833
        %v898 = vpack.c.b16 %v838, %v836
        %v899 = vpack.c.b16 %v839, %v837
        %v900 = vpack.c.b16 %v842, %v840
        %v901 = vpack.c.b16 %v843, %v841
        %v902 = vpack.c.b16 %v846, %v844
        %v903 = vpack.c.b16 %v847, %v845
        %v904 = vpack.c.b16 %v850, %v848
        %v905 = vpack.c.b16 %v851, %v849
        %v906 = vpack.c.b16 %v854, %v852
        %v907 = vpack.c.b16 %v855, %v853
        %v908 = vpack.c.b16 %v858, %v856
        %v909 = vpack.c.b16 %v859, %v857
        %v910 = vpack.c.b16 %v862, %v860
        %v911 = vpack.c.b16 %v863, %v861
        %v912 = vpack.c.b16 %v866, %v864
        %v913 = vpack.c.b16 %v867, %v865
        %v914 = vpack.c.b16 %v870, %v868
        %v915 = vpack.c.b16 %v871, %v869
        %v916 = vpack.c.b16 %v874, %v872
        %v917 = vpack.c.b16 %v875, %v873
        %v918 = vpack.c.b16 %v878, %v876
        %v919 = vpack.c.b16 %v879, %v877
        %v920 = vpack.c.b16 %v882, %v880
        %v921 = vpack.c.b16 %v883, %v881
        %v922 = vpack.c.b16 %v886, %v884
        %v923 = vpack.c.b16 %v887, %v885
        %v924 = vpack.c.b16 %v890, %v888
        %v925 = vpack.c.b16 %v891, %v889
        %v926 = vpack.c.b16 %v894, %v892
        %v927 = vpack.c.b16 %v895, %v893
        %960 = vmatprep.subr.bf16.mxu0 %v897
        %961 = vmatpush1.bf16.msra.mxu0 %v896
        %962 = vmatprep.subr.bf16.mxu0 %v899
        %963 = vmatpush1.bf16.msra.mxu0 %v898
        %964 = vmatprep.subr.bf16.mxu0 %v901
        %965 = vmatpush1.bf16.msra.mxu0 %v900
        %966 = vmatprep.subr.bf16.mxu0 %v903
        %967 = vmatpush1.bf16.msra.mxu0 %v902
        %968 = vmatprep.subr.bf16.mxu0 %v905
        %969 = vmatpush1.bf16.msra.mxu0 %v904
        %970 = vmatprep.subr.bf16.mxu0 %v907
        %971 = vmatpush1.bf16.msra.mxu0 %v906
        %972 = vmatprep.subr.bf16.mxu0 %v909
        %973 = vmatpush1.bf16.msra.mxu0 %v908
        %974 = vmatprep.subr.bf16.mxu0 %v911
        %975 = vmatpush1.bf16.msra.mxu0 %v910
        %976 = vmatprep.subr.bf16.mxu0 %v913
        %977 = vmatpush1.bf16.msra.mxu0 %v912
        %978 = vmatprep.subr.bf16.mxu0 %v915
        %979 = vmatpush1.bf16.msra.mxu0 %v914
        %980 = vmatprep.subr.bf16.mxu0 %v917
        %981 = vmatpush1.bf16.msra.mxu0 %v916
        %982 = vmatprep.subr.bf16.mxu0 %v919
        %983 = vmatpush1.bf16.msra.mxu0 %v918
        %984 = vmatprep.subr.bf16.mxu0 %v921
        %985 = vmatpush1.bf16.msra.mxu0 %v920
        %986 = vmatprep.subr.bf16.mxu0 %v923
        %987 = vmatpush1.bf16.msra.mxu0 %v922
        %988 = vmatprep.subr.bf16.mxu0 %v925
        %989 = vmatpush1.bf16.msra.mxu0 %v924
        %990 = vmatprep.subr.bf16.mxu0 %v927
        %991 = vmatpush1.bf16.msra.mxu0 %v926
        %992 = vmatprep.mubr.bf16.mxu0 %v769
        %993 = vmatmul.mubr.bf16.gmra.mrb[0].mxu0 %v768
        %v994 = vpop.f32.mrb[0].mxu0
        %v995 = vadd.f32 0.0, %v994
        %v996 = vpop.f32.mrb[0].mxu0
        %v997 = vadd.f32 0.0, %v996
        %v998 = vpop.f32.mrb[0].mxu0
        %v999 = vadd.f32 0.0, %v998
        %v1000 = vpop.f32.mrb[0].mxu0
        %v1001 = vadd.f32 0.0, %v1000
        %1002 = vmatprep.mubr.bf16.mxu0 %v771
        %1003 = vmatmul.mubr.bf16.gmra.mrb[0].mxu0 %v770
        %v1004 = vpop.f32.mrb[0].mxu0
        %v1005 = vadd.f32 0.0, %v1004
        %v1006 = vpop.f32.mrb[0].mxu0
        %v1007 = vadd.f32 0.0, %v1006
        %v1008 = vpop.f32.mrb[0].mxu0
        %v1009 = vadd.f32 0.0, %v1008
        %v1010 = vpop.f32.mrb[0].mxu0
        %v1011 = vadd.f32 0.0, %v1010
        %1012 = vmatprep.mubr.bf16.mxu0 %v773
        %1013 = vmatmul.mubr.bf16.gmra.mrb[0].mxu0 %v772
        %v1014 = vpop.f32.mrb[0].mxu0
        %v1015 = vadd.f32 0.0, %v1014
        %v1016 = vpop.f32.mrb[0].mxu0
        %v1017 = vadd.f32 0.0, %v1016
        %v1018 = vpop.f32.mrb[0].mxu0
        %v1019 = vadd.f32 0.0, %v1018
        %v1020 = vpop.f32.mrb[0].mxu0
        %v1021 = vadd.f32 0.0, %v1020
        %1022 = vmatprep.mubr.bf16.mxu0 %v775
        %1023 = vmatmul.mubr.bf16.gmra.mrb[0].mxu0 %v774
        %v1024 = vpop.f32.mrb[0].mxu0
        %v1025 = vadd.f32 0.0, %v1024
        %v1026 = vpop.f32.mrb[0].mxu0
        %v1027 = vadd.f32 0.0, %v1026
        %v1028 = vpop.f32.mrb[0].mxu0
        %v1029 = vadd.f32 0.0, %v1028
        %v1030 = vpop.f32.mrb[0].mxu0
        %v1031 = vadd.f32 0.0, %v1030
        %1032 = vmatprep.mubr.bf16.mxu0 %v777
        %1033 = vmatmul.mubr.bf16.gmra.mrb[0].mxu0 %v776
        %v1034 = vpop.f32.mrb[0].mxu0
        %v1035 = vadd.f32 0.0, %v1034
        %v1036 = vpop.f32.mrb[0].mxu0
        %v1037 = vadd.f32 0.0, %v1036
        %v1038 = vpop.f32.mrb[0].mxu0
        %v1039 = vadd.f32 0.0, %v1038
        %v1040 = vpop.f32.mrb[0].mxu0
        %v1041 = vadd.f32 0.0, %v1040
        %1042 = vmatprep.mubr.bf16.mxu0 %v779
        %1043 = vmatmul.mubr.bf16.gmra.mrb[0].mxu0 %v778
        %v1044 = vpop.f32.mrb[0].mxu0
        %v1045 = vadd.f32 0.0, %v1044
        %v1046 = vpop.f32.mrb[0].mxu0
        %v1047 = vadd.f32 0.0, %v1046
        %v1048 = vpop.f32.mrb[0].mxu0
        %v1049 = vadd.f32 0.0, %v1048
        %v1050 = vpop.f32.mrb[0].mxu0
        %v1051 = vadd.f32 0.0, %v1050
        %1052 = vmatprep.mubr.bf16.mxu0 %v781
        %1053 = vmatmul.mubr.bf16.gmra.mrb[0].mxu0 %v780
        %v1054 = vpop.f32.mrb[0].mxu0
        %v1055 = vadd.f32 0.0, %v1054
        %v1056 = vpop.f32.mrb[0].mxu0
        %v1057 = vadd.f32 0.0, %v1056
        %v1058 = vpop.f32.mrb[0].mxu0
        %v1059 = vadd.f32 0.0, %v1058
        %v1060 = vpop.f32.mrb[0].mxu0
        %v1061 = vadd.f32 0.0, %v1060
        %1062 = vmatprep.mubr.bf16.mxu0 %v783
        %1063 = vmatmul.mubr.bf16.gmra.mrb[0].mxu0 %v782
        %v1064 = vpop.f32.mrb[0].mxu0
        %v1065 = vadd.f32 0.0, %v1064
        %v1066 = vpop.f32.mrb[0].mxu0
        %v1067 = vadd.f32 0.0, %v1066
        %v1068 = vpop.f32.mrb[0].mxu0
        %v1069 = vadd.f32 0.0, %v1068
        %v1070 = vpop.f32.mrb[0].mxu0
        %v1071 = vadd.f32 0.0, %v1070
        %1072 = vdwg.mxu0
        %v1073 = vld [vmem:[%s651] sm:$0x3]
        %v1075 = vlaneseq
        %v1076 = vshrl.u32 %v1075, 7
        %v1077 = vsub.s32 0, %v1076
        %v1078 = vrot.slane %v1073, %v1077
        %v1079 = vlaneseq
        %v1080 = vshrl.u32 %v1079, 7
        %v1081 = vsub.s32 1, %v1080
        %v1082 = vrot.slane %v1073, %v1081
        %v1085 = vmul.f32 %v995, %v1078
        %v1086 = vmul.f32 %v997, %v1082
        %v1087 = vmul.f32 %v999, %v1078
        %v1088 = vmul.f32 %v1001, %v1082
        %v1089 = vmul.f32 %v1005, %v1078
        %v1090 = vmul.f32 %v1007, %v1082
        %v1091 = vmul.f32 %v1009, %v1078
        %v1092 = vmul.f32 %v1011, %v1082
        %v1093 = vmul.f32 %v1015, %v1078
        %v1094 = vmul.f32 %v1017, %v1082
        %v1095 = vmul.f32 %v1019, %v1078
        %v1096 = vmul.f32 %v1021, %v1082
        %v1097 = vmul.f32 %v1025, %v1078
        %v1098 = vmul.f32 %v1027, %v1082
        %v1099 = vmul.f32 %v1029, %v1078
        %v1100 = vmul.f32 %v1031, %v1082
        %v1101 = vmul.f32 %v1035, %v1078
        %v1102 = vmul.f32 %v1037, %v1082
        %v1103 = vmul.f32 %v1039, %v1078
        %v1104 = vmul.f32 %v1041, %v1082
        %v1105 = vmul.f32 %v1045, %v1078
        %v1106 = vmul.f32 %v1047, %v1082
        %v1107 = vmul.f32 %v1049, %v1078
        %v1108 = vmul.f32 %v1051, %v1082
        %v1109 = vmul.f32 %v1055, %v1078
        %v1110 = vmul.f32 %v1057, %v1082
        %v1111 = vmul.f32 %v1059, %v1078
        %v1112 = vmul.f32 %v1061, %v1082
        %v1113 = vmul.f32 %v1065, %v1078
        %v1114 = vmul.f32 %v1067, %v1082
        %v1115 = vmul.f32 %v1069, %v1078
        %v1116 = vmul.f32 %v1071, %v1082
        %v1117 = vld [vmem:[%s656] sm:$0x3]
        %v1119 = vlaneseq
        %v1120 = vshrl.u32 %v1119, 7
        %v1121 = vsub.s32 0, %v1120
        %v1122 = vrot.slane %v1117, %v1121
        %v1123 = vlaneseq
        %v1124 = vshrl.u32 %v1123, 7
        %v1125 = vsub.s32 1, %v1124
        %v1126 = vrot.slane %v1117, %v1125
        %v1129 = vadd.f32 %v1085, %v1122
        %v1130 = vadd.f32 %v1086, %v1126
        %v1131 = vadd.f32 %v1087, %v1122
        %v1132 = vadd.f32 %v1088, %v1126
        %v1133 = vadd.f32 %v1089, %v1122
        %v1134 = vadd.f32 %v1090, %v1126
        %v1135 = vadd.f32 %v1091, %v1122
        %v1136 = vadd.f32 %v1092, %v1126
        %v1137 = vadd.f32 %v1093, %v1122
        %v1138 = vadd.f32 %v1094, %v1126
        %v1139 = vadd.f32 %v1095, %v1122
        %v1140 = vadd.f32 %v1096, %v1126
        %v1141 = vadd.f32 %v1097, %v1122
        %v1142 = vadd.f32 %v1098, %v1126
        %v1143 = vadd.f32 %v1099, %v1122
        %v1144 = vadd.f32 %v1100, %v1126
        %v1145 = vadd.f32 %v1101, %v1122
        %v1146 = vadd.f32 %v1102, %v1126
        %v1147 = vadd.f32 %v1103, %v1122
        %v1148 = vadd.f32 %v1104, %v1126
        %v1149 = vadd.f32 %v1105, %v1122
        %v1150 = vadd.f32 %v1106, %v1126
        %v1151 = vadd.f32 %v1107, %v1122
        %v1152 = vadd.f32 %v1108, %v1126
        %v1153 = vadd.f32 %v1109, %v1122
        %v1154 = vadd.f32 %v1110, %v1126
        %v1155 = vadd.f32 %v1111, %v1122
        %v1156 = vadd.f32 %v1112, %v1126
        %v1157 = vadd.f32 %v1113, %v1122
        %v1158 = vadd.f32 %v1114, %v1126
        %v1159 = vadd.f32 %v1115, %v1122
        %v1160 = vadd.f32 %v1116, %v1126
        %v1161 = vld [vmem:[%s586] sm:$0xff]
        %v1162 = vld [vmem:[%s586 + $0x8] sm:$0xff]
        %v1163 = vld [vmem:[%s586 + $0x10] sm:$0xff]
        %v1164 = vld [vmem:[%s586 + $0x18] sm:$0xff]
        %v1165 = vld [vmem:[%s586 + $0x20] sm:$0xff]
        %v1166 = vld [vmem:[%s586 + $0x28] sm:$0xff]
        %v1167 = vld [vmem:[%s586 + $0x30] sm:$0xff]
        %v1168 = vld [vmem:[%s586 + $0x38] sm:$0xff]
        %v1169 = vld [vmem:[%s586 + $0x40] sm:$0xff]
        %v1170 = vld [vmem:[%s586 + $0x48] sm:$0xff]
        %v1171 = vld [vmem:[%s586 + $0x50] sm:$0xff]
        %v1172 = vld [vmem:[%s586 + $0x58] sm:$0xff]
        %v1173 = vld [vmem:[%s586 + $0x60] sm:$0xff]
        %v1174 = vld [vmem:[%s586 + $0x68] sm:$0xff]
        %v1175 = vld [vmem:[%s586 + $0x70] sm:$0xff]
        %v1176 = vld [vmem:[%s586 + $0x78] sm:$0xff]
        %v1177 = vunpack.c.l.bf16 %v1161
        %v1178 = vunpack.c.h.bf16 %v1161
        %v1179 = vunpack.c.l.bf16 %v1162
        %v1180 = vunpack.c.h.bf16 %v1162
        %v1181 = vunpack.c.l.bf16 %v1163
        %v1182 = vunpack.c.h.bf16 %v1163
        %v1183 = vunpack.c.l.bf16 %v1164
        %v1184 = vunpack.c.h.bf16 %v1164
        %v1185 = vunpack.c.l.bf16 %v1165
        %v1186 = vunpack.c.h.bf16 %v1165
        %v1187 = vunpack.c.l.bf16 %v1166
        %v1188 = vunpack.c.h.bf16 %v1166
        %v1189 = vunpack.c.l.bf16 %v1167
        %v1190 = vunpack.c.h.bf16 %v1167
        %v1191 = vunpack.c.l.bf16 %v1168
        %v1192 = vunpack.c.h.bf16 %v1168
        %v1193 = vunpack.c.l.bf16 %v1169
        %v1194 = vunpack.c.h.bf16 %v1169
        %v1195 = vunpack.c.l.bf16 %v1170
        %v1196 = vunpack.c.h.bf16 %v1170
        %v1197 = vunpack.c.l.bf16 %v1171
        %v1198 = vunpack.c.h.bf16 %v1171
        %v1199 = vunpack.c.l.bf16 %v1172
        %v1200 = vunpack.c.h.bf16 %v1172
        %v1201 = vunpack.c.l.bf16 %v1173
        %v1202 = vunpack.c.h.bf16 %v1173
        %v1203 = vunpack.c.l.bf16 %v1174
        %v1204 = vunpack.c.h.bf16 %v1174
        %v1205 = vunpack.c.l.bf16 %v1175
        %v1206 = vunpack.c.h.bf16 %v1175
        %v1207 = vunpack.c.l.bf16 %v1176
        %v1208 = vunpack.c.h.bf16 %v1176
        %v1209 = vld [vmem:[%s663] sm:$0x3]
        %v1211 = vlaneseq
        %v1212 = vshrl.u32 %v1211, 7
        %v1213 = vsub.s32 0, %v1212
        %v1214 = vrot.slane %v1209, %v1213
        %v1215 = vlaneseq
        %v1216 = vshrl.u32 %v1215, 7
        %v1217 = vsub.s32 1, %v1216
        %v1218 = vrot.slane %v1209, %v1217
        %v1221 = vmul.f32 %v1177, %v1214
        %v1222 = vmul.f32 %v1178, %v1218
        %v1223 = vmul.f32 %v1179, %v1214
        %v1224 = vmul.f32 %v1180, %v1218
        %v1225 = vmul.f32 %v1181, %v1214
        %v1226 = vmul.f32 %v1182, %v1218
        %v1227 = vmul.f32 %v1183, %v1214
        %v1228 = vmul.f32 %v1184, %v1218
        %v1229 = vmul.f32 %v1185, %v1214
        %v1230 = vmul.f32 %v1186, %v1218
        %v1231 = vmul.f32 %v1187, %v1214
        %v1232 = vmul.f32 %v1188, %v1218
        %v1233 = vmul.f32 %v1189, %v1214
        %v1234 = vmul.f32 %v1190, %v1218
        %v1235 = vmul.f32 %v1191, %v1214
        %v1236 = vmul.f32 %v1192, %v1218
        %v1237 = vmul.f32 %v1193, %v1214
        %v1238 = vmul.f32 %v1194, %v1218
        %v1239 = vmul.f32 %v1195, %v1214
        %v1240 = vmul.f32 %v1196, %v1218
        %v1241 = vmul.f32 %v1197, %v1214
        %v1242 = vmul.f32 %v1198, %v1218
        %v1243 = vmul.f32 %v1199, %v1214
        %v1244 = vmul.f32 %v1200, %v1218
        %v1245 = vmul.f32 %v1201, %v1214
        %v1246 = vmul.f32 %v1202, %v1218
        %v1247 = vmul.f32 %v1203, %v1214
        %v1248 = vmul.f32 %v1204, %v1218
        %v1249 = vmul.f32 %v1205, %v1214
        %v1250 = vmul.f32 %v1206, %v1218
        %v1251 = vmul.f32 %v1207, %v1214
        %v1252 = vmul.f32 %v1208, %v1218
        %v1253 = vadd.f32 %v1129, %v1221
        %v1254 = vadd.f32 %v1130, %v1222
        %v1255 = vadd.f32 %v1131, %v1223
        %v1256 = vadd.f32 %v1132, %v1224
        %v1257 = vadd.f32 %v1133, %v1225
        %v1258 = vadd.f32 %v1134, %v1226
        %v1259 = vadd.f32 %v1135, %v1227
        %v1260 = vadd.f32 %v1136, %v1228
        %v1261 = vadd.f32 %v1137, %v1229
        %v1262 = vadd.f32 %v1138, %v1230
        %v1263 = vadd.f32 %v1139, %v1231
        %v1264 = vadd.f32 %v1140, %v1232
        %v1265 = vadd.f32 %v1141, %v1233
        %v1266 = vadd.f32 %v1142, %v1234
        %v1267 = vadd.f32 %v1143, %v1235
        %v1268 = vadd.f32 %v1144, %v1236
        %v1269 = vadd.f32 %v1145, %v1237
        %v1270 = vadd.f32 %v1146, %v1238
        %v1271 = vadd.f32 %v1147, %v1239
        %v1272 = vadd.f32 %v1148, %v1240
        %v1273 = vadd.f32 %v1149, %v1241
        %v1274 = vadd.f32 %v1150, %v1242
        %v1275 = vadd.f32 %v1151, %v1243
        %v1276 = vadd.f32 %v1152, %v1244
        %v1277 = vadd.f32 %v1153, %v1245
        %v1278 = vadd.f32 %v1154, %v1246
        %v1279 = vadd.f32 %v1155, %v1247
        %v1280 = vadd.f32 %v1156, %v1248
        %v1281 = vadd.f32 %v1157, %v1249
        %v1282 = vadd.f32 %v1158, %v1250
        %v1283 = vadd.f32 %v1159, %v1251
        %v1284 = vadd.f32 %v1160, %v1252
        %v1285 = vld [vmem:[%s668] sm:$0x3]
        %v1287 = vlaneseq
        %v1288 = vshrl.u32 %v1287, 7
        %v1289 = vsub.s32 0, %v1288
        %v1290 = vrot.slane %v1285, %v1289
        %v1291 = vlaneseq
        %v1292 = vshrl.u32 %v1291, 7
        %v1293 = vsub.s32 1, %v1292
        %v1294 = vrot.slane %v1285, %v1293
        %v1297 = vadd.f32 %v1253, %v1290
        %v1298 = vadd.f32 %v1254, %v1294
        %v1299 = vadd.f32 %v1255, %v1290
        %v1300 = vadd.f32 %v1256, %v1294
        %v1301 = vadd.f32 %v1257, %v1290
        %v1302 = vadd.f32 %v1258, %v1294
        %v1303 = vadd.f32 %v1259, %v1290
        %v1304 = vadd.f32 %v1260, %v1294
        %v1305 = vadd.f32 %v1261, %v1290
        %v1306 = vadd.f32 %v1262, %v1294
        %v1307 = vadd.f32 %v1263, %v1290
        %v1308 = vadd.f32 %v1264, %v1294
        %v1309 = vadd.f32 %v1265, %v1290
        %v1310 = vadd.f32 %v1266, %v1294
        %v1311 = vadd.f32 %v1267, %v1290
        %v1312 = vadd.f32 %v1268, %v1294
        %v1313 = vadd.f32 %v1269, %v1290
        %v1314 = vadd.f32 %v1270, %v1294
        %v1315 = vadd.f32 %v1271, %v1290
        %v1316 = vadd.f32 %v1272, %v1294
        %v1317 = vadd.f32 %v1273, %v1290
        %v1318 = vadd.f32 %v1274, %v1294
        %v1319 = vadd.f32 %v1275, %v1290
        %v1320 = vadd.f32 %v1276, %v1294
        %v1321 = vadd.f32 %v1277, %v1290
        %v1322 = vadd.f32 %v1278, %v1294
        %v1323 = vadd.f32 %v1279, %v1290
        %v1324 = vadd.f32 %v1280, %v1294
        %v1325 = vadd.f32 %v1281, %v1290
        %v1326 = vadd.f32 %v1282, %v1294
        %v1327 = vadd.f32 %v1283, %v1290
        %v1328 = vadd.f32 %v1284, %v1294
        %v1329 = vmax.f32 %v1297, 0.0
        %v1330 = vmax.f32 %v1298, 0.0
        %v1331 = vmax.f32 %v1299, 0.0
        %v1332 = vmax.f32 %v1300, 0.0
        %v1333 = vmax.f32 %v1301, 0.0
        %v1334 = vmax.f32 %v1302, 0.0
        %v1335 = vmax.f32 %v1303, 0.0
        %v1336 = vmax.f32 %v1304, 0.0
        %v1337 = vmax.f32 %v1305, 0.0
        %v1338 = vmax.f32 %v1306, 0.0
        %v1339 = vmax.f32 %v1307, 0.0
        %v1340 = vmax.f32 %v1308, 0.0
        %v1341 = vmax.f32 %v1309, 0.0
        %v1342 = vmax.f32 %v1310, 0.0
        %v1343 = vmax.f32 %v1311, 0.0
        %v1344 = vmax.f32 %v1312, 0.0
        %v1345 = vmax.f32 %v1313, 0.0
        %v1346 = vmax.f32 %v1314, 0.0
        %v1347 = vmax.f32 %v1315, 0.0
        %v1348 = vmax.f32 %v1316, 0.0
        %v1349 = vmax.f32 %v1317, 0.0
        %v1350 = vmax.f32 %v1318, 0.0
        %v1351 = vmax.f32 %v1319, 0.0
        %v1352 = vmax.f32 %v1320, 0.0
        %v1353 = vmax.f32 %v1321, 0.0
        %v1354 = vmax.f32 %v1322, 0.0
        %v1355 = vmax.f32 %v1323, 0.0
        %v1356 = vmax.f32 %v1324, 0.0
        %v1357 = vmax.f32 %v1325, 0.0
        %v1358 = vmax.f32 %v1326, 0.0
        %v1359 = vmax.f32 %v1327, 0.0
        %v1360 = vmax.f32 %v1328, 0.0
        %v1361 = vpack.c.bf16 %v1331, %v1329
        %v1362 = vpack.c.bf16 %v1332, %v1330
        %v1363 = vpack.c.bf16 %v1335, %v1333
        %v1364 = vpack.c.bf16 %v1336, %v1334
        %v1365 = vpack.c.bf16 %v1339, %v1337
        %v1366 = vpack.c.bf16 %v1340, %v1338
        %v1367 = vpack.c.bf16 %v1343, %v1341
        %v1368 = vpack.c.bf16 %v1344, %v1342
        %v1369 = vpack.c.bf16 %v1347, %v1345
        %v1370 = vpack.c.bf16 %v1348, %v1346
        %v1371 = vpack.c.bf16 %v1351, %v1349
        %v1372 = vpack.c.bf16 %v1352, %v1350
        %v1373 = vpack.c.bf16 %v1355, %v1353
        %v1374 = vpack.c.bf16 %v1356, %v1354
        %v1375 = vpack.c.bf16 %v1359, %v1357
        %v1376 = vpack.c.bf16 %v1360, %v1358
        %v1393 = vunpack.c.l.b16 %v1361
        %v1394 = vunpack.c.l.b16 %v1362
        %v1395 = vunpack.c.h.b16 %v1361
        %v1396 = vunpack.c.h.b16 %v1362
        %v1397 = vunpack.c.l.b16 %v1363
        %v1398 = vunpack.c.l.b16 %v1364
        %v1399 = vunpack.c.h.b16 %v1363
        %v1400 = vunpack.c.h.b16 %v1364
        %v1401 = vunpack.c.l.b16 %v1365
        %v1402 = vunpack.c.l.b16 %v1366
        %v1403 = vunpack.c.h.b16 %v1365
        %v1404 = vunpack.c.h.b16 %v1366
        %v1405 = vunpack.c.l.b16 %v1367
        %v1406 = vunpack.c.l.b16 %v1368
        %v1407 = vunpack.c.h.b16 %v1367
        %v1408 = vunpack.c.h.b16 %v1368
        %v1409 = vunpack.c.l.b16 %v1369
        %v1410 = vunpack.c.l.b16 %v1370
        %v1411 = vunpack.c.h.b16 %v1369
        %v1412 = vunpack.c.h.b16 %v1370
        %v1413 = vunpack.c.l.b16 %v1371
        %v1414 = vunpack.c.l.b16 %v1372
        %v1415 = vunpack.c.h.b16 %v1371
        %v1416 = vunpack.c.h.b16 %v1372
        %v1417 = vunpack.c.l.b16 %v1373
        %v1418 = vunpack.c.l.b16 %v1374
        %v1419 = vunpack.c.h.b16 %v1373
        %v1420 = vunpack.c.h.b16 %v1374
        %v1421 = vunpack.c.l.b16 %v1375
        %v1422 = vunpack.c.l.b16 %v1376
        %v1423 = vunpack.c.h.b16 %v1375
        %v1424 = vunpack.c.h.b16 %v1376
        %v1425 = vpack.c.b16 %v1394, %v1393
        %v1426 = vpack.c.b16 %v1396, %v1395
        %v1427 = vpack.c.b16 %v1398, %v1397
        %v1428 = vpack.c.b16 %v1400, %v1399
        %v1429 = vpack.c.b16 %v1402, %v1401
        %v1430 = vpack.c.b16 %v1404, %v1403
        %v1431 = vpack.c.b16 %v1406, %v1405
        %v1432 = vpack.c.b16 %v1408, %v1407
        %v1433 = vpack.c.b16 %v1410, %v1409
        %v1434 = vpack.c.b16 %v1412, %v1411
        %v1435 = vpack.c.b16 %v1414, %v1413
        %v1436 = vpack.c.b16 %v1416, %v1415
        %v1437 = vpack.c.b16 %v1418, %v1417
        %v1438 = vpack.c.b16 %v1420, %v1419
        %v1439 = vpack.c.b16 %v1422, %v1421
        %v1440 = vpack.c.b16 %v1424, %v1423
        %1457 = vst [vmem:[%s639] sm:$0xff] %v1425
        %1458 = vst [vmem:[%s639 + $0x8] sm:$0xff] %v1426
        %1459 = vst [vmem:[%s639 + $0x10] sm:$0xff] %v1427
        %1460 = vst [vmem:[%s639 + $0x18] sm:$0xff] %v1428
        %1461 = vst [vmem:[%s639 + $0x20] sm:$0xff] %v1429
        %1462 = vst [vmem:[%s639 + $0x28] sm:$0xff] %v1430
        %1463 = vst [vmem:[%s639 + $0x30] sm:$0xff] %v1431
        %1464 = vst [vmem:[%s639 + $0x38] sm:$0xff] %v1432
        %1465 = vst [vmem:[%s639 + $0x40] sm:$0xff] %v1433
        %1466 = vst [vmem:[%s639 + $0x48] sm:$0xff] %v1434
        %1467 = vst [vmem:[%s639 + $0x50] sm:$0xff] %v1435
        %1468 = vst [vmem:[%s639 + $0x58] sm:$0xff] %v1436
        %1469 = vst [vmem:[%s639 + $0x60] sm:$0xff] %v1437
        %1470 = vst [vmem:[%s639 + $0x68] sm:$0xff] %v1438
        %1471 = vst [vmem:[%s639 + $0x70] sm:$0xff] %v1439
        %1472 = vst [vmem:[%s639 + $0x78] sm:$0xff] %v1440
        %s1473 = sand.u32 %s224, 1
        %s1474 = sand.u32 %s224, 1
        %s1475 = smul.addr %s1474, 128
        %s1476 = scalar_lea.vmem [#allocation4], %s1475
        // Predicated region
        $region125: #{stage3_forward.7} parent=115 // pred_check
          %p1477 = pneg %p234
        $region126: #{stage3_forward.7} parent=115 // pred_check_branch
          %1479 = sbr.rel (%p1477) target = $region128
        $region127: #{stage3_forward.7} parent=115 // pred_region
          %s1480 = smul.u32 16, %s22
          %s1481 = smul.u32 2, %s23
          %s1482 = smul.addr %s1480, 4
          %s1483 = sadd.s32 %s1481, %s1482
          %s1484 = smul.addr %s1483, 4
          %s1485 = scalar_lea.vmem %s7, %s1484
          // Predicated region
          $region129: #{stage3_forward.7} parent=127 // pred_check
            _
          $region130: #{stage3_forward.7} parent=127 // pred_check_branch
            %1487 = sbr.rel (0) target = $region132
          $region131: #{stage3_forward.7} parent=127 // pred_region
            // Predicated region
            $region133: #{stage3_forward.7} parent=131 // pred_check
              _
            $region134: #{stage3_forward.7} parent=131 // pred_check_branch
              %1489 = sbr.rel (0) target = $region136
            $region135: #{stage3_forward.7} parent=131 // pred_region
              // Predicated region
              $region148: #{stage3_forward.7} parent=135 // pred_check
                _
              $region149: #{stage3_forward.7} parent=135 // pred_check_branch
                %1534 = sbr.rel (0) target = $region151
              $region150: #{stage3_forward.7} parent=135 // pred_region
                loop: start=0, step=1, limit=1
                $region152: #{stage3_forward.7} parent=150 // loop_pre_header
                  _
                $region153: #{stage3_forward.7} parent=150 // loop_header
                  %s1536 = sphi 0, %s1540
                  %p1537 = scmp.ge.s32.totalorder %s1536, 1
                  %s1541 = sphi %s1476, %s1476
                  %s1542 = sphi %s1485, %s1485
                $region154: #{stage3_forward.7} parent=150 // loop_header_branch
                  %1539 = sbr.rel (%p1537) target = $region158
                $region155: #{stage3_forward.7} parent=150 // loop_body
                  %v1543 = vld [vmem:[%s1541] sm:$0xff]
                  %1544 = vst [vmem:[%s1542] sm:$0xff] %v1543
                  %v1545 = vld [vmem:[%s1541 + $0x8] sm:$0xff]
                  %1546 = vst [vmem:[%s1542 + $0x10] sm:$0xff] %v1545
                  %v1547 = vld [vmem:[%s1541 + $0x10] sm:$0xff]
                  %1548 = vst [vmem:[%s1542 + $0x20] sm:$0xff] %v1547
                  %v1549 = vld [vmem:[%s1541 + $0x18] sm:$0xff]
                  %1550 = vst [vmem:[%s1542 + $0x30] sm:$0xff] %v1549
                  %v1551 = vld [vmem:[%s1541 + $0x20] sm:$0xff]
                  %1552 = vst [vmem:[%s1542 + $0x40] sm:$0xff] %v1551
                  %v1553 = vld [vmem:[%s1541 + $0x28] sm:$0xff]
                  %1554 = vst [vmem:[%s1542 + $0x50] sm:$0xff] %v1553
                  %v1555 = vld [vmem:[%s1541 + $0x30] sm:$0xff]
                  %1556 = vst [vmem:[%s1542 + $0x60] sm:$0xff] %v1555
                  %v1557 = vld [vmem:[%s1541 + $0x38] sm:$0xff]
                  %1558 = vst [vmem:[%s1542 + $0x70] sm:$0xff] %v1557
                  %v1559 = vld [vmem:[%s1541 + $0x40] sm:$0xff]
                  %1560 = vst [vmem:[%s1542 + $0x80] sm:$0xff] %v1559
                  %v1561 = vld [vmem:[%s1541 + $0x48] sm:$0xff]
                  %1562 = vst [vmem:[%s1542 + $0x90] sm:$0xff] %v1561
                  %v1563 = vld [vmem:[%s1541 + $0x50] sm:$0xff]
                  %1564 = vst [vmem:[%s1542 + $0xa0] sm:$0xff] %v1563
                  %v1565 = vld [vmem:[%s1541 + $0x58] sm:$0xff]
                  %1566 = vst [vmem:[%s1542 + $0xb0] sm:$0xff] %v1565
                  %v1567 = vld [vmem:[%s1541 + $0x60] sm:$0xff]
                  %1568 = vst [vmem:[%s1542 + $0xc0] sm:$0xff] %v1567
                  %v1569 = vld [vmem:[%s1541 + $0x68] sm:$0xff]
                  %1570 = vst [vmem:[%s1542 + $0xd0] sm:$0xff] %v1569
                  %v1571 = vld [vmem:[%s1541 + $0x70] sm:$0xff]
                  %1572 = vst [vmem:[%s1542 + $0xe0] sm:$0xff] %v1571
                  %v1573 = vld [vmem:[%s1541 + $0x78] sm:$0xff]
                  %1574 = vst [vmem:[%s1542 + $0xf0] sm:$0xff] %v1573
                $region156: #{stage3_forward.7} parent=150 // loop_footer
                  %s1540 = sadd.s32 1, %s1536
                $region157: #{stage3_forward.7} parent=150 // loop_footer_branch
                  %1535 = sbr.rel target = $region153
                $region158: #{stage3_forward.7} parent=150 // loop_exit
                  _
              $region151: #{stage3_forward.7} parent=135 // pred_fallthru
                _
              // Predicated region
              $region159: #{stage3_forward.7} parent=135 // pred_check
                _
              $region160: #{stage3_forward.7} parent=135 // pred_check_branch
                %1576 = sbr.rel target = $region162
              $region161: #{stage3_forward.7} parent=135 // pred_region
                _
              $region162: #{stage3_forward.7} parent=135 // pred_fallthru
                _
            $region136: #{stage3_forward.7} parent=131 // pred_fallthru
              _
            // Predicated region
            $region137: #{stage3_forward.7} parent=131 // pred_check
              _
            $region138: #{stage3_forward.7} parent=131 // pred_check_branch
              %1491 = sbr.rel target = $region140
            $region139: #{stage3_forward.7} parent=131 // pred_region
              loop: start=0, step=1, limit=1
              $region141: #{stage3_forward.7} parent=139 // loop_pre_header
                _
              $region142: #{stage3_forward.7} parent=139 // loop_header
                %s1494 = sphi 0, %s1498
                %p1495 = scmp.ge.s32.totalorder %s1494, 1
                %s1499 = sphi %s1476, %s1476
                %s1500 = sphi %s1485, %s1485
              $region143: #{stage3_forward.7} parent=139 // loop_header_branch
                %1497 = sbr.rel (%p1495) target = $region147
              $region144: #{stage3_forward.7} parent=139 // loop_body
                %v1501 = vld [vmem:[%s1499] sm:$0xff]
                %1502 = vst [vmem:[%s1500] sm:$0xff] %v1501
                %v1503 = vld [vmem:[%s1499 + $0x8] sm:$0xff]
                %1504 = vst [vmem:[%s1500 + $0x10] sm:$0xff] %v1503
                %v1505 = vld [vmem:[%s1499 + $0x10] sm:$0xff]
                %1506 = vst [vmem:[%s1500 + $0x20] sm:$0xff] %v1505
                %v1507 = vld [vmem:[%s1499 + $0x18] sm:$0xff]
                %1508 = vst [vmem:[%s1500 + $0x30] sm:$0xff] %v1507
                %v1509 = vld [vmem:[%s1499 + $0x20] sm:$0xff]
                %1510 = vst [vmem:[%s1500 + $0x40] sm:$0xff] %v1509
                %v1511 = vld [vmem:[%s1499 + $0x28] sm:$0xff]
                %1512 = vst [vmem:[%s1500 + $0x50] sm:$0xff] %v1511
                %v1513 = vld [vmem:[%s1499 + $0x30] sm:$0xff]
                %1514 = vst [vmem:[%s1500 + $0x60] sm:$0xff] %v1513
                %v1515 = vld [vmem:[%s1499 + $0x38] sm:$0xff]
                %1516 = vst [vmem:[%s1500 + $0x70] sm:$0xff] %v1515
                %v1517 = vld [vmem:[%s1499 + $0x40] sm:$0xff]
                %1518 = vst [vmem:[%s1500 + $0x80] sm:$0xff] %v1517
                %v1519 = vld [vmem:[%s1499 + $0x48] sm:$0xff]
                %1520 = vst [vmem:[%s1500 + $0x90] sm:$0xff] %v1519
                %v1521 = vld [vmem:[%s1499 + $0x50] sm:$0xff]
                %1522 = vst [vmem:[%s1500 + $0xa0] sm:$0xff] %v1521
                %v1523 = vld [vmem:[%s1499 + $0x58] sm:$0xff]
                %1524 = vst [vmem:[%s1500 + $0xb0] sm:$0xff] %v1523
                %v1525 = vld [vmem:[%s1499 + $0x60] sm:$0xff]
                %1526 = vst [vmem:[%s1500 + $0xc0] sm:$0xff] %v1525
                %v1527 = vld [vmem:[%s1499 + $0x68] sm:$0xff]
                %1528 = vst [vmem:[%s1500 + $0xd0] sm:$0xff] %v1527
                %v1529 = vld [vmem:[%s1499 + $0x70] sm:$0xff]
                %1530 = vst [vmem:[%s1500 + $0xe0] sm:$0xff] %v1529
                %v1531 = vld [vmem:[%s1499 + $0x78] sm:$0xff]
                %1532 = vst [vmem:[%s1500 + $0xf0] sm:$0xff] %v1531
              $region145: #{stage3_forward.7} parent=139 // loop_footer
                %s1498 = sadd.s32 1, %s1494
              $region146: #{stage3_forward.7} parent=139 // loop_footer_branch
                %1493 = sbr.rel target = $region142
              $region147: #{stage3_forward.7} parent=139 // loop_exit
                _
            $region140: #{stage3_forward.7} parent=131 // pred_fallthru
              _
          $region132: #{stage3_forward.7} parent=127 // pred_fallthru
            _
          %1577 = vnop
        $region128: #{stage3_forward.7} parent=115 // pred_fallthru
          _
      $region116: #{stage3_forward.7} parent=5 // pred_fallthru
        _
      %p1578 = scmp.le.s32.totalorder 2, %s13
      // Predicated region
      $region163: #{stage3_forward.7} parent=5 // pred_check
        %p1579 = pneg %p1578
      $region164: #{stage3_forward.7} parent=5 // pred_check_branch
        %1581 = sbr.rel (%p1579) target = $region166
      $region165: #{stage3_forward.7} parent=5 // pred_region
        %s1582 = ssub.s32 %s13, 2
        // Predicated region
        $region167: #{stage3_forward.7} parent=165 // pred_check
          %p1583 = pneg %p240
        $region168: #{stage3_forward.7} parent=165 // pred_check_branch
          %1585 = sbr.rel (%p1583) target = $region170
        $region169: #{stage3_forward.7} parent=165 // pred_region
          %s1586 = sand.u32 %s225, 1
          %s1587 = sand.u32 %s225, 1
          %s1588 = smul.addr %s1587, 128
          %s1589 = scalar_lea.vmem [#allocation4], %s1588
        $region170: #{stage3_forward.7} parent=165 // pred_fallthru
          _
      $region166: #{stage3_forward.7} parent=5 // pred_fallthru
        _
    $region6: #{stage3_forward.7} parent=1 // loop_footer
      %s17 = sadd.s32 1, %s13
    $region7: #{stage3_forward.7} parent=1 // loop_footer_branch
      %12 = sbr.rel target = $region3
    $region8: #{stage3_forward.7} parent=1 // loop_exit
      _

// kernel: stage3_forward.10
$region0: #{stage3_forward.10}
  #allocation0 [shape = 'u32[]', space=smem, size = 0x4, offset = 0x4, fixed_abs, tag = 'smem constant byte address 0x4 - core index']
  #allocation1 [shape = 'u32[144,128]{1,0:T(1,128)}', space=vmem, size = 0x12000, scoped, tag = 'internal scratch']
  %s0 = inlined_call_operand.vmem [shape: bf16[128,128], index: 0, kind: input, shape index: {}]
  %s1 = inlined_call_operand.vmem [shape: bf16[128,512], index: 1, kind: input, shape index: {}]
  %s2 = inlined_call_operand.vmem [shape: f32[1,512], index: 2, kind: input, shape index: {}]
  %s3 = inlined_call_operand.vmem [shape: f32[1,512], index: 3, kind: input, shape index: {}]
  %s4 = inlined_call_operand.vmem [shape: bf16[128,512], index: 4, kind: input, shape index: {}]
  %s5 = inlined_call_operand.vmem [shape: f32[128,512], index: 5, kind: output, shape index: {}]
  %s6 = sld [smem:[#allocation0]]
  $region148: #{stage3_forward.10} parent=0
    _
  %s8 = ssub.s32 1, %s6
  %s9 = scalar_select 0, %s8, %s6
  $region1: #{stage3_forward.10} parent=0
    #allocation2 [shape = 'u8[131072]{0}', space=vmem, size = 0x20000, scoped, tag = 'input window, operand 1']
    #allocation3 [shape = 'u8[131072]{0}', space=vmem, size = 0x20000, scoped, tag = 'input window, operand 4']
    #allocation4 [shape = 'u8[262144]{0}', space=vmem, size = 0x40000, scoped, tag = 'output window, operand 0']
    loop: start=0, step=1, limit=4
    $region2: #{stage3_forward.10} parent=1 // loop_pre_header
      _
    $region3: #{stage3_forward.10} parent=1 // loop_header
      %s11 = sphi 0, %s15
      %p12 = scmp.ge.s32.totalorder %s11, 4
      %s18 = sphi 0, %s30
      %s19 = sphi 0, %s26
      %s20 = sphi 0, %s18
      %s21 = sphi 0, %s19
      %s22 = sphi 0, %s20
      %s23 = sphi 0, %s21
      %s33 = sphi 0, %s35
      %s36 = sphi 0, %s33
      %s37 = sphi 0, %s36
      %s53 = sphi 0, %s37
      %s59 = sphi 0, %s61
      %s62 = sphi 0, %s59
      %s63 = sphi 0, %s62
      %s79 = sphi 0, %s63
      %s85 = sphi 0, %s87
      %s88 = sphi 0, %s85
      %s89 = sphi 0, %s88
      %s105 = sphi 0, %s89
      %s111 = sphi 0, %s113
      %s114 = sphi 0, %s111
      %s115 = sphi 0, %s114
      %s131 = sphi 0, %s115
      %s139 = sphi 0, %s141
      %s142 = sphi 0, %s139
      %s143 = sphi 0, %s142
      %s159 = sphi 0, %s143
      %s167 = sphi 0, %s169
      %s170 = sphi 0, %s167
      %s171 = sphi 0, %s170
      %s187 = sphi 0, %s171
    $region4: #{stage3_forward.10} parent=1 // loop_header_branch
      %14 = sbr.rel (%p12) target = $region8
    $region5: #{stage3_forward.10} parent=1 // loop_body
      %s16 = ssub.s32 %s11, 1
      %s17 = ssub.s32 %s11, 2
      %s24 = sadd.s32 1, %s19
      %p25 = scmp.ge.s32.totalorder %s24, 2
      %s26 = scalar_select %p25, 0, %s24
      %s27 = sadd.s32 1, %s18
      %s28 = scalar_select %p25, %s27, %s18
      %p29 = scmp.ge.s32.totalorder %s28, 1
      %s30 = scalar_select %p29, 0, %s28
      %s31 = ssub.s32 %s18, %s30
      %p32 = scmp.eq.s32.totalorder %s31, 0
      %s34 = sadd.s32 %s33, 1
      %s35 = scalar_select %p32, %s33, %s34
      %p38 = pneg %p32
      %p39 = scmp.eq.s32.totalorder %s11, 1
      %p40 = por %p38, %p39
      %p41 = scmp.ne.s32.totalorder %s33, %s36
      %p42 = scmp.eq.s32.totalorder %s11, 0
      %p43 = por %p41, %p42
      %p44 = scmp.ne.s32.totalorder %s33, %s36
      %p45 = scmp.eq.s32.totalorder %s16, 1
      %p46 = por %p44, %p45
      %p47 = scmp.ne.s32.totalorder %s36, %s37
      %p48 = scmp.eq.s32.totalorder %s16, 0
      %p49 = por %p47, %p48
      %p50 = scmp.ne.s32.totalorder %s36, %s37
      %p51 = scmp.eq.s32.totalorder %s17, 1
      %p52 = por %p50, %p51
      %p54 = scmp.ne.s32.totalorder %s37, %s53
      %p55 = scmp.eq.s32.totalorder %s17, 0
      %p56 = por %p54, %p55
      %s57 = ssub.s32 %s19, %s26
      %p58 = scmp.eq.s32.totalorder %s57, 0
      %s60 = sadd.s32 %s59, 1
      %s61 = scalar_select %p58, %s59, %s60
      %p64 = pneg %p58
      %p65 = scmp.eq.s32.totalorder %s11, 1
      %p66 = por %p64, %p65
      %p67 = scmp.ne.s32.totalorder %s59, %s62
      %p68 = scmp.eq.s32.totalorder %s11, 0
      %p69 = por %p67, %p68
      %p70 = scmp.ne.s32.totalorder %s59, %s62
      %p71 = scmp.eq.s32.totalorder %s16, 1
      %p72 = por %p70, %p71
      %p73 = scmp.ne.s32.totalorder %s62, %s63
      %p74 = scmp.eq.s32.totalorder %s16, 0
      %p75 = por %p73, %p74
      %p76 = scmp.ne.s32.totalorder %s62, %s63
      %p77 = scmp.eq.s32.totalorder %s17, 1
      %p78 = por %p76, %p77
      %p80 = scmp.ne.s32.totalorder %s63, %s79
      %p81 = scmp.eq.s32.totalorder %s17, 0
      %p82 = por %p80, %p81
      %s83 = ssub.s32 %s19, %s26
      %p84 = scmp.eq.s32.totalorder %s83, 0
      %s86 = sadd.s32 %s85, 1
      %s87 = scalar_select %p84, %s85, %s86
      %p90 = pneg %p84
      %p91 = scmp.eq.s32.totalorder %s11, 1
      %p92 = por %p90, %p91
      %p93 = scmp.ne.s32.totalorder %s85, %s88
      %p94 = scmp.eq.s32.totalorder %s11, 0
      %p95 = por %p93, %p94
      %p96 = scmp.ne.s32.totalorder %s85, %s88
      %p97 = scmp.eq.s32.totalorder %s16, 1
      %p98 = por %p96, %p97
      %p99 = scmp.ne.s32.totalorder %s88, %s89
      %p100 = scmp.eq.s32.totalorder %s16, 0
      %p101 = por %p99, %p100
      %p102 = scmp.ne.s32.totalorder %s88, %s89
      %p103 = scmp.eq.s32.totalorder %s17, 1
      %p104 = por %p102, %p103
      %p106 = scmp.ne.s32.totalorder %s89, %s105
      %p107 = scmp.eq.s32.totalorder %s17, 0
      %p108 = por %p106, %p107
      %s109 = ssub.s32 %s19, %s26
      %p110 = scmp.eq.s32.totalorder %s109, 0
      %s112 = sadd.s32 %s111, 1
      %s113 = scalar_select %p110, %s111, %s112
      %p116 = pneg %p110
      %p117 = scmp.eq.s32.totalorder %s11, 1
      %p118 = por %p116, %p117
      %p119 = scmp.ne.s32.totalorder %s111, %s114
      %p120 = scmp.eq.s32.totalorder %s11, 0
      %p121 = por %p119, %p120
      %p122 = scmp.ne.s32.totalorder %s111, %s114
      %p123 = scmp.eq.s32.totalorder %s16, 1
      %p124 = por %p122, %p123
      %p125 = scmp.ne.s32.totalorder %s114, %s115
      %p126 = scmp.eq.s32.totalorder %s16, 0
      %p127 = por %p125, %p126
      %p128 = scmp.ne.s32.totalorder %s114, %s115
      %p129 = scmp.eq.s32.totalorder %s17, 1
      %p130 = por %p128, %p129
      %p132 = scmp.ne.s32.totalorder %s115, %s131
      %p133 = scmp.eq.s32.totalorder %s17, 0
      %p134 = por %p132, %p133
      %s135 = ssub.s32 %s18, %s30
      %s136 = ssub.s32 %s19, %s26
      %s137 = sor.u32 %s135, %s136
      %p138 = scmp.eq.s32.totalorder %s137, 0
      %s140 = sadd.s32 %s139, 1
      %s141 = scalar_select %p138, %s139, %s140
      %p144 = pneg %p138
      %p145 = scmp.eq.s32.totalorder %s11, 1
      %p146 = por %p144, %p145
      %p147 = scmp.ne.s32.totalorder %s139, %s142
      %p148 = scmp.eq.s32.totalorder %s11, 0
      %p149 = por %p147, %p148
      %p150 = scmp.ne.s32.totalorder %s139, %s142
      %p151 = scmp.eq.s32.totalorder %s16, 1
      %p152 = por %p150, %p151
      %p153 = scmp.ne.s32.totalorder %s142, %s143
      %p154 = scmp.eq.s32.totalorder %s16, 0
      %p155 = por %p153, %p154
      %p156 = scmp.ne.s32.totalorder %s142, %s143
      %p157 = scmp.eq.s32.totalorder %s17, 1
      %p158 = por %p156, %p157
      %p160 = scmp.ne.s32.totalorder %s143, %s159
      %p161 = scmp.eq.s32.totalorder %s17, 0
      %p162 = por %p160, %p161
      %s163 = ssub.s32 %s18, %s30
      %s164 = ssub.s32 %s19, %s26
      %s165 = sor.u32 %s163, %s164
      %p166 = scmp.eq.s32.totalorder %s165, 0
      %s168 = sadd.s32 %s167, 1
      %s169 = scalar_select %p166, %s167, %s168
      %p172 = pneg %p166
      %p173 = scmp.eq.s32.totalorder %s11, 1
      %p174 = por %p172, %p173
      %p175 = scmp.ne.s32.totalorder %s167, %s170
      %p176 = scmp.eq.s32.totalorder %s11, 0
      %p177 = por %p175, %p176
      %p178 = scmp.ne.s32.totalorder %s167, %s170
      %p179 = scmp.eq.s32.totalorder %s16, 1
      %p180 = por %p178, %p179
      %p181 = scmp.ne.s32.totalorder %s170, %s171
      %p182 = scmp.eq.s32.totalorder %s16, 0
      %p183 = por %p181, %p182
      %p184 = scmp.ne.s32.totalorder %s170, %s171
      %p185 = scmp.eq.s32.totalorder %s17, 1
      %p186 = por %p184, %p185
      %p188 = scmp.ne.s32.totalorder %s171, %s187
      %p189 = scmp.eq.s32.totalorder %s17, 0
      %p190 = por %p188, %p189
      %p191 = scmp.le.s32.totalorder 1, %s11
      %p192 = scmp.lt.s32.totalorder %s11, 3
      %p193 = pnand %p191, %p192
      %p194 = pneg %p193
      // Predicated region
      $region9: #{stage3_forward.10} parent=5 // pred_check
        _
      $region10: #{stage3_forward.10} parent=5 // pred_check_branch
        %196 = sbr.rel (%p193) target = $region12
      $region11: #{stage3_forward.10} parent=5 // pred_region
        %s197 = ssub.s32 %s11, 1
        // Predicated region
        $region13: #{stage3_forward.10} parent=11 // pred_check
          %p198 = pneg %p49
        $region14: #{stage3_forward.10} parent=11 // pred_check_branch
          %200 = sbr.rel (%p198) target = $region16
        $region15: #{stage3_forward.10} parent=11 // pred_region
          %s201 = smul.u32 16, %s20
          %p202 = scmp.lt.s32.totalorder %s201, 15
          %s203 = scalar_select %p202, %s201, 15
          %s204 = smul.addr %s203, 4
          %s205 = scalar_lea.vmem %s0, %s204
          %s206 = smul.u32 16, %s20
        $region16: #{stage3_forward.10} parent=11 // pred_fallthru
          _
      $region12: #{stage3_forward.10} parent=5 // pred_fallthru
        _
      %p207 = scmp.lt.s32.totalorder %s11, 2
      // Predicated region
      $region17: #{stage3_forward.10} parent=5 // pred_check
        %p208 = pneg %p207
      $region18: #{stage3_forward.10} parent=5 // pred_check_branch
        %210 = sbr.rel (%p208) target = $region20
      $region19: #{stage3_forward.10} parent=5 // pred_region
        // Predicated region
        $region21: #{stage3_forward.10} parent=19 // pred_check
          %p211 = pneg %p69
        $region22: #{stage3_forward.10} parent=19 // pred_check_branch
          %213 = sbr.rel (%p211) target = $region24
        $region23: #{stage3_forward.10} parent=19 // pred_region
          %s214 = sand.u32 %s59, 1
          %s215 = sand.u32 %s59, 1
          %s216 = smul.addr %s215, 128
          %s217 = scalar_lea.vmem [#allocation2], %s216
          %s218 = smul.u32 2, %s19
          %s219 = smul.addr %s218, 4
          %s220 = scalar_lea.vmem %s1, %s219
          // Predicated region
          $region25: #{stage3_forward.10} parent=23 // pred_check
            _
          $region26: #{stage3_forward.10} parent=23 // pred_check_branch
            %222 = sbr.rel (0) target = $region28
          $region27: #{stage3_forward.10} parent=23 // pred_region
            // Predicated region
            $region29: #{stage3_forward.10} parent=27 // pred_check
              _
            $region30: #{stage3_forward.10} parent=27 // pred_check_branch
              %224 = sbr.rel (0) target = $region32
            $region31: #{stage3_forward.10} parent=27 // pred_region
              // Predicated region
              $region44: #{stage3_forward.10} parent=31 // pred_check
                _
              $region45: #{stage3_forward.10} parent=31 // pred_check_branch
                %269 = sbr.rel (0) target = $region47
              $region46: #{stage3_forward.10} parent=31 // pred_region
                loop: start=0, step=1, limit=1
                $region48: #{stage3_forward.10} parent=46 // loop_pre_header
                  _
                $region49: #{stage3_forward.10} parent=46 // loop_header
                  %s271 = sphi 0, %s275
                  %p272 = scmp.ge.s32.totalorder %s271, 1
                  %s276 = sphi %s220, %s220
                  %s277 = sphi %s217, %s217
                $region50: #{stage3_forward.10} parent=46 // loop_header_branch
                  %274 = sbr.rel (%p272) target = $region54
                $region51: #{stage3_forward.10} parent=46 // loop_body
                  %v278 = vld [vmem:[%s276] sm:$0xff]
                  %279 = vst [vmem:[%s277] sm:$0xff] %v278
                  %v280 = vld [vmem:[%s276 + $0x10] sm:$0xff]
                  %281 = vst [vmem:[%s277 + $0x8] sm:$0xff] %v280
                  %v282 = vld [vmem:[%s276 + $0x20] sm:$0xff]
                  %283 = vst [vmem:[%s277 + $0x10] sm:$0xff] %v282
                  %v284 = vld [vmem:[%s276 + $0x30] sm:$0xff]
                  %285 = vst [vmem:[%s277 + $0x18] sm:$0xff] %v284
                  %v286 = vld [vmem:[%s276 + $0x40] sm:$0xff]
                  %287 = vst [vmem:[%s277 + $0x20] sm:$0xff] %v286
                  %v288 = vld [vmem:[%s276 + $0x50] sm:$0xff]
                  %289 = vst [vmem:[%s277 + $0x28] sm:$0xff] %v288
                  %v290 = vld [vmem:[%s276 + $0x60] sm:$0xff]
                  %291 = vst [vmem:[%s277 + $0x30] sm:$0xff] %v290
                  %v292 = vld [vmem:[%s276 + $0x70] sm:$0xff]
                  %293 = vst [vmem:[%s277 + $0x38] sm:$0xff] %v292
                  %v294 = vld [vmem:[%s276 + $0x80] sm:$0xff]
                  %295 = vst [vmem:[%s277 + $0x40] sm:$0xff] %v294
                  %v296 = vld [vmem:[%s276 + $0x90] sm:$0xff]
                  %297 = vst [vmem:[%s277 + $0x48] sm:$0xff] %v296
                  %v298 = vld [vmem:[%s276 + $0xa0] sm:$0xff]
                  %299 = vst [vmem:[%s277 + $0x50] sm:$0xff] %v298
                  %v300 = vld [vmem:[%s276 + $0xb0] sm:$0xff]
                  %301 = vst [vmem:[%s277 + $0x58] sm:$0xff] %v300
                  %v302 = vld [vmem:[%s276 + $0xc0] sm:$0xff]
                  %303 = vst [vmem:[%s277 + $0x60] sm:$0xff] %v302
                  %v304 = vld [vmem:[%s276 + $0xd0] sm:$0xff]
                  %305 = vst [vmem:[%s277 + $0x68] sm:$0xff] %v304
                  %v306 = vld [vmem:[%s276 + $0xe0] sm:$0xff]
                  %307 = vst [vmem:[%s277 + $0x70] sm:$0xff] %v306
                  %v308 = vld [vmem:[%s276 + $0xf0] sm:$0xff]
                  %309 = vst [vmem:[%s277 + $0x78] sm:$0xff] %v308
                $region52: #{stage3_forward.10} parent=46 // loop_footer
                  %s275 = sadd.s32 1, %s271
                $region53: #{stage3_forward.10} parent=46 // loop_footer_branch
                  %270 = sbr.rel target = $region49
                $region54: #{stage3_forward.10} parent=46 // loop_exit
                  _
              $region47: #{stage3_forward.10} parent=31 // pred_fallthru
                _
              // Predicated region
              $region55: #{stage3_forward.10} parent=31 // pred_check
                _
              $region56: #{stage3_forward.10} parent=31 // pred_check_branch
                %311 = sbr.rel target = $region58
              $region57: #{stage3_forward.10} parent=31 // pred_region
                _
              $region58: #{stage3_forward.10} parent=31 // pred_fallthru
                _
            $region32: #{stage3_forward.10} parent=27 // pred_fallthru
              _
            // Predicated region
            $region33: #{stage3_forward.10} parent=27 // pred_check
              _
            $region34: #{stage3_forward.10} parent=27 // pred_check_branch
              %226 = sbr.rel target = $region36
            $region35: #{stage3_forward.10} parent=27 // pred_region
              loop: start=0, step=1, limit=1
              $region37: #{stage3_forward.10} parent=35 // loop_pre_header
                _
              $region38: #{stage3_forward.10} parent=35 // loop_header
                %s229 = sphi 0, %s233
                %p230 = scmp.ge.s32.totalorder %s229, 1
                %s234 = sphi %s220, %s220
                %s235 = sphi %s217, %s217
              $region39: #{stage3_forward.10} parent=35 // loop_header_branch
                %232 = sbr.rel (%p230) target = $region43
              $region40: #{stage3_forward.10} parent=35 // loop_body
                %v236 = vld [vmem:[%s234] sm:$0xff]
                %237 = vst [vmem:[%s235] sm:$0xff] %v236
                %v238 = vld [vmem:[%s234 + $0x10] sm:$0xff]
                %239 = vst [vmem:[%s235 + $0x8] sm:$0xff] %v238
                %v240 = vld [vmem:[%s234 + $0x20] sm:$0xff]
                %241 = vst [vmem:[%s235 + $0x10] sm:$0xff] %v240
                %v242 = vld [vmem:[%s234 + $0x30] sm:$0xff]
                %243 = vst [vmem:[%s235 + $0x18] sm:$0xff] %v242
                %v244 = vld [vmem:[%s234 + $0x40] sm:$0xff]
                %245 = vst [vmem:[%s235 + $0x20] sm:$0xff] %v244
                %v246 = vld [vmem:[%s234 + $0x50] sm:$0xff]
                %247 = vst [vmem:[%s235 + $0x28] sm:$0xff] %v246
                %v248 = vld [vmem:[%s234 + $0x60] sm:$0xff]
                %249 = vst [vmem:[%s235 + $0x30] sm:$0xff] %v248
                %v250 = vld [vmem:[%s234 + $0x70] sm:$0xff]
                %251 = vst [vmem:[%s235 + $0x38] sm:$0xff] %v250
                %v252 = vld [vmem:[%s234 + $0x80] sm:$0xff]
                %253 = vst [vmem:[%s235 + $0x40] sm:$0xff] %v252
                %v254 = vld [vmem:[%s234 + $0x90] sm:$0xff]
                %255 = vst [vmem:[%s235 + $0x48] sm:$0xff] %v254
                %v256 = vld [vmem:[%s234 + $0xa0] sm:$0xff]
                %257 = vst [vmem:[%s235 + $0x50] sm:$0xff] %v256
                %v258 = vld [vmem:[%s234 + $0xb0] sm:$0xff]
                %259 = vst [vmem:[%s235 + $0x58] sm:$0xff] %v258
                %v260 = vld [vmem:[%s234 + $0xc0] sm:$0xff]
                %261 = vst [vmem:[%s235 + $0x60] sm:$0xff] %v260
                %v262 = vld [vmem:[%s234 + $0xd0] sm:$0xff]
                %263 = vst [vmem:[%s235 + $0x68] sm:$0xff] %v262
                %v264 = vld [vmem:[%s234 + $0xe0] sm:$0xff]
                %265 = vst [vmem:[%s235 + $0x70] sm:$0xff] %v264
                %v266 = vld [vmem:[%s234 + $0xf0] sm:$0xff]
                %267 = vst [vmem:[%s235 + $0x78] sm:$0xff] %v266
              $region41: #{stage3_forward.10} parent=35 // loop_footer
                %s233 = sadd.s32 1, %s229
              $region42: #{stage3_forward.10} parent=35 // loop_footer_branch
                %228 = sbr.rel target = $region38
              $region43: #{stage3_forward.10} parent=35 // loop_exit
                _
            $region36: #{stage3_forward.10} parent=27 // pred_fallthru
              _
          $region28: #{stage3_forward.10} parent=23 // pred_fallthru
            _
          %312 = vnop
        $region24: #{stage3_forward.10} parent=19 // pred_fallthru
          _
        // Predicated region
        $region59: #{stage3_forward.10} parent=19 // pred_check
          %p313 = pneg %p95
        $region60: #{stage3_forward.10} parent=19 // pred_check_branch
          %315 = sbr.rel (%p313) target = $region62
        $region61: #{stage3_forward.10} parent=19 // pred_region
          %s316 = smul.u32 2, %s19
          %p317 = scmp.lt.s32.totalorder %s316, 3
          %s318 = scalar_select %p317, %s316, 3
          %s319 = scalar_lea.vmem %s2, %s318
          %s320 = smul.u32 2, %s19
        $region62: #{stage3_forward.10} parent=19 // pred_fallthru
          _
        // Predicated region
        $region63: #{stage3_forward.10} parent=19 // pred_check
          %p321 = pneg %p121
        $region64: #{stage3_forward.10} parent=19 // pred_check_branch
          %323 = sbr.rel (%p321) target = $region66
        $region65: #{stage3_forward.10} parent=19 // pred_region
          %s324 = smul.u32 2, %s19
          %p325 = scmp.lt.s32.totalorder %s324, 3
          %s326 = scalar_select %p325, %s324, 3
          %s327 = scalar_lea.vmem %s3, %s326
          %s328 = smul.u32 2, %s19
        $region66: #{stage3_forward.10} parent=19 // pred_fallthru
          _
        // Predicated region
        $region67: #{stage3_forward.10} parent=19 // pred_check
          %p329 = pneg %p149
        $region68: #{stage3_forward.10} parent=19 // pred_check_branch
          %331 = sbr.rel (%p329) target = $region70
        $region69: #{stage3_forward.10} parent=19 // pred_region
          %s332 = sand.u32 %s139, 1
          %s333 = sand.u32 %s139, 1
          %s334 = smul.addr %s333, 128
          %s335 = scalar_lea.vmem [#allocation3], %s334
          %s336 = smul.u32 16, %s18
          %s337 = smul.u32 2, %s19
          %s338 = smul.addr %s336, 4
          %s339 = sadd.s32 %s337, %s338
          %s340 = smul.addr %s339, 4
          %s341 = scalar_lea.vmem %s4, %s340
          // Predicated region
          $region71: #{stage3_forward.10} parent=69 // pred_check
            _
          $region72: #{stage3_forward.10} parent=69 // pred_check_branch
            %343 = sbr.rel (0) target = $region74
          $region73: #{stage3_forward.10} parent=69 // pred_region
            // Predicated region
            $region75: #{stage3_forward.10} parent=73 // pred_check
              _
            $region76: #{stage3_forward.10} parent=73 // pred_check_branch
              %345 = sbr.rel (0) target = $region78
            $region77: #{stage3_forward.10} parent=73 // pred_region
              // Predicated region
              $region90: #{stage3_forward.10} parent=77 // pred_check
                _
              $region91: #{stage3_forward.10} parent=77 // pred_check_branch
                %390 = sbr.rel (0) target = $region93
              $region92: #{stage3_forward.10} parent=77 // pred_region
                loop: start=0, step=1, limit=1
                $region94: #{stage3_forward.10} parent=92 // loop_pre_header
                  _
                $region95: #{stage3_forward.10} parent=92 // loop_header
                  %s392 = sphi 0, %s396
                  %p393 = scmp.ge.s32.totalorder %s392, 1
                  %s397 = sphi %s341, %s341
                  %s398 = sphi %s335, %s335
                $region96: #{stage3_forward.10} parent=92 // loop_header_branch
                  %395 = sbr.rel (%p393) target = $region100
                $region97: #{stage3_forward.10} parent=92 // loop_body
                  %v399 = vld [vmem:[%s397] sm:$0xff]
                  %400 = vst [vmem:[%s398] sm:$0xff] %v399
                  %v401 = vld [vmem:[%s397 + $0x10] sm:$0xff]
                  %402 = vst [vmem:[%s398 + $0x8] sm:$0xff] %v401
                  %v403 = vld [vmem:[%s397 + $0x20] sm:$0xff]
                  %404 = vst [vmem:[%s398 + $0x10] sm:$0xff] %v403
                  %v405 = vld [vmem:[%s397 + $0x30] sm:$0xff]
                  %406 = vst [vmem:[%s398 + $0x18] sm:$0xff] %v405
                  %v407 = vld [vmem:[%s397 + $0x40] sm:$0xff]
                  %408 = vst [vmem:[%s398 + $0x20] sm:$0xff] %v407
                  %v409 = vld [vmem:[%s397 + $0x50] sm:$0xff]
                  %410 = vst [vmem:[%s398 + $0x28] sm:$0xff] %v409
                  %v411 = vld [vmem:[%s397 + $0x60] sm:$0xff]
                  %412 = vst [vmem:[%s398 + $0x30] sm:$0xff] %v411
                  %v413 = vld [vmem:[%s397 + $0x70] sm:$0xff]
                  %414 = vst [vmem:[%s398 + $0x38] sm:$0xff] %v413
                  %v415 = vld [vmem:[%s397 + $0x80] sm:$0xff]
                  %416 = vst [vmem:[%s398 + $0x40] sm:$0xff] %v415
                  %v417 = vld [vmem:[%s397 + $0x90] sm:$0xff]
                  %418 = vst [vmem:[%s398 + $0x48] sm:$0xff] %v417
                  %v419 = vld [vmem:[%s397 + $0xa0] sm:$0xff]
                  %420 = vst [vmem:[%s398 + $0x50] sm:$0xff] %v419
                  %v421 = vld [vmem:[%s397 + $0xb0] sm:$0xff]
                  %422 = vst [vmem:[%s398 + $0x58] sm:$0xff] %v421
                  %v423 = vld [vmem:[%s397 + $0xc0] sm:$0xff]
                  %424 = vst [vmem:[%s398 + $0x60] sm:$0xff] %v423
                  %v425 = vld [vmem:[%s397 + $0xd0] sm:$0xff]
                  %426 = vst [vmem:[%s398 + $0x68] sm:$0xff] %v425
                  %v427 = vld [vmem:[%s397 + $0xe0] sm:$0xff]
                  %428 = vst [vmem:[%s398 + $0x70] sm:$0xff] %v427
                  %v429 = vld [vmem:[%s397 + $0xf0] sm:$0xff]
                  %430 = vst [vmem:[%s398 + $0x78] sm:$0xff] %v429
                $region98: #{stage3_forward.10} parent=92 // loop_footer
                  %s396 = sadd.s32 1, %s392
                $region99: #{stage3_forward.10} parent=92 // loop_footer_branch
                  %391 = sbr.rel target = $region95
                $region100: #{stage3_forward.10} parent=92 // loop_exit
                  _
              $region93: #{stage3_forward.10} parent=77 // pred_fallthru
                _
              // Predicated region
              $region101: #{stage3_forward.10} parent=77 // pred_check
                _
              $region102: #{stage3_forward.10} parent=77 // pred_check_branch
                %432 = sbr.rel target = $region104
              $region103: #{stage3_forward.10} parent=77 // pred_region
                _
              $region104: #{stage3_forward.10} parent=77 // pred_fallthru
                _
            $region78: #{stage3_forward.10} parent=73 // pred_fallthru
              _
            // Predicated region
            $region79: #{stage3_forward.10} parent=73 // pred_check
              _
            $region80: #{stage3_forward.10} parent=73 // pred_check_branch
              %347 = sbr.rel target = $region82
            $region81: #{stage3_forward.10} parent=73 // pred_region
              loop: start=0, step=1, limit=1
              $region83: #{stage3_forward.10} parent=81 // loop_pre_header
                _
              $region84: #{stage3_forward.10} parent=81 // loop_header
                %s350 = sphi 0, %s354
                %p351 = scmp.ge.s32.totalorder %s350, 1
                %s355 = sphi %s341, %s341
                %s356 = sphi %s335, %s335
              $region85: #{stage3_forward.10} parent=81 // loop_header_branch
                %353 = sbr.rel (%p351) target = $region89
              $region86: #{stage3_forward.10} parent=81 // loop_body
                %v357 = vld [vmem:[%s355] sm:$0xff]
                %358 = vst [vmem:[%s356] sm:$0xff] %v357
                %v359 = vld [vmem:[%s355 + $0x10] sm:$0xff]
                %360 = vst [vmem:[%s356 + $0x8] sm:$0xff] %v359
                %v361 = vld [vmem:[%s355 + $0x20] sm:$0xff]
                %362 = vst [vmem:[%s356 + $0x10] sm:$0xff] %v361
                %v363 = vld [vmem:[%s355 + $0x30] sm:$0xff]
                %364 = vst [vmem:[%s356 + $0x18] sm:$0xff] %v363
                %v365 = vld [vmem:[%s355 + $0x40] sm:$0xff]
                %366 = vst [vmem:[%s356 + $0x20] sm:$0xff] %v365
                %v367 = vld [vmem:[%s355 + $0x50] sm:$0xff]
                %368 = vst [vmem:[%s356 + $0x28] sm:$0xff] %v367
                %v369 = vld [vmem:[%s355 + $0x60] sm:$0xff]
                %370 = vst [vmem:[%s356 + $0x30] sm:$0xff] %v369
                %v371 = vld [vmem:[%s355 + $0x70] sm:$0xff]
                %372 = vst [vmem:[%s356 + $0x38] sm:$0xff] %v371
                %v373 = vld [vmem:[%s355 + $0x80] sm:$0xff]
                %374 = vst [vmem:[%s356 + $0x40] sm:$0xff] %v373
                %v375 = vld [vmem:[%s355 + $0x90] sm:$0xff]
                %376 = vst [vmem:[%s356 + $0x48] sm:$0xff] %v375
                %v377 = vld [vmem:[%s355 + $0xa0] sm:$0xff]
                %378 = vst [vmem:[%s356 + $0x50] sm:$0xff] %v377
                %v379 = vld [vmem:[%s355 + $0xb0] sm:$0xff]
                %380 = vst [vmem:[%s356 + $0x58] sm:$0xff] %v379
                %v381 = vld [vmem:[%s355 + $0xc0] sm:$0xff]
                %382 = vst [vmem:[%s356 + $0x60] sm:$0xff] %v381
                %v383 = vld [vmem:[%s355 + $0xd0] sm:$0xff]
                %384 = vst [vmem:[%s356 + $0x68] sm:$0xff] %v383
                %v385 = vld [vmem:[%s355 + $0xe0] sm:$0xff]
                %386 = vst [vmem:[%s356 + $0x70] sm:$0xff] %v385
                %v387 = vld [vmem:[%s355 + $0xf0] sm:$0xff]
                %388 = vst [vmem:[%s356 + $0x78] sm:$0xff] %v387
              $region87: #{stage3_forward.10} parent=81 // loop_footer
                %s354 = sadd.s32 1, %s350
              $region88: #{stage3_forward.10} parent=81 // loop_footer_branch
                %349 = sbr.rel target = $region84
              $region89: #{stage3_forward.10} parent=81 // loop_exit
                _
            $region82: #{stage3_forward.10} parent=73 // pred_fallthru
              _
          $region74: #{stage3_forward.10} parent=69 // pred_fallthru
            _
          %433 = vnop
        $region70: #{stage3_forward.10} parent=19 // pred_fallthru
          _
      $region20: #{stage3_forward.10} parent=5 // pred_fallthru
        _
      %p434 = scmp.le.s32.totalorder 1, %s11
      %p435 = scmp.lt.s32.totalorder %s11, 3
      %p436 = pnand %p434, %p435
      %p437 = pneg %p436
      // Predicated region
      $region105: #{stage3_forward.10} parent=5 // pred_check
        _
      $region106: #{stage3_forward.10} parent=5 // pred_check_branch
        %439 = sbr.rel (%p436) target = $region108
      $region107: #{stage3_forward.10} parent=5 // pred_region
        %s440 = ssub.s32 %s11, 1
        %s441 = sand.u32 %s62, 1
        %s442 = sand.u32 %s62, 1
        %s443 = smul.addr %s442, 128
        %s444 = scalar_lea.vmem [#allocation2], %s443
        // Predicated region
        $region109: #{stage3_forward.10} parent=107 // pred_check
          %p445 = pneg %p75
        $region110: #{stage3_forward.10} parent=107 // pred_check_branch
          %447 = sbr.rel (%p445) target = $region112
        $region111: #{stage3_forward.10} parent=107 // pred_region
          _
        $region112: #{stage3_forward.10} parent=107 // pred_fallthru
          _
        %s448 = sand.u32 %s142, 1
        %s449 = sand.u32 %s142, 1
        %s450 = smul.addr %s449, 128
        %s451 = scalar_lea.vmem [#allocation3], %s450
        // Predicated region
        $region113: #{stage3_forward.10} parent=107 // pred_check
          %p452 = pneg %p155
        $region114: #{stage3_forward.10} parent=107 // pred_check_branch
          %454 = sbr.rel (%p452) target = $region116
        $region115: #{stage3_forward.10} parent=107 // pred_region
          _
        $region116: #{stage3_forward.10} parent=107 // pred_fallthru
          _
        %s455 = smul.u32 16, %s20
        %p456 = scmp.lt.s32.totalorder %s455, 15
        %s457 = scalar_select %p456, %s455, 15
        %s458 = smul.addr %s457, 4
        %s459 = scalar_lea.vmem %s0, %s458
        %p460 = pneg %p49
        %p461 = pneg %p46
        %s462 = sand.u32 %s62, 1
        %s463 = sand.u32 %s62, 1
        %s464 = smul.addr %s463, 128
        %s465 = scalar_lea.vmem [#allocation2], %s464
        %p466 = pneg %p75
        %p467 = pneg %p72
        %s468 = smul.u32 2, %s21
        %p469 = scmp.lt.s32.totalorder %s468, 3
        %s470 = scalar_select %p469, %s468, 3
        %s471 = scalar_lea.vmem %s2, %s470
        %p472 = pneg %p101
        %p473 = pneg %p98
        %s474 = smul.u32 2, %s21
        %p475 = scmp.lt.s32.totalorder %s474, 3
        %s476 = scalar_select %p475, %s474, 3
        %s477 = scalar_lea.vmem %s3, %s476
        %p478 = pneg %p127
        %p479 = pneg %p124
        %s480 = sand.u32 %s142, 1
        %s481 = sand.u32 %s142, 1
        %s482 = smul.addr %s481, 128
        %s483 = scalar_lea.vmem [#allocation3], %s482
        %p484 = pneg %p155
        %p485 = pneg %p152
        %p486 = pneg %p183
        %p487 = pneg %p180
        %s488 = sand.u32 %s170, 1
        %s489 = sand.u32 %s170, 1
        %s490 = smul.addr %s489, 256
        %s491 = scalar_lea.vmem [#allocation4], %s490
        %s492 = smul.u32 16, %s20
        %p493 = scmp.lt.s32.totalorder %s492, 15
        %s494 = scalar_select %p493, %s492, 15
        %s495 = smul.addr %s494, 4
        %s496 = scalar_lea.vmem %s0, %s495
        %s497 = smul.u32 16, %s20
        %s498 = smul.u32 2, %s21
        %s499 = smul.u32 2, %s21
        %p500 = scmp.lt.s32.totalorder %s499, 3
        %s501 = scalar_select %p500, %s499, 3
        %s502 = scalar_lea.vmem %s2, %s501
        %s503 = smul.u32 2, %s21
        %s504 = smul.u32 2, %s21
        %p505 = scmp.lt.s32.totalorder %s504, 3
        %s506 = scalar_select %p505, %s504, 3
        %s507 = scalar_lea.vmem %s3, %s506
        %s508 = smul.u32 2, %s21
        %s509 = smul.u32 16, %s20
        %s510 = smul.u32 2, %s21
        %s511 = smul.u32 16, %s20
        %s512 = smul.u32 2, %s21
        %v514 = vld [vmem:[%s496] sm:$0xf]
        %v515 = vld [vmem:[%s496 + $0x4] sm:$0xf]
        %v516 = vld [vmem:[%s496 + $0x8] sm:$0xf]
        %v517 = vld [vmem:[%s496 + $0xc] sm:$0xf]
        %v518 = vld [vmem:[%s496 + $0x10] sm:$0xf]
        %v519 = vld [vmem:[%s496 + $0x14] sm:$0xf]
        %v520 = vld [vmem:[%s496 + $0x18] sm:$0xf]
        %v521 = vld [vmem:[%s496 + $0x1c] sm:$0xf]
        %v522 = vld [vmem:[%s496 + $0x20] sm:$0xf]
        %v523 = vld [vmem:[%s496 + $0x24] sm:$0xf]
        %v524 = vld [vmem:[%s496 + $0x28] sm:$0xf]
        %v525 = vld [vmem:[%s496 + $0x2c] sm:$0xf]
        %v526 = vld [vmem:[%s496 + $0x30] sm:$0xf]
        %v527 = vld [vmem:[%s496 + $0x34] sm:$0xf]
        %v528 = vld [vmem:[%s496 + $0x38] sm:$0xf]
        %v529 = vld [vmem:[%s496 + $0x3c] sm:$0xf]
        %v530 = vld [vmem:[%s444] sm:$0xff]
        %v531 = vld [vmem:[%s444 + $0x8] sm:$0xff]
        %v532 = vld [vmem:[%s444 + $0x10] sm:$0xff]
        %v533 = vld [vmem:[%s444 + $0x18] sm:$0xff]
        %v534 = vld [vmem:[%s444 + $0x20] sm:$0xff]
        %v535 = vld [vmem:[%s444 + $0x28] sm:$0xff]
        %v536 = vld [vmem:[%s444 + $0x30] sm:$0xff]
        %v537 = vld [vmem:[%s444 + $0x38] sm:$0xff]
        %v538 = vld [vmem:[%s444 + $0x40] sm:$0xff]
        %v539 = vld [vmem:[%s444 + $0x48] sm:$0xff]
        %v540 = vld [vmem:[%s444 + $0x50] sm:$0xff]
        %v541 = vld [vmem:[%s444 + $0x58] sm:$0xff]
        %v542 = vld [vmem:[%s444 + $0x60] sm:$0xff]
        %v543 = vld [vmem:[%s444 + $0x68] sm:$0xff]
        %v544 = vld [vmem:[%s444 + $0x70] sm:$0xff]
        %v545 = vld [vmem:[%s444 + $0x78] sm:$0xff]
        %v562 = vunpack.c.l.b16 %v514
        %v563 = vunpack.c.l.b16 %v515
        %v564 = vunpack.c.l.b16 %v516
        %v565 = vunpack.c.l.b16 %v517
        %v566 = vunpack.c.l.b16 %v518
        %v567 = vunpack.c.l.b16 %v519
        %v568 = vunpack.c.l.b16 %v520
        %v569 = vunpack.c.l.b16 %v521
        %v570 = vunpack.c.l.b16 %v522
        %v571 = vunpack.c.l.b16 %v523
        %v572 = vunpack.c.l.b16 %v524
        %v573 = vunpack.c.l.b16 %v525
        %v574 = vunpack.c.l.b16 %v526
        %v575 = vunpack.c.l.b16 %v527
        %v576 = vunpack.c.l.b16 %v528
        %v577 = vunpack.c.l.b16 %v529
        %v578 = vpack.c.b16 %v563, %v562
        %v579 = vpack.c.b16 %v565, %v564
        %v580 = vpack.c.b16 %v567, %v566
        %v581 = vpack.c.b16 %v569, %v568
        %v582 = vpack.c.b16 %v571, %v570
        %v583 = vpack.c.b16 %v573, %v572
        %v584 = vpack.c.b16 %v575, %v574
        %v585 = vpack.c.b16 %v577, %v576
        %v610 = vunpack.c.l.b16 %v530
        %v611 = vunpack.c.h.b16 %v530
        %v612 = vunpack.c.l.b16 %v531
        %v613 = vunpack.c.h.b16 %v531
        %v614 = vunpack.c.l.b16 %v532
        %v615 = vunpack.c.h.b16 %v532
        %v616 = vunpack.c.l.b16 %v533
        %v617 = vunpack.c.h.b16 %v533
        %v618 = vunpack.c.l.b16 %v534
        %v619 = vunpack.c.h.b16 %v534
        %v620 = vunpack.c.l.b16 %v535
        %v621 = vunpack.c.h.b16 %v535
        %v622 = vunpack.c.l.b16 %v536
        %v623 = vunpack.c.h.b16 %v536
        %v624 = vunpack.c.l.b16 %v537
        %v625 = vunpack.c.h.b16 %v537
        %v626 = vunpack.c.l.b16 %v538
        %v627 = vunpack.c.h.b16 %v538
        %v628 = vunpack.c.l.b16 %v539
        %v629 = vunpack.c.h.b16 %v539
        %v630 = vunpack.c.l.b16 %v540
        %v631 = vunpack.c.h.b16 %v540
        %v632 = vunpack.c.l.b16 %v541
        %v633 = vunpack.c.h.b16 %v541
        %v634 = vunpack.c.l.b16 %v542
        %v635 = vunpack.c.h.b16 %v542
        %v636 = vunpack.c.l.b16 %v543
        %v637 = vunpack.c.h.b16 %v543
        %v638 = vunpack.c.l.b16 %v544
        %v639 = vunpack.c.h.b16 %v544
        %v640 = vunpack.c.l.b16 %v545
        %v641 = vunpack.c.h.b16 %v545
        %v642 = vpack.c.b16 %v612, %v610
        %v643 = vpack.c.b16 %v613, %v611
        %v644 = vpack.c.b16 %v616, %v614
        %v645 = vpack.c.b16 %v617, %v615
        %v646 = vpack.c.b16 %v620, %v618
        %v647 = vpack.c.b16 %v621, %v619
        %v648 = vpack.c.b16 %v624, %v622
        %v649 = vpack.c.b16 %v625, %v623
        %v650 = vpack.c.b16 %v628, %v626
        %v651 = vpack.c.b16 %v629, %v627
        %v652 = vpack.c.b16 %v632, %v630
        %v653 = vpack.c.b16 %v633, %v631
        %v654 = vpack.c.b16 %v636, %v634
        %v655 = vpack.c.b16 %v637, %v635
        %v656 = vpack.c.b16 %v640, %v638
        %v657 = vpack.c.b16 %v641, %v639
        %674 = vmatprep.subr.bf16.mxu0 %v643
        %675 = vmatpush1.bf16.msra.mxu0 %v642
        %676 = vmatprep.subr.bf16.mxu0 %v645
        %677 = vmatpush1.bf16.msra.mxu0 %v644
        %678 = vmatprep.subr.bf16.mxu0 %v647
        %679 = vmatpush1.bf16.msra.mxu0 %v646
        %680 = vmatprep.subr.bf16.mxu0 %v649
        %681 = vmatpush1.bf16.msra.mxu0 %v648
        %682 = vmatprep.subr.bf16.mxu0 %v651
        %683 = vmatpush1.bf16.msra.mxu0 %v650
        %684 = vmatprep.subr.bf16.mxu0 %v653
        %685 = vmatpush1.bf16.msra.mxu0 %v652
        %686 = vmatprep.subr.bf16.mxu0 %v655
        %687 = vmatpush1.bf16.msra.mxu0 %v654
        %688 = vmatprep.subr.bf16.mxu0 %v657
        %689 = vmatpush1.bf16.msra.mxu0 %v656
        %690 = vmatprep.subr.bf16.mxu0 0
        %691 = vmatpush1.bf16.msra.mxu0 0
        %692 = vmatprep.subr.bf16.mxu0 0
        %693 = vmatpush1.bf16.msra.mxu0 0
        %694 = vmatprep.subr.bf16.mxu0 0
        %695 = vmatpush1.bf16.msra.mxu0 0
        %696 = vmatprep.subr.bf16.mxu0 0
        %697 = vmatpush1.bf16.msra.mxu0 0
        %698 = vmatprep.subr.bf16.mxu0 0
        %699 = vmatpush1.bf16.msra.mxu0 0
        %700 = vmatprep.subr.bf16.mxu0 0
        %701 = vmatpush1.bf16.msra.mxu0 0
        %702 = vmatprep.subr.bf16.mxu0 0
        %703 = vmatpush1.bf16.msra.mxu0 0
        %704 = vmatprep.subr.bf16.mxu0 0
        %705 = vmatpush1.bf16.msra.mxu0 0
        %706 = vmatprep.mubr.bf16.mxu0 0
        %707 = vmatmul.mubr.bf16.gmra.mrb[0].mxu0 %v578
        %v708 = vpop.f32.mrb[0].mxu0
        %v709 = vadd.f32 0.0, %v708
        %v710 = vpop.f32.mrb[0].mxu0
        %v711 = vadd.f32 0.0, %v710
        %v712 = vpop.f32.mrb[0].mxu0
        %v713 = vadd.f32 0.0, %v712
        %v714 = vpop.f32.mrb[0].mxu0
        %v715 = vadd.f32 0.0, %v714
        %716 = vmatprep.mubr.bf16.mxu0 0
        %717 = vmatmul.mubr.bf16.gmra.mrb[0].mxu0 %v579
        %v718 = vpop.f32.mrb[0].mxu0
        %v719 = vadd.f32 0.0, %v718
        %v720 = vpop.f32.mrb[0].mxu0
        %v721 = vadd.f32 0.0, %v720
        %v722 = vpop.f32.mrb[0].mxu0
        %v723 = vadd.f32 0.0, %v722
        %v724 = vpop.f32.mrb[0].mxu0
        %v725 = vadd.f32 0.0, %v724
        %726 = vmatprep.mubr.bf16.mxu0 0
        %727 = vmatmul.mubr.bf16.gmra.mrb[0].mxu0 %v580
        %v728 = vpop.f32.mrb[0].mxu0
        %v729 = vadd.f32 0.0, %v728
        %v730 = vpop.f32.mrb[0].mxu0
        %v731 = vadd.f32 0.0, %v730
        %v732 = vpop.f32.mrb[0].mxu0
        %v733 = vadd.f32 0.0, %v732
        %v734 = vpop.f32.mrb[0].mxu0
        %v735 = vadd.f32 0.0, %v734
        %736 = vmatprep.mubr.bf16.mxu0 0
        %737 = vmatmul.mubr.bf16.gmra.mrb[0].mxu0 %v581
        %v738 = vpop.f32.mrb[0].mxu0
        %v739 = vadd.f32 0.0, %v738
        %v740 = vpop.f32.mrb[0].mxu0
        %v741 = vadd.f32 0.0, %v740
        %v742 = vpop.f32.mrb[0].mxu0
        %v743 = vadd.f32 0.0, %v742
        %v744 = vpop.f32.mrb[0].mxu0
        %v745 = vadd.f32 0.0, %v744
        %746 = vmatprep.mubr.bf16.mxu0 0
        %747 = vmatmul.mubr.bf16.gmra.mrb[0].mxu0 %v582
        %v748 = vpop.f32.mrb[0].mxu0
        %v749 = vadd.f32 0.0, %v748
        %v750 = vpop.f32.mrb[0].mxu0
        %v751 = vadd.f32 0.0, %v750
        %v752 = vpop.f32.mrb[0].mxu0
        %v753 = vadd.f32 0.0, %v752
        %v754 = vpop.f32.mrb[0].mxu0
        %v755 = vadd.f32 0.0, %v754
        %756 = vmatprep.mubr.bf16.mxu0 0
        %757 = vmatmul.mubr.bf16.gmra.mrb[0].mxu0 %v583
        %v758 = vpop.f32.mrb[0].mxu0
        %v759 = vadd.f32 0.0, %v758
        %v760 = vpop.f32.mrb[0].mxu0
        %v761 = vadd.f32 0.0, %v760
        %v762 = vpop.f32.mrb[0].mxu0
        %v763 = vadd.f32 0.0, %v762
        %v764 = vpop.f32.mrb[0].mxu0
        %v765 = vadd.f32 0.0, %v764
        %766 = vmatprep.mubr.bf16.mxu0 0
        %767 = vmatmul.mubr.bf16.gmra.mrb[0].mxu0 %v584
        %v768 = vpop.f32.mrb[0].mxu0
        %v769 = vadd.f32 0.0, %v768
        %v770 = vpop.f32.mrb[0].mxu0
        %v771 = vadd.f32 0.0, %v770
        %v772 = vpop.f32.mrb[0].mxu0
        %v773 = vadd.f32 0.0, %v772
        %v774 = vpop.f32.mrb[0].mxu0
        %v775 = vadd.f32 0.0, %v774
        %776 = vmatprep.mubr.bf16.mxu0 0
        %777 = vmatmul.mubr.bf16.gmra.mrb[0].mxu0 %v585
        %v778 = vpop.f32.mrb[0].mxu0
        %v779 = vadd.f32 0.0, %v778
        %v780 = vpop.f32.mrb[0].mxu0
        %v781 = vadd.f32 0.0, %v780
        %v782 = vpop.f32.mrb[0].mxu0
        %v783 = vadd.f32 0.0, %v782
        %v784 = vpop.f32.mrb[0].mxu0
        %v785 = vadd.f32 0.0, %v784
        %786 = vdwg.mxu0
        %v787 = vld [vmem:[%s502] sm:$0x3]
        %v789 = vlaneseq
        %v790 = vshrl.u32 %v789, 7
        %v791 = vsub.s32 0, %v790
        %v792 = vrot.slane %v787, %v791
        %v793 = vlaneseq
        %v794 = vshrl.u32 %v793, 7
        %v795 = vsub.s32 1, %v794
        %v796 = vrot.slane %v787, %v795
        %v799 = vmul.f32 %v709, %v792
        %v800 = vmul.f32 %v711, %v796
        %v801 = vmul.f32 %v713, %v792
        %v802 = vmul.f32 %v715, %v796
        %v803 = vmul.f32 %v719, %v792
        %v804 = vmul.f32 %v721, %v796
        %v805 = vmul.f32 %v723, %v792
        %v806 = vmul.f32 %v725, %v796
        %v807 = vmul.f32 %v729, %v792
        %v808 = vmul.f32 %v731, %v796
        %v809 = vmul.f32 %v733, %v792
        %v810 = vmul.f32 %v735, %v796
        %v811 = vmul.f32 %v739, %v792
        %v812 = vmul.f32 %v741, %v796
        %v813 = vmul.f32 %v743, %v792
        %v814 = vmul.f32 %v745, %v796
        %v815 = vmul.f32 %v749, %v792
        %v816 = vmul.f32 %v751, %v796
        %v817 = vmul.f32 %v753, %v792
        %v818 = vmul.f32 %v755, %v796
        %v819 = vmul.f32 %v759, %v792
        %v820 = vmul.f32 %v761, %v796
        %v821 = vmul.f32 %v763, %v792
        %v822 = vmul.f32 %v765, %v796
        %v823 = vmul.f32 %v769, %v792
        %v824 = vmul.f32 %v771, %v796
        %v825 = vmul.f32 %v773, %v792
        %v826 = vmul.f32 %v775, %v796
        %v827 = vmul.f32 %v779, %v792
        %v828 = vmul.f32 %v781, %v796
        %v829 = vmul.f32 %v783, %v792
        %v830 = vmul.f32 %v785, %v796
        %v831 = vld [vmem:[%s507] sm:$0x3]
        %v833 = vlaneseq
        %v834 = vshrl.u32 %v833, 7
        %v835 = vsub.s32 0, %v834
        %v836 = vrot.slane %v831, %v835
        %v837 = vlaneseq
        %v838 = vshrl.u32 %v837, 7
        %v839 = vsub.s32 1, %v838
        %v840 = vrot.slane %v831, %v839
        %v843 = vadd.f32 %v799, %v836
        %v844 = vadd.f32 %v800, %v840
        %v845 = vadd.f32 %v801, %v836
        %v846 = vadd.f32 %v802, %v840
        %v847 = vadd.f32 %v803, %v836
        %v848 = vadd.f32 %v804, %v840
        %v849 = vadd.f32 %v805, %v836
        %v850 = vadd.f32 %v806, %v840
        %v851 = vadd.f32 %v807, %v836
        %v852 = vadd.f32 %v808, %v840
        %v853 = vadd.f32 %v809, %v836
        %v854 = vadd.f32 %v810, %v840
        %v855 = vadd.f32 %v811, %v836
        %v856 = vadd.f32 %v812, %v840
        %v857 = vadd.f32 %v813, %v836
        %v858 = vadd.f32 %v814, %v840
        %v859 = vadd.f32 %v815, %v836
        %v860 = vadd.f32 %v816, %v840
        %v861 = vadd.f32 %v817, %v836
        %v862 = vadd.f32 %v818, %v840
        %v863 = vadd.f32 %v819, %v836
        %v864 = vadd.f32 %v820, %v840
        %v865 = vadd.f32 %v821, %v836
        %v866 = vadd.f32 %v822, %v840
        %v867 = vadd.f32 %v823, %v836
        %v868 = vadd.f32 %v824, %v840
        %v869 = vadd.f32 %v825, %v836
        %v870 = vadd.f32 %v826, %v840
        %v871 = vadd.f32 %v827, %v836
        %v872 = vadd.f32 %v828, %v840
        %v873 = vadd.f32 %v829, %v836
        %v874 = vadd.f32 %v830, %v840
        %v875 = vld [vmem:[%s451] sm:$0xff]
        %v876 = vld [vmem:[%s451 + $0x8] sm:$0xff]
        %v877 = vld [vmem:[%s451 + $0x10] sm:$0xff]
        %v878 = vld [vmem:[%s451 + $0x18] sm:$0xff]
        %v879 = vld [vmem:[%s451 + $0x20] sm:$0xff]
        %v880 = vld [vmem:[%s451 + $0x28] sm:$0xff]
        %v881 = vld [vmem:[%s451 + $0x30] sm:$0xff]
        %v882 = vld [vmem:[%s451 + $0x38] sm:$0xff]
        %v883 = vld [vmem:[%s451 + $0x40] sm:$0xff]
        %v884 = vld [vmem:[%s451 + $0x48] sm:$0xff]
        %v885 = vld [vmem:[%s451 + $0x50] sm:$0xff]
        %v886 = vld [vmem:[%s451 + $0x58] sm:$0xff]
        %v887 = vld [vmem:[%s451 + $0x60] sm:$0xff]
        %v888 = vld [vmem:[%s451 + $0x68] sm:$0xff]
        %v889 = vld [vmem:[%s451 + $0x70] sm:$0xff]
        %v890 = vld [vmem:[%s451 + $0x78] sm:$0xff]
        %v891 = vunpack.c.l.bf16 %v875
        %v892 = vunpack.c.h.bf16 %v875
        %v893 = vunpack.c.l.bf16 %v876
        %v894 = vunpack.c.h.bf16 %v876
        %v895 = vunpack.c.l.bf16 %v877
        %v896 = vunpack.c.h.bf16 %v877
        %v897 = vunpack.c.l.bf16 %v878
        %v898 = vunpack.c.h.bf16 %v878
        %v899 = vunpack.c.l.bf16 %v879
        %v900 = vunpack.c.h.bf16 %v879
        %v901 = vunpack.c.l.bf16 %v880
        %v902 = vunpack.c.h.bf16 %v880
        %v903 = vunpack.c.l.bf16 %v881
        %v904 = vunpack.c.h.bf16 %v881
        %v905 = vunpack.c.l.bf16 %v882
        %v906 = vunpack.c.h.bf16 %v882
        %v907 = vunpack.c.l.bf16 %v883
        %v908 = vunpack.c.h.bf16 %v883
        %v909 = vunpack.c.l.bf16 %v884
        %v910 = vunpack.c.h.bf16 %v884
        %v911 = vunpack.c.l.bf16 %v885
        %v912 = vunpack.c.h.bf16 %v885
        %v913 = vunpack.c.l.bf16 %v886
        %v914 = vunpack.c.h.bf16 %v886
        %v915 = vunpack.c.l.bf16 %v887
        %v916 = vunpack.c.h.bf16 %v887
        %v917 = vunpack.c.l.bf16 %v888
        %v918 = vunpack.c.h.bf16 %v888
        %v919 = vunpack.c.l.bf16 %v889
        %v920 = vunpack.c.h.bf16 %v889
        %v921 = vunpack.c.l.bf16 %v890
        %v922 = vunpack.c.h.bf16 %v890
        %v923 = vadd.f32 %v843, %v891
        %v924 = vadd.f32 %v844, %v892
        %v925 = vadd.f32 %v845, %v893
        %v926 = vadd.f32 %v846, %v894
        %v927 = vadd.f32 %v847, %v895
        %v928 = vadd.f32 %v848, %v896
        %v929 = vadd.f32 %v849, %v897
        %v930 = vadd.f32 %v850, %v898
        %v931 = vadd.f32 %v851, %v899
        %v932 = vadd.f32 %v852, %v900
        %v933 = vadd.f32 %v853, %v901
        %v934 = vadd.f32 %v854, %v902
        %v935 = vadd.f32 %v855, %v903
        %v936 = vadd.f32 %v856, %v904
        %v937 = vadd.f32 %v857, %v905
        %v938 = vadd.f32 %v858, %v906
        %v939 = vadd.f32 %v859, %v907
        %v940 = vadd.f32 %v860, %v908
        %v941 = vadd.f32 %v861, %v909
        %v942 = vadd.f32 %v862, %v910
        %v943 = vadd.f32 %v863, %v911
        %v944 = vadd.f32 %v864, %v912
        %v945 = vadd.f32 %v865, %v913
        %v946 = vadd.f32 %v866, %v914
        %v947 = vadd.f32 %v867, %v915
        %v948 = vadd.f32 %v868, %v916
        %v949 = vadd.f32 %v869, %v917
        %v950 = vadd.f32 %v870, %v918
        %v951 = vadd.f32 %v871, %v919
        %v952 = vadd.f32 %v872, %v920
        %v953 = vadd.f32 %v873, %v921
        %v954 = vadd.f32 %v874, %v922
        %v955 = vmax.f32 %v923, 0.0
        %v956 = vmax.f32 %v924, 0.0
        %v957 = vmax.f32 %v925, 0.0
        %v958 = vmax.f32 %v926, 0.0
        %v959 = vmax.f32 %v927, 0.0
        %v960 = vmax.f32 %v928, 0.0
        %v961 = vmax.f32 %v929, 0.0
        %v962 = vmax.f32 %v930, 0.0
        %v963 = vmax.f32 %v931, 0.0
        %v964 = vmax.f32 %v932, 0.0
        %v965 = vmax.f32 %v933, 0.0
        %v966 = vmax.f32 %v934, 0.0
        %v967 = vmax.f32 %v935, 0.0
        %v968 = vmax.f32 %v936, 0.0
        %v969 = vmax.f32 %v937, 0.0
        %v970 = vmax.f32 %v938, 0.0
        %v971 = vmax.f32 %v939, 0.0
        %v972 = vmax.f32 %v940, 0.0
        %v973 = vmax.f32 %v941, 0.0
        %v974 = vmax.f32 %v942, 0.0
        %v975 = vmax.f32 %v943, 0.0
        %v976 = vmax.f32 %v944, 0.0
        %v977 = vmax.f32 %v945, 0.0
        %v978 = vmax.f32 %v946, 0.0
        %v979 = vmax.f32 %v947, 0.0
        %v980 = vmax.f32 %v948, 0.0
        %v981 = vmax.f32 %v949, 0.0
        %v982 = vmax.f32 %v950, 0.0
        %v983 = vmax.f32 %v951, 0.0
        %v984 = vmax.f32 %v952, 0.0
        %v985 = vmax.f32 %v953, 0.0
        %v986 = vmax.f32 %v954, 0.0
        %987 = vst [vmem:[%s491] sm:$0xff] %v955
        %988 = vst [vmem:[%s491 + $0x8] sm:$0xff] %v956
        %989 = vst [vmem:[%s491 + $0x10] sm:$0xff] %v957
        %990 = vst [vmem:[%s491 + $0x18] sm:$0xff] %v958
        %991 = vst [vmem:[%s491 + $0x20] sm:$0xff] %v959
        %992 = vst [vmem:[%s491 + $0x28] sm:$0xff] %v960
        %993 = vst [vmem:[%s491 + $0x30] sm:$0xff] %v961
        %994 = vst [vmem:[%s491 + $0x38] sm:$0xff] %v962
        %995 = vst [vmem:[%s491 + $0x40] sm:$0xff] %v963
        %996 = vst [vmem:[%s491 + $0x48] sm:$0xff] %v964
        %997 = vst [vmem:[%s491 + $0x50] sm:$0xff] %v965
        %998 = vst [vmem:[%s491 + $0x58] sm:$0xff] %v966
        %999 = vst [vmem:[%s491 + $0x60] sm:$0xff] %v967
        %1000 = vst [vmem:[%s491 + $0x68] sm:$0xff] %v968
        %1001 = vst [vmem:[%s491 + $0x70] sm:$0xff] %v969
        %1002 = vst [vmem:[%s491 + $0x78] sm:$0xff] %v970
        %1003 = vst [vmem:[%s491 + $0x80] sm:$0xff] %v971
        %1004 = vst [vmem:[%s491 + $0x88] sm:$0xff] %v972
        %1005 = vst [vmem:[%s491 + $0x90] sm:$0xff] %v973
        %1006 = vst [vmem:[%s491 + $0x98] sm:$0xff] %v974
        %1007 = vst [vmem:[%s491 + $0xa0] sm:$0xff] %v975
        %1008 = vst [vmem:[%s491 + $0xa8] sm:$0xff] %v976
        %1009 = vst [vmem:[%s491 + $0xb0] sm:$0xff] %v977
        %1010 = vst [vmem:[%s491 + $0xb8] sm:$0xff] %v978
        %1011 = vst [vmem:[%s491 + $0xc0] sm:$0xff] %v979
        %1012 = vst [vmem:[%s491 + $0xc8] sm:$0xff] %v980
        %1013 = vst [vmem:[%s491 + $0xd0] sm:$0xff] %v981
        %1014 = vst [vmem:[%s491 + $0xd8] sm:$0xff] %v982
        %1015 = vst [vmem:[%s491 + $0xe0] sm:$0xff] %v983
        %1016 = vst [vmem:[%s491 + $0xe8] sm:$0xff] %v984
        %1017 = vst [vmem:[%s491 + $0xf0] sm:$0xff] %v985
        %1018 = vst [vmem:[%s491 + $0xf8] sm:$0xff] %v986
        %s1019 = sand.u32 %s170, 1
        %s1020 = sand.u32 %s170, 1
        %s1021 = smul.addr %s1020, 256
        %s1022 = scalar_lea.vmem [#allocation4], %s1021
        // Predicated region
        $region117: #{stage3_forward.10} parent=107 // pred_check
          %p1023 = pneg %p180
        $region118: #{stage3_forward.10} parent=107 // pred_check_branch
          %1025 = sbr.rel (%p1023) target = $region120
        $region119: #{stage3_forward.10} parent=107 // pred_region
          %s1026 = smul.u32 16, %s20
          %s1027 = smul.u32 2, %s21
          %s1028 = smul.addr %s1026, 4
          %s1029 = sadd.s32 %s1027, %s1028
          %s1030 = smul.addr %s1029, 8
          %s1031 = scalar_lea.vmem %s5, %s1030
          // Predicated region
          $region121: #{stage3_forward.10} parent=119 // pred_check
            _
          $region122: #{stage3_forward.10} parent=119 // pred_check_branch
            %1033 = sbr.rel (0) target = $region124
          $region123: #{stage3_forward.10} parent=119 // pred_region
            // Predicated region
            $region125: #{stage3_forward.10} parent=123 // pred_check
              _
            $region126: #{stage3_forward.10} parent=123 // pred_check_branch
              %1035 = sbr.rel (0) target = $region128
            $region127: #{stage3_forward.10} parent=123 // pred_region
              loop: start=0, step=1, limit=1
              $region129: #{stage3_forward.10} parent=127 // loop_pre_header
                _
              $region130: #{stage3_forward.10} parent=127 // loop_header
                %s1037 = sphi 0, %s1041
                %p1038 = scmp.ge.s32.totalorder %s1037, 1
                %s1042 = sphi %s1022, %s1022
                %s1043 = sphi %s1031, %s1031
              $region131: #{stage3_forward.10} parent=127 // loop_header_branch
                %1040 = sbr.rel (%p1038) target = $region135
              $region132: #{stage3_forward.10} parent=127 // loop_body
                %v1044 = vld [vmem:[%s1042] sm:$0xff]
                %1045 = vst [vmem:[%s1043] sm:$0xff] %v1044
                %v1046 = vld [vmem:[%s1042 + $0x8] sm:$0xff]
                %1047 = vst [vmem:[%s1043 + $0x8] sm:$0xff] %v1046
                %v1048 = vld [vmem:[%s1042 + $0x10] sm:$0xff]
                %1049 = vst [vmem:[%s1043 + $0x20] sm:$0xff] %v1048
                %v1050 = vld [vmem:[%s1042 + $0x18] sm:$0xff]
                %1051 = vst [vmem:[%s1043 + $0x28] sm:$0xff] %v1050
                %v1052 = vld [vmem:[%s1042 + $0x20] sm:$0xff]
                %1053 = vst [vmem:[%s1043 + $0x40] sm:$0xff] %v1052
                %v1054 = vld [vmem:[%s1042 + $0x28] sm:$0xff]
                %1055 = vst [vmem:[%s1043 + $0x48] sm:$0xff] %v1054
                %v1056 = vld [vmem:[%s1042 + $0x30] sm:$0xff]
                %1057 = vst [vmem:[%s1043 + $0x60] sm:$0xff] %v1056
                %v1058 = vld [vmem:[%s1042 + $0x38] sm:$0xff]
                %1059 = vst [vmem:[%s1043 + $0x68] sm:$0xff] %v1058
                %v1060 = vld [vmem:[%s1042 + $0x40] sm:$0xff]
                %1061 = vst [vmem:[%s1043 + $0x80] sm:$0xff] %v1060
                %v1062 = vld [vmem:[%s1042 + $0x48] sm:$0xff]
                %1063 = vst [vmem:[%s1043 + $0x88] sm:$0xff] %v1062
                %v1064 = vld [vmem:[%s1042 + $0x50] sm:$0xff]
                %1065 = vst [vmem:[%s1043 + $0xa0] sm:$0xff] %v1064
                %v1066 = vld [vmem:[%s1042 + $0x58] sm:$0xff]
                %1067 = vst [vmem:[%s1043 + $0xa8] sm:$0xff] %v1066
                %v1068 = vld [vmem:[%s1042 + $0x60] sm:$0xff]
                %1069 = vst [vmem:[%s1043 + $0xc0] sm:$0xff] %v1068
                %v1070 = vld [vmem:[%s1042 + $0x68] sm:$0xff]
                %1071 = vst [vmem:[%s1043 + $0xc8] sm:$0xff] %v1070
                %v1072 = vld [vmem:[%s1042 + $0x70] sm:$0xff]
                %1073 = vst [vmem:[%s1043 + $0xe0] sm:$0xff] %v1072
                %v1074 = vld [vmem:[%s1042 + $0x78] sm:$0xff]
                %1075 = vst [vmem:[%s1043 + $0xe8] sm:$0xff] %v1074
                %v1076 = vld [vmem:[%s1042 + $0x80] sm:$0xff]
                %1077 = vst [vmem:[%s1043 + $0x100] sm:$0xff] %v1076
                %v1078 = vld [vmem:[%s1042 + $0x88] sm:$0xff]
                %1079 = vst [vmem:[%s1043 + $0x108] sm:$0xff] %v1078
                %v1080 = vld [vmem:[%s1042 + $0x90] sm:$0xff]
                %1081 = vst [vmem:[%s1043 + $0x120] sm:$0xff] %v1080
                %v1082 = vld [vmem:[%s1042 + $0x98] sm:$0xff]
                %1083 = vst [vmem:[%s1043 + $0x128] sm:$0xff] %v1082
                %v1084 = vld [vmem:[%s1042 + $0xa0] sm:$0xff]
                %1085 = vst [vmem:[%s1043 + $0x140] sm:$0xff] %v1084
                %v1086 = vld [vmem:[%s1042 + $0xa8] sm:$0xff]
                %1087 = vst [vmem:[%s1043 + $0x148] sm:$0xff] %v1086
                %v1088 = vld [vmem:[%s1042 + $0xb0] sm:$0xff]
                %1089 = vst [vmem:[%s1043 + $0x160] sm:$0xff] %v1088
                %v1090 = vld [vmem:[%s1042 + $0xb8] sm:$0xff]
                %1091 = vst [vmem:[%s1043 + $0x168] sm:$0xff] %v1090
                %v1092 = vld [vmem:[%s1042 + $0xc0] sm:$0xff]
                %1093 = vst [vmem:[%s1043 + $0x180] sm:$0xff] %v1092
                %v1094 = vld [vmem:[%s1042 + $0xc8] sm:$0xff]
                %1095 = vst [vmem:[%s1043 + $0x188] sm:$0xff] %v1094
                %v1096 = vld [vmem:[%s1042 + $0xd0] sm:$0xff]
                %1097 = vst [vmem:[%s1043 + $0x1a0] sm:$0xff] %v1096
                %v1098 = vld [vmem:[%s1042 + $0xd8] sm:$0xff]
                %1099 = vst [vmem:[%s1043 + $0x1a8] sm:$0xff] %v1098
                %v1100 = vld [vmem:[%s1042 + $0xe0] sm:$0xff]
                %1101 = vst [vmem:[%s1043 + $0x1c0] sm:$0xff] %v1100
                %v1102 = vld [vmem:[%s1042 + $0xe8] sm:$0xff]
                %1103 = vst [vmem:[%s1043 + $0x1c8] sm:$0xff] %v1102
                %v1104 = vld [vmem:[%s1042 + $0xf0] sm:$0xff]
                %1105 = vst [vmem:[%s1043 + $0x1e0] sm:$0xff] %v1104
                %v1106 = vld [vmem:[%s1042 + $0xf8] sm:$0xff]
                %1107 = vst [vmem:[%s1043 + $0x1e8] sm:$0xff] %v1106
              $region133: #{stage3_forward.10} parent=127 // loop_footer
                %s1041 = sadd.s32 1, %s1037
              $region134: #{stage3_forward.10} parent=127 // loop_footer_branch
                %1036 = sbr.rel target = $region130
              $region135: #{stage3_forward.10} parent=127 // loop_exit
                _
            $region128: #{stage3_forward.10} parent=123 // pred_fallthru
              _
            // Predicated region
            $region136: #{stage3_forward.10} parent=123 // pred_check
              _
            $region137: #{stage3_forward.10} parent=123 // pred_check_branch
              %1109 = sbr.rel target = $region139
            $region138: #{stage3_forward.10} parent=123 // pred_region
              _
            $region139: #{stage3_forward.10} parent=123 // pred_fallthru
              _
          $region124: #{stage3_forward.10} parent=119 // pred_fallthru
            _
          %1110 = vnop
        $region120: #{stage3_forward.10} parent=107 // pred_fallthru
          _
      $region108: #{stage3_forward.10} parent=5 // pred_fallthru
        _
      %p1111 = scmp.le.s32.totalorder 2, %s11
      // Predicated region
      $region140: #{stage3_forward.10} parent=5 // pred_check
        %p1112 = pneg %p1111
      $region141: #{stage3_forward.10} parent=5 // pred_check_branch
        %1114 = sbr.rel (%p1112) target = $region143
      $region142: #{stage3_forward.10} parent=5 // pred_region
        %s1115 = ssub.s32 %s11, 2
        // Predicated region
        $region144: #{stage3_forward.10} parent=142 // pred_check
          %p1116 = pneg %p186
        $region145: #{stage3_forward.10} parent=142 // pred_check_branch
          %1118 = sbr.rel (%p1116) target = $region147
        $region146: #{stage3_forward.10} parent=142 // pred_region
          %s1119 = sand.u32 %s171, 1
          %s1120 = sand.u32 %s171, 1
          %s1121 = smul.addr %s1120, 256
          %s1122 = scalar_lea.vmem [#allocation4], %s1121
        $region147: #{stage3_forward.10} parent=142 // pred_fallthru
          _
      $region143: #{stage3_forward.10} parent=5 // pred_fallthru
        _
    $region6: #{stage3_forward.10} parent=1 // loop_footer
      %s15 = sadd.s32 1, %s11
    $region7: #{stage3_forward.10} parent=1 // loop_footer_branch
      %10 = sbr.rel target = $region3
    $region8: #{stage3_forward.10} parent=1 // loop_exit
      _

// kernel: stage3_forward.9
$region0: #{stage3_forward.9}
  #allocation0 [shape = 'u32[]', space=smem, size = 0x4, offset = 0x4, fixed_abs, tag = 'smem constant byte address 0x4 - core index']
  #allocation1 [shape = 'u32[144,128]{1,0:T(1,128)}', space=vmem, size = 0x12000, scoped, tag = 'internal scratch']
  %s0 = inlined_call_operand.vmem [shape: bf16[2,10,10,128], index: 0, kind: input, shape index: {}]
  %s1 = inlined_call_operand.vmem [shape: bf16[9,128,128], index: 1, kind: input, shape index: {}]
  %s2 = inlined_call_operand.vmem [shape: f32[1,128], index: 2, kind: input, shape index: {}]
  %s3 = inlined_call_operand.vmem [shape: f32[1,128], index: 3, kind: input, shape index: {}]
  %s4 = inlined_call_operand.vmem [shape: bf16[128,128], index: 4, kind: output, shape index: {}]
  %s5 = sld [smem:[#allocation0]]
  $region49: #{stage3_forward.9} parent=0
    _
  %s7 = ssub.s32 1, %s5
  %s8 = scalar_select 0, %s7, %s5
  loop: start=0, step=1, limit=4
  $region2: #{stage3_forward.9} parent=0 // loop_pre_header
    _
  $region3: #{stage3_forward.9} parent=0 // loop_header
    %s10 = sphi 0, %s14
    %p11 = scmp.ge.s32.totalorder %s10, 4
    %s20 = sphi 0, %s22
    %s23 = sphi 0, %s20
    %s24 = sphi 0, %s23
    %s40 = sphi 0, %s24
    %s44 = sphi 0, %s44
    %s46 = sphi 0, %s44
    %s47 = sphi 0, %s46
    %s61 = sphi 0, %s47
    %s65 = sphi 0, %s65
    %s67 = sphi 0, %s65
    %s68 = sphi 0, %s67
    %s82 = sphi 0, %s68
    %s86 = sphi 0, %s86
    %s88 = sphi 0, %s86
    %s89 = sphi 0, %s88
    %s103 = sphi 0, %s89
    %s109 = sphi 0, %s111
    %s112 = sphi 0, %s109
    %s113 = sphi 0, %s112
    %s129 = sphi 0, %s113
  $region4: #{stage3_forward.9} parent=0 // loop_header_branch
    %13 = sbr.rel (%p11) target = $region8
  $region5: #{stage3_forward.9} parent=0 // loop_body
    %s15 = ssub.s32 %s10, 1
    %s16 = ssub.s32 %s10, 2
    %s17 = sadd.s32 %s10, 1
    %s18 = ssub.s32 %s10, %s17
    %p19 = scmp.eq.s32.totalorder %s18, 0
    %s21 = sadd.s32 %s20, 1
    %s22 = scalar_select %p19, %s20, %s21
    %p25 = pneg %p19
    %p26 = scmp.eq.s32.totalorder %s10, 1
    %p27 = por %p25, %p26
    %p28 = scmp.ne.s32.totalorder %s20, %s23
    %p29 = scmp.eq.s32.totalorder %s10, 0
    %p30 = por %p28, %p29
    %p31 = scmp.ne.s32.totalorder %s20, %s23
    %p32 = scmp.eq.s32.totalorder %s15, 1
    %p33 = por %p31, %p32
    %p34 = scmp.ne.s32.totalorder %s23, %s24
    %p35 = scmp.eq.s32.totalorder %s15, 0
    %p36 = por %p34, %p35
    %p37 = scmp.ne.s32.totalorder %s23, %s24
    %p38 = scmp.eq.s32.totalorder %s16, 1
    %p39 = por %p37, %p38
    %p41 = scmp.ne.s32.totalorder %s24, %s40
    %p42 = scmp.eq.s32.totalorder %s16, 0
    %p43 = por %p41, %p42
    %s45 = sadd.s32 %s44, 1
    %p48 = scmp.eq.s32.totalorder %s10, 1
    %p49 = scmp.ne.s32.totalorder %s44, %s46
    %p50 = scmp.eq.s32.totalorder %s10, 0
    %p51 = por %p49, %p50
    %p52 = scmp.ne.s32.totalorder %s44, %s46
    %p53 = scmp.eq.s32.totalorder %s15, 1
    %p54 = por %p52, %p53
    %p55 = scmp.ne.s32.totalorder %s46, %s47
    %p56 = scmp.eq.s32.totalorder %s15, 0
    %p57 = por %p55, %p56
    %p58 = scmp.ne.s32.totalorder %s46, %s47
    %p59 = scmp.eq.s32.totalorder %s16, 1
    %p60 = por %p58, %p59
    %p62 = scmp.ne.s32.totalorder %s47, %s61
    %p63 = scmp.eq.s32.totalorder %s16, 0
    %p64 = por %p62, %p63
    %s66 = sadd.s32 %s65, 1
    %p69 = scmp.eq.s32.totalorder %s10, 1
    %p70 = scmp.ne.s32.totalorder %s65, %s67
    %p71 = scmp.eq.s32.totalorder %s10, 0
    %p72 = por %p70, %p71
    %p73 = scmp.ne.s32.totalorder %s65, %s67
    %p74 = scmp.eq.s32.totalorder %s15, 1
    %p75 = por %p73, %p74
    %p76 = scmp.ne.s32.totalorder %s67, %s68
    %p77 = scmp.eq.s32.totalorder %s15, 0
    %p78 = por %p76, %p77
    %p79 = scmp.ne.s32.totalorder %s67, %s68
    %p80 = scmp.eq.s32.totalorder %s16, 1
    %p81 = por %p79, %p80
    %p83 = scmp.ne.s32.totalorder %s68, %s82
    %p84 = scmp.eq.s32.totalorder %s16, 0
    %p85 = por %p83, %p84
    %s87 = sadd.s32 %s86, 1
    %p90 = scmp.eq.s32.totalorder %s10, 1
    %p91 = scmp.ne.s32.totalorder %s86, %s88
    %p92 = scmp.eq.s32.totalorder %s10, 0
    %p93 = por %p91, %p92
    %p94 = scmp.ne.s32.totalorder %s86, %s88
    %p95 = scmp.eq.s32.totalorder %s15, 1
    %p96 = por %p94, %p95
    %p97 = scmp.ne.s32.totalorder %s88, %s89
    %p98 = scmp.eq.s32.totalorder %s15, 0
    %p99 = por %p97, %p98
    %p100 = scmp.ne.s32.totalorder %s88, %s89
    %p101 = scmp.eq.s32.totalorder %s16, 1
    %p102 = por %p100, %p101
    %p104 = scmp.ne.s32.totalorder %s89, %s103
    %p105 = scmp.eq.s32.totalorder %s16, 0
    %p106 = por %p104, %p105
    %s107 = ssub.s32 %s10, %s17
    %p108 = scmp.eq.s32.totalorder %s107, 0
    %s110 = sadd.s32 %s109, 1
    %s111 = scalar_select %p108, %s109, %s110
    %p114 = pneg %p108
    %p115 = scmp.eq.s32.totalorder %s10, 1
    %p116 = por %p114, %p115
    %p117 = scmp.ne.s32.totalorder %s109, %s112
    %p118 = scmp.eq.s32.totalorder %s10, 0
    %p119 = por %p117, %p118
    %p120 = scmp.ne.s32.totalorder %s109, %s112
    %p121 = scmp.eq.s32.totalorder %s15, 1
    %p122 = por %p120, %p121
    %p123 = scmp.ne.s32.totalorder %s112, %s113
    %p124 = scmp.eq.s32.totalorder %s15, 0
    %p125 = por %p123, %p124
    %p126 = scmp.ne.s32.totalorder %s112, %s113
    %p127 = scmp.eq.s32.totalorder %s16, 1
    %p128 = por %p126, %p127
    %p130 = scmp.ne.s32.totalorder %s113, %s129
    %p131 = scmp.eq.s32.totalorder %s16, 0
    %p132 = por %p130, %p131
    %p133 = scmp.le.s32.totalorder 1, %s10
    %p134 = scmp.lt.s32.totalorder %s10, 3
    %p135 = pnand %p133, %p134
    %p136 = pneg %p135
    // Predicated region
    $region9: #{stage3_forward.9} parent=5 // pred_check
      _
    $region10: #{stage3_forward.9} parent=5 // pred_check_branch
      %138 = sbr.rel (%p135) target = $region12
    $region11: #{stage3_forward.9} parent=5 // pred_region
      %s139 = ssub.s32 %s10, 1
      // Predicated region
      $region13: #{stage3_forward.9} parent=11 // pred_check
        %p140 = pneg %p57
      $region14: #{stage3_forward.9} parent=11 // pred_check_branch
        %142 = sbr.rel (%p140) target = $region16
      $region15: #{stage3_forward.9} parent=11 // pred_region
        _
      $region16: #{stage3_forward.9} parent=11 // pred_fallthru
        _
      // Predicated region
      $region17: #{stage3_forward.9} parent=11 // pred_check
        %p143 = pneg %p78
      $region18: #{stage3_forward.9} parent=11 // pred_check_branch
        %145 = sbr.rel (%p143) target = $region20
      $region19: #{stage3_forward.9} parent=11 // pred_region
        _
      $region20: #{stage3_forward.9} parent=11 // pred_fallthru
        _
      // Predicated region
      $region21: #{stage3_forward.9} parent=11 // pred_check
        %p146 = pneg %p99
      $region22: #{stage3_forward.9} parent=11 // pred_check_branch
        %148 = sbr.rel (%p146) target = $region24
      $region23: #{stage3_forward.9} parent=11 // pred_region
        _
      $region24: #{stage3_forward.9} parent=11 // pred_fallthru
        _
    $region12: #{stage3_forward.9} parent=5 // pred_fallthru
      _
    %p149 = scmp.lt.s32.totalorder %s10, 2
    // Predicated region
    $region25: #{stage3_forward.9} parent=5 // pred_check
      %p150 = pneg %p149
    $region26: #{stage3_forward.9} parent=5 // pred_check_branch
      %152 = sbr.rel (%p150) target = $region28
    $region27: #{stage3_forward.9} parent=5 // pred_region
      // Predicated region
      $region29: #{stage3_forward.9} parent=27 // pred_check
        %p153 = pneg %p30
      $region30: #{stage3_forward.9} parent=27 // pred_check_branch
        %155 = sbr.rel (%p153) target = $region32
      $region31: #{stage3_forward.9} parent=27 // pred_region
        %p156 = scmp.lt.s32.totalorder %s10, 1
        %s157 = scalar_select %p156, %s10, 1
        %s158 = smul.addr %s157, 20
        %s159 = smul.addr %s158, 4
        %s160 = scalar_lea.vmem %s0, %s159
      $region32: #{stage3_forward.9} parent=27 // pred_fallthru
        _
    $region28: #{stage3_forward.9} parent=5 // pred_fallthru
      _
    %p161 = scmp.le.s32.totalorder 1, %s10
    %p162 = scmp.lt.s32.totalorder %s10, 3
    %p163 = pnand %p161, %p162
    %p164 = pneg %p163
    // Predicated region
    $region33: #{stage3_forward.9} parent=5 // pred_check
      _
    $region34: #{stage3_forward.9} parent=5 // pred_check_branch
      %166 = sbr.rel (%p163) target = $region36
    $region35: #{stage3_forward.9} parent=5 // pred_region
      %s167 = ssub.s32 %s10, 1
      %p168 = scmp.lt.s32.totalorder %s15, 1
      %s169 = scalar_select %p168, %s15, 1
      %s170 = smul.addr %s169, 20
      %s171 = smul.addr %s170, 4
      %s172 = scalar_lea.vmem %s0, %s171
      %p173 = pneg %p36
      %p174 = pneg %p33
      %p175 = pneg %p57
      %p176 = pneg %p54
      %p177 = pneg %p78
      %p178 = pneg %p75
      %p179 = pneg %p99
      %p180 = pneg %p96
      %p181 = pneg %p125
      %p182 = pneg %p122
      %s183 = smul.u32 8, %s15
      %p184 = scmp.lt.s32.totalorder %s183, 15
      %s185 = scalar_select %p184, %s183, 15
      %s186 = smul.addr %s185, 4
      %s187 = scalar_lea.vmem %s4, %s186
      %p188 = scmp.lt.s32.totalorder %s15, 1
      %s189 = scalar_select %p188, %s15, 1
      %s190 = smul.addr %s189, 20
      %s191 = smul.addr %s190, 4
      %s192 = scalar_lea.vmem %s0, %s191
      %s193 = smul.u32 8, %s15
      %p194 = scmp.lt.s32.totalorder %s193, 15
      %s195 = scalar_select %p194, %s193, 15
      %s196 = smul.addr %s195, 4
      %s197 = scalar_lea.vmem %s4, %s196
      %s198 = smul.u32 8, %s15
      %v200 = vld [vmem:[%s192] sm:$0xf]
      %v201 = vld [vmem:[%s192 + $0x4] sm:$0x1]
      %v202 = vld [vmem:[%s192 + $0x8] sm:$0xf]
      %v203 = vld [vmem:[%s192 + $0xc] sm:$0x1]
      %v204 = vld [vmem:[%s192 + $0x10] sm:$0xf]
      %v205 = vld [vmem:[%s192 + $0x14] sm:$0x1]
      %v206 = vld [vmem:[%s192 + $0x18] sm:$0xf]
      %v207 = vld [vmem:[%s192 + $0x1c] sm:$0x1]
      %v208 = vld [vmem:[%s192 + $0x20] sm:$0xf]
      %v209 = vld [vmem:[%s192 + $0x24] sm:$0x1]
      %v210 = vld [vmem:[%s192 + $0x28] sm:$0xf]
      %v211 = vld [vmem:[%s192 + $0x2c] sm:$0x1]
      %v212 = vld [vmem:[%s192 + $0x30] sm:$0xf]
      %v213 = vld [vmem:[%s192 + $0x34] sm:$0x1]
      %v214 = vld [vmem:[%s192 + $0x38] sm:$0xf]
      %v215 = vld [vmem:[%s192 + $0x3c] sm:$0x1]
      %v216 = vld [vmem:[%s192 + $0x40] sm:$0xf]
      %v217 = vld [vmem:[%s192 + $0x44] sm:$0x1]
      %v218 = vld [vmem:[%s192 + $0x48] sm:$0xf]
      %v219 = vld [vmem:[%s192 + $0x4c] sm:$0x1]
      %v220 = vunpack.c.l.bf16 %v200
      %v221 = vunpack.c.l.bf16 %v201
      %v222 = vunpack.c.l.bf16 %v202
      %v223 = vunpack.c.l.bf16 %v203
      %v224 = vunpack.c.l.bf16 %v204
      %v225 = vunpack.c.l.bf16 %v205
      %v226 = vunpack.c.l.bf16 %v206
      %v227 = vunpack.c.l.bf16 %v207
      %v228 = vunpack.c.l.bf16 %v208
      %v229 = vunpack.c.l.bf16 %v209
      %v230 = vunpack.c.l.bf16 %v210
      %v231 = vunpack.c.l.bf16 %v211
      %v232 = vunpack.c.l.bf16 %v212
      %v233 = vunpack.c.l.bf16 %v213
      %v234 = vunpack.c.l.bf16 %v214
      %v235 = vunpack.c.l.bf16 %v215
      %v236 = vunpack.c.l.bf16 %v216
      %v237 = vunpack.c.l.bf16 %v217
      %v238 = vunpack.c.l.bf16 %v218
      %v239 = vunpack.c.l.bf16 %v219
      %v240 = vpack.c.bf16 %v222, %v220
      %v241 = vpack.c.bf16 %v226, %v224
      %v242 = vpack.c.bf16 %v230, %v228
      %v243 = vpack.c.bf16 %v234, %v232
      %v244 = vld [vmem:[%s1] sm:$0xf]
      %v245 = vld [vmem:[%s1 + $0x4] sm:$0xf]
      %v246 = vld [vmem:[%s1 + $0x8] sm:$0xf]
      %v247 = vld [vmem:[%s1 + $0xc] sm:$0xf]
      %v248 = vld [vmem:[%s1 + $0x10] sm:$0xf]
      %v249 = vld [vmem:[%s1 + $0x14] sm:$0xf]
      %v250 = vld [vmem:[%s1 + $0x18] sm:$0xf]
      %v251 = vld [vmem:[%s1 + $0x1c] sm:$0xf]
      %v252 = vld [vmem:[%s1 + $0x20] sm:$0xf]
      %v253 = vld [vmem:[%s1 + $0x24] sm:$0xf]
      %v254 = vld [vmem:[%s1 + $0x28] sm:$0xf]
      %v255 = vld [vmem:[%s1 + $0x2c] sm:$0xf]
      %v256 = vld [vmem:[%s1 + $0x30] sm:$0xf]
      %v257 = vld [vmem:[%s1 + $0x34] sm:$0xf]
      %v258 = vld [vmem:[%s1 + $0x38] sm:$0xf]
      %v259 = vld [vmem:[%s1 + $0x3c] sm:$0xf]
      %vm276 = vcmask 1046528
      %v277 = vrot.slane %v220, 1
      %v278 = vrot.slane %v221, 1
      %v279 = vsel %vm276, %v277, %v278
      %v280 = vrot.slane %v222, 1
      %v281 = vrot.slane %v223, 1
      %v282 = vsel %vm276, %v280, %v281
      %v283 = vrot.slane %v224, 1
      %v284 = vrot.slane %v225, 1
      %v285 = vsel %vm276, %v283, %v284
      %v286 = vrot.slane %v226, 1
      %v287 = vrot.slane %v227, 1
      %v288 = vsel %vm276, %v286, %v287
      %v289 = vrot.slane %v228, 1
      %v290 = vrot.slane %v229, 1
      %v291 = vsel %vm276, %v289, %v290
      %v292 = vrot.slane %v230, 1
      %v293 = vrot.slane %v231, 1
      %v294 = vsel %vm276, %v292, %v293
      %v295 = vrot.slane %v232, 1
      %v296 = vrot.slane %v233, 1
      %v297 = vsel %vm276, %v295, %v296
      %v298 = vrot.slane %v234, 1
      %v299 = vrot.slane %v235, 1
      %v300 = vsel %vm276, %v298, %v299
      %v309 = vpack.c.bf16 %v282, %v279
      %v310 = vpack.c.bf16 %v288, %v285
      %v311 = vpack.c.bf16 %v294, %v291
      %v312 = vpack.c.bf16 %v300, %v297
      %s313 = scalar_lea.vmem %s1, 64
      %v314 = vld [vmem:[%s313] sm:$0xf]
      %v315 = vld [vmem:[%s313 + $0x4] sm:$0xf]
      %v316 = vld [vmem:[%s313 + $0x8] sm:$0xf]
      %v317 = vld [vmem:[%s313 + $0xc] sm:$0xf]
      %v318 = vld [vmem:[%s313 + $0x10] sm:$0xf]
      %v319 = vld [vmem:[%s313 + $0x14] sm:$0xf]
      %v320 = vld [vmem:[%s313 + $0x18] sm:$0xf]
      %v321 = vld [vmem:[%s313 + $0x1c] sm:$0xf]
      %v322 = vld [vmem:[%s313 + $0x20] sm:$0xf]
      %v323 = vld [vmem:[%s313 + $0x24] sm:$0xf]
      %v324 = vld [vmem:[%s313 + $0x28] sm:$0xf]
      %v325 = vld [vmem:[%s313 + $0x2c] sm:$0xf]
      %v326 = vld [vmem:[%s313 + $0x30] sm:$0xf]
      %v327 = vld [vmem:[%s313 + $0x34] sm:$0xf]
      %v328 = vld [vmem:[%s313 + $0x38] sm:$0xf]
      %v329 = vld [vmem:[%s313 + $0x3c] sm:$0xf]
      %v346 = vunpack.c.l.b16 %v314
      %v347 = vunpack.c.l.b16 %v315
      %v348 = vunpack.c.l.b16 %v316
      %v349 = vunpack.c.l.b16 %v317
      %v350 = vunpack.c.l.b16 %v318
      %v351 = vunpack.c.l.b16 %v319
      %v352 = vunpack.c.l.b16 %v320
      %v353 = vunpack.c.l.b16 %v321
      %v354 = vunpack.c.l.b16 %v322
      %v355 = vunpack.c.l.b16 %v323
      %v356 = vunpack.c.l.b16 %v324
      %v357 = vunpack.c.l.b16 %v325
      %v358 = vunpack.c.l.b16 %v326
      %v359 = vunpack.c.l.b16 %v327
      %v360 = vunpack.c.l.b16 %v328
      %v361 = vunpack.c.l.b16 %v329
      %v362 = vpack.c.b16 %v347, %v346
      %v363 = vpack.c.b16 %v349, %v348
      %v364 = vpack.c.b16 %v351, %v350
      %v365 = vpack.c.b16 %v353, %v352
      %v366 = vpack.c.b16 %v355, %v354
      %v367 = vpack.c.b16 %v357, %v356
      %v368 = vpack.c.b16 %v359, %v358
      %v369 = vpack.c.b16 %v361, %v360
      %378 = vmatprep.subr.bf16.mxu0 0
      %379 = vmatpush1.bf16.msra.mxu0 %v362
      %380 = vmatprep.subr.bf16.mxu0 0
      %381 = vmatpush1.bf16.msra.mxu0 %v363
      %382 = vmatprep.subr.bf16.mxu0 0
      %383 = vmatpush1.bf16.msra.mxu0 %v364
      %384 = vmatprep.subr.bf16.mxu0 0
      %385 = vmatpush1.bf16.msra.mxu0 %v365
      %386 = vmatprep.subr.bf16.mxu0 0
      %387 = vmatpush1.bf16.msra.mxu0 %v366
      %388 = vmatprep.subr.bf16.mxu0 0
      %389 = vmatpush1.bf16.msra.mxu0 %v367
      %390 = vmatprep.subr.bf16.mxu0 0
      %391 = vmatpush1.bf16.msra.mxu0 %v368
      %392 = vmatprep.subr.bf16.mxu0 0
      %393 = vmatpush1.bf16.msra.mxu0 %v369
      %394 = vmatprep.subr.bf16.mxu0 0
      %395 = vmatpush1.bf16.msra.mxu0 0
      %396 = vmatprep.subr.bf16.mxu0 0
      %397 = vmatpush1.bf16.msra.mxu0 0
      %398 = vmatprep.subr.bf16.mxu0 0
      %399 = vmatpush1.bf16.msra.mxu0 0
      %400 = vmatprep.subr.bf16.mxu0 0
      %401 = vmatpush1.bf16.msra.mxu0 0
      %402 = vmatprep.subr.bf16.mxu0 0
      %403 = vmatpush1.bf16.msra.mxu0 0
      %404 = vmatprep.subr.bf16.mxu0 0
      %405 = vmatpush1.bf16.msra.mxu0 0
      %406 = vmatprep.subr.bf16.mxu0 0
      %407 = vmatpush1.bf16.msra.mxu0 0
      %408 = vmatprep.subr.bf16.mxu0 0
      %409 = vmatpush1.bf16.msra.mxu0 0
      %410 = vmatprep.mubr.bf16.mxu0 0
      %411 = vmatmul.mubr.bf16.gmra.mrb[0].mxu0 %v309
      %v412 = vpop.f32.mrb[0].mxu0
      %v413 = vadd.f32 0.0, %v412
      %v414 = vpop.f32.mrb[0].mxu0
      %v415 = vpop.f32.mrb[0].mxu0
      %v416 = vadd.f32 0.0, %v415
      %v417 = vpop.f32.mrb[0].mxu0
      %418 = vmatprep.mubr.bf16.mxu0 0
      %419 = vmatmul.mubr.bf16.gmra.mrb[0].mxu0 %v310
      %v420 = vpop.f32.mrb[0].mxu0
      %v421 = vadd.f32 0.0, %v420
      %v422 = vpop.f32.mrb[0].mxu0
      %v423 = vpop.f32.mrb[0].mxu0
      %v424 = vadd.f32 0.0, %v423
      %v425 = vpop.f32.mrb[0].mxu0
      %426 = vmatprep.mubr.bf16.mxu0 0
      %427 = vmatmul.mubr.bf16.gmra.mrb[0].mxu0 %v311
      %v428 = vpop.f32.mrb[0].mxu0
      %v429 = vadd.f32 0.0, %v428
      %v430 = vpop.f32.mrb[0].mxu0
      %v431 = vpop.f32.mrb[0].mxu0
      %v432 = vadd.f32 0.0, %v431
      %v433 = vpop.f32.mrb[0].mxu0
      %434 = vmatprep.mubr.bf16.mxu0 0
      %435 = vmatmul.mubr.bf16.gmra.mrb[0].mxu0 %v312
      %v436 = vpop.f32.mrb[0].mxu0
      %v437 = vadd.f32 0.0, %v436
      %v438 = vpop.f32.mrb[0].mxu0
      %v439 = vpop.f32.mrb[0].mxu0
      %v440 = vadd.f32 0.0, %v439
      %v441 = vpop.f32.mrb[0].mxu0
      %442 = vdwg.mxu0
      %v459 = vunpack.c.l.b16 %v244
      %v460 = vunpack.c.l.b16 %v245
      %v461 = vunpack.c.l.b16 %v246
      %v462 = vunpack.c.l.b16 %v247
      %v463 = vunpack.c.l.b16 %v248
      %v464 = vunpack.c.l.b16 %v249
      %v465 = vunpack.c.l.b16 %v250
      %v466 = vunpack.c.l.b16 %v251
      %v467 = vunpack.c.l.b16 %v252
      %v468 = vunpack.c.l.b16 %v253
      %v469 = vunpack.c.l.b16 %v254
      %v470 = vunpack.c.l.b16 %v255
      %v471 = vunpack.c.l.b16 %v256
      %v472 = vunpack.c.l.b16 %v257
      %v473 = vunpack.c.l.b16 %v258
      %v474 = vunpack.c.l.b16 %v259
      %v475 = vpack.c.b16 %v460, %v459
      %v476 = vpack.c.b16 %v462, %v461
      %v477 = vpack.c.b16 %v464, %v463
      %v478 = vpack.c.b16 %v466, %v465
      %v479 = vpack.c.b16 %v468, %v467
      %v480 = vpack.c.b16 %v470, %v469
      %v481 = vpack.c.b16 %v472, %v471
      %v482 = vpack.c.b16 %v474, %v473
      %491 = vmatprep.subr.bf16.mxu0 0
      %492 = vmatpush1.bf16.msra.mxu0 %v475
      %493 = vmatprep.subr.bf16.mxu0 0
      %494 = vmatpush1.bf16.msra.mxu0 %v476
      %495 = vmatprep.subr.bf16.mxu0 0
      %496 = vmatpush1.bf16.msra.mxu0 %v477
      %497 = vmatprep.subr.bf16.mxu0 0
      %498 = vmatpush1.bf16.msra.mxu0 %v478
      %499 = vmatprep.subr.bf16.mxu0 0
      %500 = vmatpush1.bf16.msra.mxu0 %v479
      %501 = vmatprep.subr.bf16.mxu0 0
      %502 = vmatpush1.bf16.msra.mxu0 %v480
      %503 = vmatprep.subr.bf16.mxu0 0
      %504 = vmatpush1.bf16.msra.mxu0 %v481
      %505 = vmatprep.subr.bf16.mxu0 0
      %506 = vmatpush1.bf16.msra.mxu0 %v482
      %507 = vmatprep.subr.bf16.mxu0 0
      %508 = vmatpush1.bf16.msra.mxu0 0
      %509 = vmatprep.subr.bf16.mxu0 0
      %510 = vmatpush1.bf16.msra.mxu0 0
      %511 = vmatprep.subr.bf16.mxu0 0
      %512 = vmatpush1.bf16.msra.mxu0 0
      %513 = vmatprep.subr.bf16.mxu0 0
      %514 = vmatpush1.bf16.msra.mxu0 0
      %515 = vmatprep.subr.bf16.mxu0 0
      %516 = vmatpush1.bf16.msra.mxu0 0
      %517 = vmatprep.subr.bf16.mxu0 0
      %518 = vmatpush1.bf16.msra.mxu0 0
      %519 = vmatprep.subr.bf16.mxu0 0
      %520 = vmatpush1.bf16.msra.mxu0 0
      %521 = vmatprep.subr.bf16.mxu0 0
      %522 = vmatpush1.bf16.msra.mxu0 0
      %523 = vmatprep.mubr.bf16.mxu0 0
      %524 = vmatmul.mubr.bf16.gmra.mrb[0].mxu0 %v240
      %v525 = vpop.f32.mrb[0].mxu0
      %v526 = vadd.f32 %v413, %v525
      %v527 = vpop.f32.mrb[0].mxu0
      %v528 = vpop.f32.mrb[0].mxu0
      %v529 = vadd.f32 %v416, %v528
      %v530 = vpop.f32.mrb[0].mxu0
      %531 = vmatprep.mubr.bf16.mxu0 0
      %532 = vmatmul.mubr.bf16.gmra.mrb[0].mxu0 %v241
      %v533 = vpop.f32.mrb[0].mxu0
      %v534 = vadd.f32 %v421, %v533
      %v535 = vpop.f32.mrb[0].mxu0
      %v536 = vpop.f32.mrb[0].mxu0
      %v537 = vadd.f32 %v424, %v536
      %v538 = vpop.f32.mrb[0].mxu0
      %539 = vmatprep.mubr.bf16.mxu0 0
      %540 = vmatmul.mubr.bf16.gmra.mrb[0].mxu0 %v242
      %v541 = vpop.f32.mrb[0].mxu0
      %v542 = vadd.f32 %v429, %v541
      %v543 = vpop.f32.mrb[0].mxu0
      %v544 = vpop.f32.mrb[0].mxu0
      %v545 = vadd.f32 %v432, %v544
      %v546 = vpop.f32.mrb[0].mxu0
      %547 = vmatprep.mubr.bf16.mxu0 0
      %548 = vmatmul.mubr.bf16.gmra.mrb[0].mxu0 %v243
      %v549 = vpop.f32.mrb[0].mxu0
      %v550 = vadd.f32 %v437, %v549
      %v551 = vpop.f32.mrb[0].mxu0
      %v552 = vpop.f32.mrb[0].mxu0
      %v553 = vadd.f32 %v440, %v552
      %v554 = vpop.f32.mrb[0].mxu0
      %555 = vdwg.mxu0
      %vm556 = vcmask 1045504
      %v557 = vrot.slane %v220, 2
      %v558 = vrot.slane %v221, 2
      %v559 = vsel %vm556, %v557, %v558
      %v560 = vrot.slane %v222, 2
      %v561 = vrot.slane %v223, 2
      %v562 = vsel %vm556, %v560, %v561
      %v563 = vrot.slane %v224, 2
      %v564 = vrot.slane %v225, 2
      %v565 = vsel %vm556, %v563, %v564
      %v566 = vrot.slane %v226, 2
      %v567 = vrot.slane %v227, 2
      %v568 = vsel %vm556, %v566, %v567
      %v569 = vrot.slane %v228, 2
      %v570 = vrot.slane %v229, 2
      %v571 = vsel %vm556, %v569, %v570
      %v572 = vrot.slane %v230, 2
      %v573 = vrot.slane %v231, 2
      %v574 = vsel %vm556, %v572, %v573
      %v575 = vrot.slane %v232, 2
      %v576 = vrot.slane %v233, 2
      %v577 = vsel %vm556, %v575, %v576
      %v578 = vrot.slane %v234, 2
      %v579 = vrot.slane %v235, 2
      %v580 = vsel %vm556, %v578, %v579
      %v589 = vpack.c.bf16 %v562, %v559
      %v590 = vpack.c.bf16 %v568, %v565
      %v591 = vpack.c.bf16 %v574, %v571
      %v592 = vpack.c.bf16 %v580, %v577
      %s593 = scalar_lea.vmem %s1, 128
      %v594 = vld [vmem:[%s593] sm:$0xf]
      %v595 = vld [vmem:[%s593 + $0x4] sm:$0xf]
      %v596 = vld [vmem:[%s593 + $0x8] sm:$0xf]
      %v597 = vld [vmem:[%s593 + $0xc] sm:$0xf]
      %v598 = vld [vmem:[%s593 + $0x10] sm:$0xf]
      %v599 = vld [vmem:[%s593 + $0x14] sm:$0xf]
      %v600 = vld [vmem:[%s593 + $0x18] sm:$0xf]
      %v601 = vld [vmem:[%s593 + $0x1c] sm:$0xf]
      %v602 = vld [vmem:[%s593 + $0x20] sm:$0xf]
      %v603 = vld [vmem:[%s593 + $0x24] sm:$0xf]
      %v604 = vld [vmem:[%s593 + $0x28] sm:$0xf]
      %v605 = vld [vmem:[%s593 + $0x2c] sm:$0xf]
      %v606 = vld [vmem:[%s593 + $0x30] sm:$0xf]
      %v607 = vld [vmem:[%s593 + $0x34] sm:$0xf]
      %v608 = vld [vmem:[%s593 + $0x38] sm:$0xf]
      %v609 = vld [vmem:[%s593 + $0x3c] sm:$0xf]
      %v626 = vunpack.c.l.b16 %v594
      %v627 = vunpack.c.l.b16 %v595
      %v628 = vunpack.c.l.b16 %v596
      %v629 = vunpack.c.l.b16 %v597
      %v630 = vunpack.c.l.b16 %v598
      %v631 = vunpack.c.l.b16 %v599
      %v632 = vunpack.c.l.b16 %v600
      %v633 = vunpack.c.l.b16 %v601
      %v634 = vunpack.c.l.b16 %v602
      %v635 = vunpack.c.l.b16 %v603
      %v636 = vunpack.c.l.b16 %v604
      %v637 = vunpack.c.l.b16 %v605
      %v638 = vunpack.c.l.b16 %v606
      %v639 = vunpack.c.l.b16 %v607
      %v640 = vunpack.c.l.b16 %v608
      %v641 = vunpack.c.l.b16 %v609
      %v642 = vpack.c.b16 %v627, %v626
      %v643 = vpack.c.b16 %v629, %v628
      %v644 = vpack.c.b16 %v631, %v630
      %v645 = vpack.c.b16 %v633, %v632
      %v646 = vpack.c.b16 %v635, %v634
      %v647 = vpack.c.b16 %v637, %v636
      %v648 = vpack.c.b16 %v639, %v638
      %v649 = vpack.c.b16 %v641, %v640
      %658 = vmatprep.subr.bf16.mxu0 0
      %659 = vmatpush1.bf16.msra.mxu0 %v642
      %660 = vmatprep.subr.bf16.mxu0 0
      %661 = vmatpush1.bf16.msra.mxu0 %v643
      %662 = vmatprep.subr.bf16.mxu0 0
      %663 = vmatpush1.bf16.msra.mxu0 %v644
      %664 = vmatprep.subr.bf16.mxu0 0
      %665 = vmatpush1.bf16.msra.mxu0 %v645
      %666 = vmatprep.subr.bf16.mxu0 0
      %667 = vmatpush1.bf16.msra.mxu0 %v646
      %668 = vmatprep.subr.bf16.mxu0 0
      %669 = vmatpush1.bf16.msra.mxu0 %v647
      %670 = vmatprep.subr.bf16.mxu0 0
      %671 = vmatpush1.bf16.msra.mxu0 %v648
      %672 = vmatprep.subr.bf16.mxu0 0
      %673 = vmatpush1.bf16.msra.mxu0 %v649
      %674 = vmatprep.subr.bf16.mxu0 0
      %675 = vmatpush1.bf16.msra.mxu0 0
      %676 = vmatprep.subr.bf16.mxu0 0
      %677 = vmatpush1.bf16.msra.mxu0 0
      %678 = vmatprep.subr.bf16.mxu0 0
      %679 = vmatpush1.bf16.msra.mxu0 0
      %680 = vmatprep.subr.bf16.mxu0 0
      %681 = vmatpush1.bf16.msra.mxu0 0
      %682 = vmatprep.subr.bf16.mxu0 0
      %683 = vmatpush1.bf16.msra.mxu0 0
      %684 = vmatprep.subr.bf16.mxu0 0
      %685 = vmatpush1.bf16.msra.mxu0 0
      %686 = vmatprep.subr.bf16.mxu0 0
      %687 = vmatpush1.bf16.msra.mxu0 0
      %688 = vmatprep.subr.bf16.mxu0 0
      %689 = vmatpush1.bf16.msra.mxu0 0
      %690 = vmatprep.mubr.bf16.mxu0 0
      %691 = vmatmul.mubr.bf16.gmra.mrb[0].mxu0 %v589
      %v692 = vpop.f32.mrb[0].mxu0
      %v693 = vadd.f32 0.0, %v692
      %v694 = vpop.f32.mrb[0].mxu0
      %v695 = vpop.f32.mrb[0].mxu0
      %v696 = vadd.f32 0.0, %v695
      %v697 = vpop.f32.mrb[0].mxu0
      %698 = vmatprep.mubr.bf16.mxu0 0
      %699 = vmatmul.mubr.bf16.gmra.mrb[0].mxu0 %v590
      %v700 = vpop.f32.mrb[0].mxu0
      %v701 = vadd.f32 0.0, %v700
      %v702 = vpop.f32.mrb[0].mxu0
      %v703 = vpop.f32.mrb[0].mxu0
      %v704 = vadd.f32 0.0, %v703
      %v705 = vpop.f32.mrb[0].mxu0
      %706 = vmatprep.mubr.bf16.mxu0 0
      %707 = vmatmul.mubr.bf16.gmra.mrb[0].mxu0 %v591
      %v708 = vpop.f32.mrb[0].mxu0
      %v709 = vadd.f32 0.0, %v708
      %v710 = vpop.f32.mrb[0].mxu0
      %v711 = vpop.f32.mrb[0].mxu0
      %v712 = vadd.f32 0.0, %v711
      %v713 = vpop.f32.mrb[0].mxu0
      %714 = vmatprep.mubr.bf16.mxu0 0
      %715 = vmatmul.mubr.bf16.gmra.mrb[0].mxu0 %v592
      %v716 = vpop.f32.mrb[0].mxu0
      %v717 = vadd.f32 0.0, %v716
      %v718 = vpop.f32.mrb[0].mxu0
      %v719 = vpop.f32.mrb[0].mxu0
      %v720 = vadd.f32 0.0, %v719
      %v721 = vpop.f32.mrb[0].mxu0
      %722 = vdwg.mxu0
      %v723 = vadd.f32 %v526, %v693
      %v724 = vadd.f32 %v529, %v696
      %v725 = vadd.f32 %v534, %v701
      %v726 = vadd.f32 %v537, %v704
      %v727 = vadd.f32 %v542, %v709
      %v728 = vadd.f32 %v545, %v712
      %v729 = vadd.f32 %v550, %v717
      %v730 = vadd.f32 %v553, %v720
      %v731 = vpack.c.bf16 %v224, %v222
      %v732 = vpack.c.bf16 %v228, %v226
      %v733 = vpack.c.bf16 %v232, %v230
      %v734 = vpack.c.bf16 %v236, %v234
      %s735 = scalar_lea.vmem %s1, 192
      %v736 = vld [vmem:[%s735] sm:$0xf]
      %v737 = vld [vmem:[%s735 + $0x4] sm:$0xf]
      %v738 = vld [vmem:[%s735 + $0x8] sm:$0xf]
      %v739 = vld [vmem:[%s735 + $0xc] sm:$0xf]
      %v740 = vld [vmem:[%s735 + $0x10] sm:$0xf]
      %v741 = vld [vmem:[%s735 + $0x14] sm:$0xf]
      %v742 = vld [vmem:[%s735 + $0x18] sm:$0xf]
      %v743 = vld [vmem:[%s735 + $0x1c] sm:$0xf]
      %v744 = vld [vmem:[%s735 + $0x20] sm:$0xf]
      %v745 = vld [vmem:[%s735 + $0x24] sm:$0xf]
      %v746 = vld [vmem:[%s735 + $0x28] sm:$0xf]
      %v747 = vld [vmem:[%s735 + $0x2c] sm:$0xf]
      %v748 = vld [vmem:[%s735 + $0x30] sm:$0xf]
      %v749 = vld [vmem:[%s735 + $0x34] sm:$0xf]
      %v750 = vld [vmem:[%s735 + $0x38] sm:$0xf]
      %v751 = vld [vmem:[%s735 + $0x3c] sm:$0xf]
      %v768 = vunpack.c.l.b16 %v736
      %v769 = vunpack.c.l.b16 %v737
      %v770 = vunpack.c.l.b16 %v738
      %v771 = vunpack.c.l.b16 %v739
      %v772 = vunpack.c.l.b16 %v740
      %v773 = vunpack.c.l.b16 %v741
      %v774 = vunpack.c.l.b16 %v742
      %v775 = vunpack.c.l.b16 %v743
      %v776 = vunpack.c.l.b16 %v744
      %v777 = vunpack.c.l.b16 %v745
      %v778 = vunpack.c.l.b16 %v746
      %v779 = vunpack.c.l.b16 %v747
      %v780 = vunpack.c.l.b16 %v748
      %v781 = vunpack.c.l.b16 %v749
      %v782 = vunpack.c.l.b16 %v750
      %v783 = vunpack.c.l.b16 %v751
      %v784 = vpack.c.b16 %v769, %v768
      %v785 = vpack.c.b16 %v771, %v770
      %v786 = vpack.c.b16 %v773, %v772
      %v787 = vpack.c.b16 %v775, %v774
      %v788 = vpack.c.b16 %v777, %v776
      %v789 = vpack.c.b16 %v779, %v778
      %v790 = vpack.c.b16 %v781, %v780
      %v791 = vpack.c.b16 %v783, %v782
      %800 = vmatprep.subr.bf16.mxu0 0
      %801 = vmatpush1.bf16.msra.mxu0 %v784
      %802 = vmatprep.subr.bf16.mxu0 0
      %803 = vmatpush1.bf16.msra.mxu0 %v785
      %804 = vmatprep.subr.bf16.mxu0 0
      %805 = vmatpush1.bf16.msra.mxu0 %v786
      %806 = vmatprep.subr.bf16.mxu0 0
      %807 = vmatpush1.bf16.msra.mxu0 %v787
      %808 = vmatprep.subr.bf16.mxu0 0
      %809 = vmatpush1.bf16.msra.mxu0 %v788
      %810 = vmatprep.subr.bf16.mxu0 0
      %811 = vmatpush1.bf16.msra.mxu0 %v789
      %812 = vmatprep.subr.bf16.mxu0 0
      %813 = vmatpush1.bf16.msra.mxu0 %v790
      %814 = vmatprep.subr.bf16.mxu0 0
      %815 = vmatpush1.bf16.msra.mxu0 %v791
      %816 = vmatprep.subr.bf16.mxu0 0
      %817 = vmatpush1.bf16.msra.mxu0 0
      %818 = vmatprep.subr.bf16.mxu0 0
      %819 = vmatpush1.bf16.msra.mxu0 0
      %820 = vmatprep.subr.bf16.mxu0 0
      %821 = vmatpush1.bf16.msra.mxu0 0
      %822 = vmatprep.subr.bf16.mxu0 0
      %823 = vmatpush1.bf16.msra.mxu0 0
      %824 = vmatprep.subr.bf16.mxu0 0
      %825 = vmatpush1.bf16.msra.mxu0 0
      %826 = vmatprep.subr.bf16.mxu0 0
      %827 = vmatpush1.bf16.msra.mxu0 0
      %828 = vmatprep.subr.bf16.mxu0 0
      %829 = vmatpush1.bf16.msra.mxu0 0
      %830 = vmatprep.subr.bf16.mxu0 0
      %831 = vmatpush1.bf16.msra.mxu0 0
      %832 = vmatprep.mubr.bf16.mxu0 0
      %833 = vmatmul.mubr.bf16.gmra.mrb[0].mxu0 %v731
      %v834 = vpop.f32.mrb[0].mxu0
      %v835 = vadd.f32 0.0, %v834
      %v836 = vpop.f32.mrb[0].mxu0
      %v837 = vpop.f32.mrb[0].mxu0
      %v838 = vadd.f32 0.0, %v837
      %v839 = vpop.f32.mrb[0].mxu0
      %840 = vmatprep.mubr.bf16.mxu0 0
      %841 = vmatmul.mubr.bf16.gmra.mrb[0].mxu0 %v732
      %v842 = vpop.f32.mrb[0].mxu0
      %v843 = vadd.f32 0.0, %v842
      %v844 = vpop.f32.mrb[0].mxu0
      %v845 = vpop.f32.mrb[0].mxu0
      %v846 = vadd.f32 0.0, %v845
      %v847 = vpop.f32.mrb[0].mxu0
      %848 = vmatprep.mubr.bf16.mxu0 0
      %849 = vmatmul.mubr.bf16.gmra.mrb[0].mxu0 %v733
      %v850 = vpop.f32.mrb[0].mxu0
      %v851 = vadd.f32 0.0, %v850
      %v852 = vpop.f32.mrb[0].mxu0
      %v853 = vpop.f32.mrb[0].mxu0
      %v854 = vadd.f32 0.0, %v853
      %v855 = vpop.f32.mrb[0].mxu0
      %856 = vmatprep.mubr.bf16.mxu0 0
      %857 = vmatmul.mubr.bf16.gmra.mrb[0].mxu0 %v734
      %v858 = vpop.f32.mrb[0].mxu0
      %v859 = vadd.f32 0.0, %v858
      %v860 = vpop.f32.mrb[0].mxu0
      %v861 = vpop.f32.mrb[0].mxu0
      %v862 = vadd.f32 0.0, %v861
      %v863 = vpop.f32.mrb[0].mxu0
      %864 = vdwg.mxu0
      %v865 = vadd.f32 %v723, %v835
      %v866 = vadd.f32 %v724, %v838
      %v867 = vadd.f32 %v725, %v843
      %v868 = vadd.f32 %v726, %v846
      %v869 = vadd.f32 %v727, %v851
      %v870 = vadd.f32 %v728, %v854
      %v871 = vadd.f32 %v729, %v859
      %v872 = vadd.f32 %v730, %v862
      %v875 = vrot.slane %v236, 1
      %v876 = vrot.slane %v237, 1
      %v877 = vsel %vm276, %v875, %v876
      %v879 = vpack.c.bf16 %v285, %v282
      %v880 = vpack.c.bf16 %v291, %v288
      %v881 = vpack.c.bf16 %v297, %v294
      %v882 = vpack.c.bf16 %v877, %v300
      %s883 = scalar_lea.vmem %s1, 256
      %v884 = vld [vmem:[%s883] sm:$0xf]
      %v885 = vld [vmem:[%s883 + $0x4] sm:$0xf]
      %v886 = vld [vmem:[%s883 + $0x8] sm:$0xf]
      %v887 = vld [vmem:[%s883 + $0xc] sm:$0xf]
      %v888 = vld [vmem:[%s883 + $0x10] sm:$0xf]
      %v889 = vld [vmem:[%s883 + $0x14] sm:$0xf]
      %v890 = vld [vmem:[%s883 + $0x18] sm:$0xf]
      %v891 = vld [vmem:[%s883 + $0x1c] sm:$0xf]
      %v892 = vld [vmem:[%s883 + $0x20] sm:$0xf]
      %v893 = vld [vmem:[%s883 + $0x24] sm:$0xf]
      %v894 = vld [vmem:[%s883 + $0x28] sm:$0xf]
      %v895 = vld [vmem:[%s883 + $0x2c] sm:$0xf]
      %v896 = vld [vmem:[%s883 + $0x30] sm:$0xf]
      %v897 = vld [vmem:[%s883 + $0x34] sm:$0xf]
      %v898 = vld [vmem:[%s883 + $0x38] sm:$0xf]
      %v899 = vld [vmem:[%s883 + $0x3c] sm:$0xf]
      %v916 = vunpack.c.l.b16 %v884
      %v917 = vunpack.c.l.b16 %v885
      %v918 = vunpack.c.l.b16 %v886
      %v919 = vunpack.c.l.b16 %v887
      %v920 = vunpack.c.l.b16 %v888
      %v921 = vunpack.c.l.b16 %v889
      %v922 = vunpack.c.l.b16 %v890
      %v923 = vunpack.c.l.b16 %v891
      %v924 = vunpack.c.l.b16 %v892
      %v925 = vunpack.c.l.b16 %v893
      %v926 = vunpack.c.l.b16 %v894
      %v927 = vunpack.c.l.b16 %v895
      %v928 = vunpack.c.l.b16 %v896
      %v929 = vunpack.c.l.b16 %v897
      %v930 = vunpack.c.l.b16 %v898
      %v931 = vunpack.c.l.b16 %v899
      %v932 = vpack.c.b16 %v917, %v916
      %v933 = vpack.c.b16 %v919, %v918
      %v934 = vpack.c.b16 %v921, %v920
      %v935 = vpack.c.b16 %v923, %v922
      %v936 = vpack.c.b16 %v925, %v924
      %v937 = vpack.c.b16 %v927, %v926
      %v938 = vpack.c.b16 %v929, %v928
      %v939 = vpack.c.b16 %v931, %v930
      %948 = vmatprep.subr.bf16.mxu0 0
      %949 = vmatpush1.bf16.msra.mxu0 %v932
      %950 = vmatprep.subr.bf16.mxu0 0
      %951 = vmatpush1.bf16.msra.mxu0 %v933
      %952 = vmatprep.subr.bf16.mxu0 0
      %953 = vmatpush1.bf16.msra.mxu0 %v934
      %954 = vmatprep.subr.bf16.mxu0 0
      %955 = vmatpush1.bf16.msra.mxu0 %v935
      %956 = vmatprep.subr.bf16.mxu0 0
      %957 = vmatpush1.bf16.msra.mxu0 %v936
      %958 = vmatprep.subr.bf16.mxu0 0
      %959 = vmatpush1.bf16.msra.mxu0 %v937
      %960 = vmatprep.subr.bf16.mxu0 0
      %961 = vmatpush1.bf16.msra.mxu0 %v938
      %962 = vmatprep.subr.bf16.mxu0 0
      %963 = vmatpush1.bf16.msra.mxu0 %v939
      %964 = vmatprep.subr.bf16.mxu0 0
      %965 = vmatpush1.bf16.msra.mxu0 0
      %966 = vmatprep.subr.bf16.mxu0 0
      %967 = vmatpush1.bf16.msra.mxu0 0
      %968 = vmatprep.subr.bf16.mxu0 0
      %969 = vmatpush1.bf16.msra.mxu0 0
      %970 = vmatprep.subr.bf16.mxu0 0
      %971 = vmatpush1.bf16.msra.mxu0 0
      %972 = vmatprep.subr.bf16.mxu0 0
      %973 = vmatpush1.bf16.msra.mxu0 0
      %974 = vmatprep.subr.bf16.mxu0 0
      %975 = vmatpush1.bf16.msra.mxu0 0
      %976 = vmatprep.subr.bf16.mxu0 0
      %977 = vmatpush1.bf16.msra.mxu0 0
      %978 = vmatprep.subr.bf16.mxu0 0
      %979 = vmatpush1.bf16.msra.mxu0 0
      %980 = vmatprep.mubr.bf16.mxu0 0
      %981 = vmatmul.mubr.bf16.gmra.mrb[0].mxu0 %v879
      %v982 = vpop.f32.mrb[0].mxu0
      %v983 = vadd.f32 0.0, %v982
      %v984 = vpop.f32.mrb[0].mxu0
      %v985 = vpop.f32.mrb[0].mxu0
      %v986 = vadd.f32 0.0, %v985
      %v987 = vpop.f32.mrb[0].mxu0
      %988 = vmatprep.mubr.bf16.mxu0 0
      %989 = vmatmul.mubr.bf16.gmra.mrb[0].mxu0 %v880
      %v990 = vpop.f32.mrb[0].mxu0
      %v991 = vadd.f32 0.0, %v990
      %v992 = vpop.f32.mrb[0].mxu0
      %v993 = vpop.f32.mrb[0].mxu0
      %v994 = vadd.f32 0.0, %v993
      %v995 = vpop.f32.mrb[0].mxu0
      %996 = vmatprep.mubr.bf16.mxu0 0
      %997 = vmatmul.mubr.bf16.gmra.mrb[0].mxu0 %v881
      %v998 = vpop.f32.mrb[0].mxu0
      %v999 = vadd.f32 0.0, %v998
      %v1000 = vpop.f32.mrb[0].mxu0
      %v1001 = vpop.f32.mrb[0].mxu0
      %v1002 = vadd.f32 0.0, %v1001
      %v1003 = vpop.f32.mrb[0].mxu0
      %1004 = vmatprep.mubr.bf16.mxu0 0
      %1005 = vmatmul.mubr.bf16.gmra.mrb[0].mxu0 %v882
      %v1006 = vpop.f32.mrb[0].mxu0
      %v1007 = vadd.f32 0.0, %v1006
      %v1008 = vpop.f32.mrb[0].mxu0
      %v1009 = vpop.f32.mrb[0].mxu0
      %v1010 = vadd.f32 0.0, %v1009
      %v1011 = vpop.f32.mrb[0].mxu0
      %1012 = vdwg.mxu0
      %v1013 = vadd.f32 %v865, %v983
      %v1014 = vadd.f32 %v866, %v986
      %v1015 = vadd.f32 %v867, %v991
      %v1016 = vadd.f32 %v868, %v994
      %v1017 = vadd.f32 %v869, %v999
      %v1018 = vadd.f32 %v870, %v1002
      %v1019 = vadd.f32 %v871, %v1007
      %v1020 = vadd.f32 %v872, %v1010
      %v1021 = vrot.slane %v236, 2
      %v1022 = vrot.slane %v237, 2
      %v1023 = vsel %vm556, %v1021, %v1022
      %v1025 = vpack.c.bf16 %v565, %v562
      %v1026 = vpack.c.bf16 %v571, %v568
      %v1027 = vpack.c.bf16 %v577, %v574
      %v1028 = vpack.c.bf16 %v1023, %v580
      %s1029 = scalar_lea.vmem %s1, 320
      %v1030 = vld [vmem:[%s1029] sm:$0xf]
      %v1031 = vld [vmem:[%s1029 + $0x4] sm:$0xf]
      %v1032 = vld [vmem:[%s1029 + $0x8] sm:$0xf]
      %v1033 = vld [vmem:[%s1029 + $0xc] sm:$0xf]
      %v1034 = vld [vmem:[%s1029 + $0x10] sm:$0xf]
      %v1035 = vld [vmem:[%s1029 + $0x14] sm:$0xf]
      %v1036 = vld [vmem:[%s1029 + $0x18] sm:$0xf]
      %v1037 = vld [vmem:[%s1029 + $0x1c] sm:$0xf]
      %v1038 = vld [vmem:[%s1029 + $0x20] sm:$0xf]
      %v1039 = vld [vmem:[%s1029 + $0x24] sm:$0xf]
      %v1040 = vld [vmem:[%s1029 + $0x28] sm:$0xf]
      %v1041 = vld [vmem:[%s1029 + $0x2c] sm:$0xf]
      %v1042 = vld [vmem:[%s1029 + $0x30] sm:$0xf]
      %v1043 = vld [vmem:[%s1029 + $0x34] sm:$0xf]
      %v1044 = vld [vmem:[%s1029 + $0x38] sm:$0xf]
      %v1045 = vld [vmem:[%s1029 + $0x3c] sm:$0xf]
      %v1062 = vunpack.c.l.b16 %v1030
      %v1063 = vunpack.c.l.b16 %v1031
      %v1064 = vunpack.c.l.b16 %v1032
      %v1065 = vunpack.c.l.b16 %v1033
      %v1066 = vunpack.c.l.b16 %v1034
      %v1067 = vunpack.c.l.b16 %v1035
      %v1068 = vunpack.c.l.b16 %v1036
      %v1069 = vunpack.c.l.b16 %v1037
      %v1070 = vunpack.c.l.b16 %v1038
      %v1071 = vunpack.c.l.b16 %v1039
      %v1072 = vunpack.c.l.b16 %v1040
      %v1073 = vunpack.c.l.b16 %v1041
      %v1074 = vunpack.c.l.b16 %v1042
      %v1075 = vunpack.c.l.b16 %v1043
      %v1076 = vunpack.c.l.b16 %v1044
      %v1077 = vunpack.c.l.b16 %v1045
      %v1078 = vpack.c.b16 %v1063, %v1062
      %v1079 = vpack.c.b16 %v1065, %v1064
      %v1080 = vpack.c.b16 %v1067, %v1066
      %v1081 = vpack.c.b16 %v1069, %v1068
      %v1082 = vpack.c.b16 %v1071, %v1070
      %v1083 = vpack.c.b16 %v1073, %v1072
      %v1084 = vpack.c.b16 %v1075, %v1074
      %v1085 = vpack.c.b16 %v1077, %v1076
      %1094 = vmatprep.subr.bf16.mxu0 0
      %1095 = vmatpush1.bf16.msra.mxu0 %v1078
      %1096 = vmatprep.subr.bf16.mxu0 0
      %1097 = vmatpush1.bf16.msra.mxu0 %v1079
      %1098 = vmatprep.subr.bf16.mxu0 0
      %1099 = vmatpush1.bf16.msra.mxu0 %v1080
      %1100 = vmatprep.subr.bf16.mxu0 0
      %1101 = vmatpush1.bf16.msra.mxu0 %v1081
      %1102 = vmatprep.subr.bf16.mxu0 0
      %1103 = vmatpush1.bf16.msra.mxu0 %v1082
      %1104 = vmatprep.subr.bf16.mxu0 0
      %1105 = vmatpush1.bf16.msra.mxu0 %v1083
      %1106 = vmatprep.subr.bf16.mxu0 0
      %1107 = vmatpush1.bf16.msra.mxu0 %v1084
      %1108 = vmatprep.subr.bf16.mxu0 0
      %1109 = vmatpush1.bf16.msra.mxu0 %v1085
      %1110 = vmatprep.subr.bf16.mxu0 0
      %1111 = vmatpush1.bf16.msra.mxu0 0
      %1112 = vmatprep.subr.bf16.mxu0 0
      %1113 = vmatpush1.bf16.msra.mxu0 0
      %1114 = vmatprep.subr.bf16.mxu0 0
      %1115 = vmatpush1.bf16.msra.mxu0 0
      %1116 = vmatprep.subr.bf16.mxu0 0
      %1117 = vmatpush1.bf16.msra.mxu0 0
      %1118 = vmatprep.subr.bf16.mxu0 0
      %1119 = vmatpush1.bf16.msra.mxu0 0
      %1120 = vmatprep.subr.bf16.mxu0 0
      %1121 = vmatpush1.bf16.msra.mxu0 0
      %1122 = vmatprep.subr.bf16.mxu0 0
      %1123 = vmatpush1.bf16.msra.mxu0 0
      %1124 = vmatprep.subr.bf16.mxu0 0
      %1125 = vmatpush1.bf16.msra.mxu0 0
      %1126 = vmatprep.mubr.bf16.mxu0 0
      %1127 = vmatmul.mubr.bf16.gmra.mrb[0].mxu0 %v1025
      %v1128 = vpop.f32.mrb[0].mxu0
      %v1129 = vadd.f32 0.0, %v1128
      %v1130 = vpop.f32.mrb[0].mxu0
      %v1131 = vpop.f32.mrb[0].mxu0
      %v1132 = vadd.f32 0.0, %v1131
      %v1133 = vpop.f32.mrb[0].mxu0
      %1134 = vmatprep.mubr.bf16.mxu0 0
      %1135 = vmatmul.mubr.bf16.gmra.mrb[0].mxu0 %v1026
      %v1136 = vpop.f32.mrb[0].mxu0
      %v1137 = vadd.f32 0.0, %v1136
      %v1138 = vpop.f32.mrb[0].mxu0
      %v1139 = vpop.f32.mrb[0].mxu0
      %v1140 = vadd.f32 0.0, %v1139
      %v1141 = vpop.f32.mrb[0].mxu0
      %1142 = vmatprep.mubr.bf16.mxu0 0
      %1143 = vmatmul.mubr.bf16.gmra.mrb[0].mxu0 %v1027
      %v1144 = vpop.f32.mrb[0].mxu0
      %v1145 = vadd.f32 0.0, %v1144
      %v1146 = vpop.f32.mrb[0].mxu0
      %v1147 = vpop.f32.mrb[0].mxu0
      %v1148 = vadd.f32 0.0, %v1147
      %v1149 = vpop.f32.mrb[0].mxu0
      %1150 = vmatprep.mubr.bf16.mxu0 0
      %1151 = vmatmul.mubr.bf16.gmra.mrb[0].mxu0 %v1028
      %v1152 = vpop.f32.mrb[0].mxu0
      %v1153 = vadd.f32 0.0, %v1152
      %v1154 = vpop.f32.mrb[0].mxu0
      %v1155 = vpop.f32.mrb[0].mxu0
      %v1156 = vadd.f32 0.0, %v1155
      %v1157 = vpop.f32.mrb[0].mxu0
      %1158 = vdwg.mxu0
      %v1159 = vadd.f32 %v1013, %v1129
      %v1160 = vadd.f32 %v1014, %v1132
      %v1161 = vadd.f32 %v1015, %v1137
      %v1162 = vadd.f32 %v1016, %v1140
      %v1163 = vadd.f32 %v1017, %v1145
      %v1164 = vadd.f32 %v1018, %v1148
      %v1165 = vadd.f32 %v1019, %v1153
      %v1166 = vadd.f32 %v1020, %v1156
      %v1167 = vpack.c.bf16 %v238, %v236
      %s1168 = scalar_lea.vmem %s1, 384
      %v1169 = vld [vmem:[%s1168] sm:$0xf]
      %v1170 = vld [vmem:[%s1168 + $0x4] sm:$0xf]
      %v1171 = vld [vmem:[%s1168 + $0x8] sm:$0xf]
      %v1172 = vld [vmem:[%s1168 + $0xc] sm:$0xf]
      %v1173 = vld [vmem:[%s1168 + $0x10] sm:$0xf]
      %v1174 = vld [vmem:[%s1168 + $0x14] sm:$0xf]
      %v1175 = vld [vmem:[%s1168 + $0x18] sm:$0xf]
      %v1176 = vld [vmem:[%s1168 + $0x1c] sm:$0xf]
      %v1177 = vld [vmem:[%s1168 + $0x20] sm:$0xf]
      %v1178 = vld [vmem:[%s1168 + $0x24] sm:$0xf]
      %v1179 = vld [vmem:[%s1168 + $0x28] sm:$0xf]
      %v1180 = vld [vmem:[%s1168 + $0x2c] sm:$0xf]
      %v1181 = vld [vmem:[%s1168 + $0x30] sm:$0xf]
      %v1182 = vld [vmem:[%s1168 + $0x34] sm:$0xf]
      %v1183 = vld [vmem:[%s1168 + $0x38] sm:$0xf]
      %v1184 = vld [vmem:[%s1168 + $0x3c] sm:$0xf]
      %v1201 = vunpack.c.l.b16 %v1169
      %v1202 = vunpack.c.l.b16 %v1170
      %v1203 = vunpack.c.l.b16 %v1171
      %v1204 = vunpack.c.l.b16 %v1172
      %v1205 = vunpack.c.l.b16 %v1173
      %v1206 = vunpack.c.l.b16 %v1174
      %v1207 = vunpack.c.l.b16 %v1175
      %v1208 = vunpack.c.l.b16 %v1176
      %v1209 = vunpack.c.l.b16 %v1177
      %v1210 = vunpack.c.l.b16 %v1178
      %v1211 = vunpack.c.l.b16 %v1179
      %v1212 = vunpack.c.l.b16 %v1180
      %v1213 = vunpack.c.l.b16 %v1181
      %v1214 = vunpack.c.l.b16 %v1182
      %v1215 = vunpack.c.l.b16 %v1183
      %v1216 = vunpack.c.l.b16 %v1184
      %v1217 = vpack.c.b16 %v1202, %v1201
      %v1218 = vpack.c.b16 %v1204, %v1203
      %v1219 = vpack.c.b16 %v1206, %v1205
      %v1220 = vpack.c.b16 %v1208, %v1207
      %v1221 = vpack.c.b16 %v1210, %v1209
      %v1222 = vpack.c.b16 %v1212, %v1211
      %v1223 = vpack.c.b16 %v1214, %v1213
      %v1224 = vpack.c.b16 %v1216, %v1215
      %1233 = vmatprep.subr.bf16.mxu0 0
      %1234 = vmatpush1.bf16.msra.mxu0 %v1217
      %1235 = vmatprep.subr.bf16.mxu0 0
      %1236 = vmatpush1.bf16.msra.mxu0 %v1218
      %1237 = vmatprep.subr.bf16.mxu0 0
      %1238 = vmatpush1.bf16.msra.mxu0 %v1219
      %1239 = vmatprep.subr.bf16.mxu0 0
      %1240 = vmatpush1.bf16.msra.mxu0 %v1220
      %1241 = vmatprep.subr.bf16.mxu0 0
      %1242 = vmatpush1.bf16.msra.mxu0 %v1221
      %1243 = vmatprep.subr.bf16.mxu0 0
      %1244 = vmatpush1.bf16.msra.mxu0 %v1222
      %1245 = vmatprep.subr.bf16.mxu0 0
      %1246 = vmatpush1.bf16.msra.mxu0 %v1223
      %1247 = vmatprep.subr.bf16.mxu0 0
      %1248 = vmatpush1.bf16.msra.mxu0 %v1224
      %1249 = vmatprep.subr.bf16.mxu0 0
      %1250 = vmatpush1.bf16.msra.mxu0 0
      %1251 = vmatprep.subr.bf16.mxu0 0
      %1252 = vmatpush1.bf16.msra.mxu0 0
      %1253 = vmatprep.subr.bf16.mxu0 0
      %1254 = vmatpush1.bf16.msra.mxu0 0
      %1255 = vmatprep.subr.bf16.mxu0 0
      %1256 = vmatpush1.bf16.msra.mxu0 0
      %1257 = vmatprep.subr.bf16.mxu0 0
      %1258 = vmatpush1.bf16.msra.mxu0 0
      %1259 = vmatprep.subr.bf16.mxu0 0
      %1260 = vmatpush1.bf16.msra.mxu0 0
      %1261 = vmatprep.subr.bf16.mxu0 0
      %1262 = vmatpush1.bf16.msra.mxu0 0
      %1263 = vmatprep.subr.bf16.mxu0 0
      %1264 = vmatpush1.bf16.msra.mxu0 0
      %1265 = vmatprep.mubr.bf16.mxu0 0
      %1266 = vmatmul.mubr.bf16.gmra.mrb[0].mxu0 %v241
      %v1267 = vpop.f32.mrb[0].mxu0
      %v1268 = vadd.f32 0.0, %v1267
      %v1269 = vpop.f32.mrb[0].mxu0
      %v1270 = vpop.f32.mrb[0].mxu0
      %v1271 = vadd.f32 0.0, %v1270
      %v1272 = vpop.f32.mrb[0].mxu0
      %1273 = vmatprep.mubr.bf16.mxu0 0
      %1274 = vmatmul.mubr.bf16.gmra.mrb[0].mxu0 %v242
      %v1275 = vpop.f32.mrb[0].mxu0
      %v1276 = vadd.f32 0.0, %v1275
      %v1277 = vpop.f32.mrb[0].mxu0
      %v1278 = vpop.f32.mrb[0].mxu0
      %v1279 = vadd.f32 0.0, %v1278
      %v1280 = vpop.f32.mrb[0].mxu0
      %1281 = vmatprep.mubr.bf16.mxu0 0
      %1282 = vmatmul.mubr.bf16.gmra.mrb[0].mxu0 %v243
      %v1283 = vpop.f32.mrb[0].mxu0
      %v1284 = vadd.f32 0.0, %v1283
      %v1285 = vpop.f32.mrb[0].mxu0
      %v1286 = vpop.f32.mrb[0].mxu0
      %v1287 = vadd.f32 0.0, %v1286
      %v1288 = vpop.f32.mrb[0].mxu0
      %1289 = vmatprep.mubr.bf16.mxu0 0
      %1290 = vmatmul.mubr.bf16.gmra.mrb[0].mxu0 %v1167
      %v1291 = vpop.f32.mrb[0].mxu0
      %v1292 = vadd.f32 0.0, %v1291
      %v1293 = vpop.f32.mrb[0].mxu0
      %v1294 = vpop.f32.mrb[0].mxu0
      %v1295 = vadd.f32 0.0, %v1294
      %v1296 = vpop.f32.mrb[0].mxu0
      %1297 = vdwg.mxu0
      %v1298 = vadd.f32 %v1159, %v1268
      %v1299 = vadd.f32 %v1160, %v1271
      %v1300 = vadd.f32 %v1161, %v1276
      %v1301 = vadd.f32 %v1162, %v1279
      %v1302 = vadd.f32 %v1163, %v1284
      %v1303 = vadd.f32 %v1164, %v1287
      %v1304 = vadd.f32 %v1165, %v1292
      %v1305 = vadd.f32 %v1166, %v1295
      %v1308 = vrot.slane %v238, 1
      %v1309 = vrot.slane %v239, 1
      %v1310 = vsel %vm276, %v1308, %v1309
      %v1312 = vpack.c.bf16 %v1310, %v877
      %s1313 = scalar_lea.vmem %s1, 448
      %v1314 = vld [vmem:[%s1313] sm:$0xf]
      %v1315 = vld [vmem:[%s1313 + $0x4] sm:$0xf]
      %v1316 = vld [vmem:[%s1313 + $0x8] sm:$0xf]
      %v1317 = vld [vmem:[%s1313 + $0xc] sm:$0xf]
      %v1318 = vld [vmem:[%s1313 + $0x10] sm:$0xf]
      %v1319 = vld [vmem:[%s1313 + $0x14] sm:$0xf]
      %v1320 = vld [vmem:[%s1313 + $0x18] sm:$0xf]
      %v1321 = vld [vmem:[%s1313 + $0x1c] sm:$0xf]
      %v1322 = vld [vmem:[%s1313 + $0x20] sm:$0xf]
      %v1323 = vld [vmem:[%s1313 + $0x24] sm:$0xf]
      %v1324 = vld [vmem:[%s1313 + $0x28] sm:$0xf]
      %v1325 = vld [vmem:[%s1313 + $0x2c] sm:$0xf]
      %v1326 = vld [vmem:[%s1313 + $0x30] sm:$0xf]
      %v1327 = vld [vmem:[%s1313 + $0x34] sm:$0xf]
      %v1328 = vld [vmem:[%s1313 + $0x38] sm:$0xf]
      %v1329 = vld [vmem:[%s1313 + $0x3c] sm:$0xf]
      %v1346 = vunpack.c.l.b16 %v1314
      %v1347 = vunpack.c.l.b16 %v1315
      %v1348 = vunpack.c.l.b16 %v1316
      %v1349 = vunpack.c.l.b16 %v1317
      %v1350 = vunpack.c.l.b16 %v1318
      %v1351 = vunpack.c.l.b16 %v1319
      %v1352 = vunpack.c.l.b16 %v1320
      %v1353 = vunpack.c.l.b16 %v1321
      %v1354 = vunpack.c.l.b16 %v1322
      %v1355 = vunpack.c.l.b16 %v1323
      %v1356 = vunpack.c.l.b16 %v1324
      %v1357 = vunpack.c.l.b16 %v1325
      %v1358 = vunpack.c.l.b16 %v1326
      %v1359 = vunpack.c.l.b16 %v1327
      %v1360 = vunpack.c.l.b16 %v1328
      %v1361 = vunpack.c.l.b16 %v1329
      %v1362 = vpack.c.b16 %v1347, %v1346
      %v1363 = vpack.c.b16 %v1349, %v1348
      %v1364 = vpack.c.b16 %v1351, %v1350
      %v1365 = vpack.c.b16 %v1353, %v1352
      %v1366 = vpack.c.b16 %v1355, %v1354
      %v1367 = vpack.c.b16 %v1357, %v1356
      %v1368 = vpack.c.b16 %v1359, %v1358
      %v1369 = vpack.c.b16 %v1361, %v1360
      %1378 = vmatprep.subr.bf16.mxu0 0
      %1379 = vmatpush1.bf16.msra.mxu0 %v1362
      %1380 = vmatprep.subr.bf16.mxu0 0
      %1381 = vmatpush1.bf16.msra.mxu0 %v1363
      %1382 = vmatprep.subr.bf16.mxu0 0
      %1383 = vmatpush1.bf16.msra.mxu0 %v1364
      %1384 = vmatprep.subr.bf16.mxu0 0
      %1385 = vmatpush1.bf16.msra.mxu0 %v1365
      %1386 = vmatprep.subr.bf16.mxu0 0
      %1387 = vmatpush1.bf16.msra.mxu0 %v1366
      %1388 = vmatprep.subr.bf16.mxu0 0
      %1389 = vmatpush1.bf16.msra.mxu0 %v1367
      %1390 = vmatprep.subr.bf16.mxu0 0
      %1391 = vmatpush1.bf16.msra.mxu0 %v1368
      %1392 = vmatprep.subr.bf16.mxu0 0
      %1393 = vmatpush1.bf16.msra.mxu0 %v1369
      %1394 = vmatprep.subr.bf16.mxu0 0
      %1395 = vmatpush1.bf16.msra.mxu0 0
      %1396 = vmatprep.subr.bf16.mxu0 0
      %1397 = vmatpush1.bf16.msra.mxu0 0
      %1398 = vmatprep.subr.bf16.mxu0 0
      %1399 = vmatpush1.bf16.msra.mxu0 0
      %1400 = vmatprep.subr.bf16.mxu0 0
      %1401 = vmatpush1.bf16.msra.mxu0 0
      %1402 = vmatprep.subr.bf16.mxu0 0
      %1403 = vmatpush1.bf16.msra.mxu0 0
      %1404 = vmatprep.subr.bf16.mxu0 0
      %1405 = vmatpush1.bf16.msra.mxu0 0
      %1406 = vmatprep.subr.bf16.mxu0 0
      %1407 = vmatpush1.bf16.msra.mxu0 0
      %1408 = vmatprep.subr.bf16.mxu0 0
      %1409 = vmatpush1.bf16.msra.mxu0 0
      %1410 = vmatprep.mubr.bf16.mxu0 0
      %1411 = vmatmul.mubr.bf16.gmra.mrb[0].mxu0 %v310
      %v1412 = vpop.f32.mrb[0].mxu0
      %v1413 = vadd.f32 0.0, %v1412
      %v1414 = vpop.f32.mrb[0].mxu0
      %v1415 = vpop.f32.mrb[0].mxu0
      %v1416 = vadd.f32 0.0, %v1415
      %v1417 = vpop.f32.mrb[0].mxu0
      %1418 = vmatprep.mubr.bf16.mxu0 0
      %1419 = vmatmul.mubr.bf16.gmra.mrb[0].mxu0 %v311
      %v1420 = vpop.f32.mrb[0].mxu0
      %v1421 = vadd.f32 0.0, %v1420
      %v1422 = vpop.f32.mrb[0].mxu0
      %v1423 = vpop.f32.mrb[0].mxu0
      %v1424 = vadd.f32 0.0, %v1423
      %v1425 = vpop.f32.mrb[0].mxu0
      %1426 = vmatprep.mubr.bf16.mxu0 0
      %1427 = vmatmul.mubr.bf16.gmra.mrb[0].mxu0 %v312
      %v1428 = vpop.f32.mrb[0].mxu0
      %v1429 = vadd.f32 0.0, %v1428
      %v1430 = vpop.f32.mrb[0].mxu0
      %v1431 = vpop.f32.mrb[0].mxu0
      %v1432 = vadd.f32 0.0, %v1431
      %v1433 = vpop.f32.mrb[0].mxu0
      %1434 = vmatprep.mubr.bf16.mxu0 0
      %1435 = vmatmul.mubr.bf16.gmra.mrb[0].mxu0 %v1312
      %v1436 = vpop.f32.mrb[0].mxu0
      %v1437 = vadd.f32 0.0, %v1436
      %v1438 = vpop.f32.mrb[0].mxu0
      %v1439 = vpop.f32.mrb[0].mxu0
      %v1440 = vadd.f32 0.0, %v1439
      %v1441 = vpop.f32.mrb[0].mxu0
      %1442 = vdwg.mxu0
      %v1443 = vadd.f32 %v1298, %v1413
      %v1444 = vadd.f32 %v1299, %v1416
      %v1445 = vadd.f32 %v1300, %v1421
      %v1446 = vadd.f32 %v1301, %v1424
      %v1447 = vadd.f32 %v1302, %v1429
      %v1448 = vadd.f32 %v1303, %v1432
      %v1449 = vadd.f32 %v1304, %v1437
      %v1450 = vadd.f32 %v1305, %v1440
      %v1451 = vrot.slane %v238, 2
      %v1452 = vrot.slane %v239, 2
      %v1453 = vsel %vm556, %v1451, %v1452
      %v1455 = vpack.c.bf16 %v1453, %v1023
      %s1456 = scalar_lea.vmem %s1, 512
      %v1457 = vld [vmem:[%s1456] sm:$0xf]
      %v1458 = vld [vmem:[%s1456 + $0x4] sm:$0xf]
      %v1459 = vld [vmem:[%s1456 + $0x8] sm:$0xf]
      %v1460 = vld [vmem:[%s1456 + $0xc] sm:$0xf]
      %v1461 = vld [vmem:[%s1456 + $0x10] sm:$0xf]
      %v1462 = vld [vmem:[%s1456 + $0x14] sm:$0xf]
      %v1463 = vld [vmem:[%s1456 + $0x18] sm:$0xf]
      %v1464 = vld [vmem:[%s1456 + $0x1c] sm:$0xf]
      %v1465 = vld [vmem:[%s1456 + $0x20] sm:$0xf]
      %v1466 = vld [vmem:[%s1456 + $0x24] sm:$0xf]
      %v1467 = vld [vmem:[%s1456 + $0x28] sm:$0xf]
      %v1468 = vld [vmem:[%s1456 + $0x2c] sm:$0xf]
      %v1469 = vld [vmem:[%s1456 + $0x30] sm:$0xf]
      %v1470 = vld [vmem:[%s1456 + $0x34] sm:$0xf]
      %v1471 = vld [vmem:[%s1456 + $0x38] sm:$0xf]
      %v1472 = vld [vmem:[%s1456 + $0x3c] sm:$0xf]
      %v1489 = vunpack.c.l.b16 %v1457
      %v1490 = vunpack.c.l.b16 %v1458
      %v1491 = vunpack.c.l.b16 %v1459
      %v1492 = vunpack.c.l.b16 %v1460
      %v1493 = vunpack.c.l.b16 %v1461
      %v1494 = vunpack.c.l.b16 %v1462
      %v1495 = vunpack.c.l.b16 %v1463
      %v1496 = vunpack.c.l.b16 %v1464
      %v1497 = vunpack.c.l.b16 %v1465
      %v1498 = vunpack.c.l.b16 %v1466
      %v1499 = vunpack.c.l.b16 %v1467
      %v1500 = vunpack.c.l.b16 %v1468
      %v1501 = vunpack.c.l.b16 %v1469
      %v1502 = vunpack.c.l.b16 %v1470
      %v1503 = vunpack.c.l.b16 %v1471
      %v1504 = vunpack.c.l.b16 %v1472
      %v1505 = vpack.c.b16 %v1490, %v1489
      %v1506 = vpack.c.b16 %v1492, %v1491
      %v1507 = vpack.c.b16 %v1494, %v1493
      %v1508 = vpack.c.b16 %v1496, %v1495
      %v1509 = vpack.c.b16 %v1498, %v1497
      %v1510 = vpack.c.b16 %v1500, %v1499
      %v1511 = vpack.c.b16 %v1502, %v1501
      %v1512 = vpack.c.b16 %v1504, %v1503
      %1521 = vmatprep.subr.bf16.mxu0 0
      %1522 = vmatpush1.bf16.msra.mxu0 %v1505
      %1523 = vmatprep.subr.bf16.mxu0 0
      %1524 = vmatpush1.bf16.msra.mxu0 %v1506
      %1525 = vmatprep.subr.bf16.mxu0 0
      %1526 = vmatpush1.bf16.msra.mxu0 %v1507
      %1527 = vmatprep.subr.bf16.mxu0 0
      %1528 = vmatpush1.bf16.msra.mxu0 %v1508
      %1529 = vmatprep.subr.bf16.mxu0 0
      %1530 = vmatpush1.bf16.msra.mxu0 %v1509
      %1531 = vmatprep.subr.bf16.mxu0 0
      %1532 = vmatpush1.bf16.msra.mxu0 %v1510
      %1533 = vmatprep.subr.bf16.mxu0 0
      %1534 = vmatpush1.bf16.msra.mxu0 %v1511
      %1535 = vmatprep.subr.bf16.mxu0 0
      %1536 = vmatpush1.bf16.msra.mxu0 %v1512
      %1537 = vmatprep.subr.bf16.mxu0 0
      %1538 = vmatpush1.bf16.msra.mxu0 0
      %1539 = vmatprep.subr.bf16.mxu0 0
      %1540 = vmatpush1.bf16.msra.mxu0 0
      %1541 = vmatprep.subr.bf16.mxu0 0
      %1542 = vmatpush1.bf16.msra.mxu0 0
      %1543 = vmatprep.subr.bf16.mxu0 0
      %1544 = vmatpush1.bf16.msra.mxu0 0
      %1545 = vmatprep.subr.bf16.mxu0 0
      %1546 = vmatpush1.bf16.msra.mxu0 0
      %1547 = vmatprep.subr.bf16.mxu0 0
      %1548 = vmatpush1.bf16.msra.mxu0 0
      %1549 = vmatprep.subr.bf16.mxu0 0
      %1550 = vmatpush1.bf16.msra.mxu0 0
      %1551 = vmatprep.subr.bf16.mxu0 0
      %1552 = vmatpush1.bf16.msra.mxu0 0
      %1553 = vmatprep.mubr.bf16.mxu0 0
      %1554 = vmatmul.mubr.bf16.gmra.mrb[0].mxu0 %v590
      %v1555 = vpop.f32.mrb[0].mxu0
      %v1556 = vadd.f32 0.0, %v1555
      %v1557 = vpop.f32.mrb[0].mxu0
      %v1558 = vpop.f32.mrb[0].mxu0
      %v1559 = vadd.f32 0.0, %v1558
      %v1560 = vpop.f32.mrb[0].mxu0
      %1561 = vmatprep.mubr.bf16.mxu0 0
      %1562 = vmatmul.mubr.bf16.gmra.mrb[0].mxu0 %v591
      %v1563 = vpop.f32.mrb[0].mxu0
      %v1564 = vadd.f32 0.0, %v1563
      %v1565 = vpop.f32.mrb[0].mxu0
      %v1566 = vpop.f32.mrb[0].mxu0
      %v1567 = vadd.f32 0.0, %v1566
      %v1568 = vpop.f32.mrb[0].mxu0
      %1569 = vmatprep.mubr.bf16.mxu0 0
      %1570 = vmatmul.mubr.bf16.gmra.mrb[0].mxu0 %v592
      %v1571 = vpop.f32.mrb[0].mxu0
      %v1572 = vadd.f32 0.0, %v1571
      %v1573 = vpop.f32.mrb[0].mxu0
      %v1574 = vpop.f32.mrb[0].mxu0
      %v1575 = vadd.f32 0.0, %v1574
      %v1576 = vpop.f32.mrb[0].mxu0
      %1577 = vmatprep.mubr.bf16.mxu0 0
      %1578 = vmatmul.mubr.bf16.gmra.mrb[0].mxu0 %v1455
      %v1579 = vpop.f32.mrb[0].mxu0
      %v1580 = vadd.f32 0.0, %v1579
      %v1581 = vpop.f32.mrb[0].mxu0
      %v1582 = vpop.f32.mrb[0].mxu0
      %v1583 = vadd.f32 0.0, %v1582
      %v1584 = vpop.f32.mrb[0].mxu0
      %1585 = vdwg.mxu0
      %v1586 = vadd.f32 %v1443, %v1556
      %v1587 = vadd.f32 %v1444, %v1559
      %v1588 = vadd.f32 %v1445, %v1564
      %v1589 = vadd.f32 %v1446, %v1567
      %v1590 = vadd.f32 %v1447, %v1572
      %v1591 = vadd.f32 %v1448, %v1575
      %v1592 = vadd.f32 %v1449, %v1580
      %v1593 = vadd.f32 %v1450, %v1583
      %v1594 = vld [vmem:[%s2] sm:$0x1]
      %v1596 = vlaneseq
      %v1597 = vshrl.u32 %v1596, 7
      %v1598 = vsub.s32 0, %v1597
      %v1599 = vrot.slane %v1594, %v1598
      %v1601 = vmul.f32 %v1586, %v1599
      %v1602 = vmul.f32 %v1587, %v1599
      %v1603 = vmul.f32 %v1588, %v1599
      %v1604 = vmul.f32 %v1589, %v1599
      %v1605 = vmul.f32 %v1590, %v1599
      %v1606 = vmul.f32 %v1591, %v1599
      %v1607 = vmul.f32 %v1592, %v1599
      %v1608 = vmul.f32 %v1593, %v1599
      %v1609 = vld [vmem:[%s3] sm:$0x1]
      %v1611 = vlaneseq
      %v1612 = vshrl.u32 %v1611, 7
      %v1613 = vsub.s32 0, %v1612
      %v1614 = vrot.slane %v1609, %v1613
      %v1616 = vadd.f32 %v1601, %v1614
      %v1617 = vadd.f32 %v1602, %v1614
      %v1618 = vadd.f32 %v1603, %v1614
      %v1619 = vadd.f32 %v1604, %v1614
      %v1620 = vadd.f32 %v1605, %v1614
      %v1621 = vadd.f32 %v1606, %v1614
      %v1622 = vadd.f32 %v1607, %v1614
      %v1623 = vadd.f32 %v1608, %v1614
      %v1624 = vmax.f32 %v1616, 0.0
      %v1625 = vmax.f32 %v1617, 0.0
      %v1626 = vmax.f32 %v1618, 0.0
      %v1627 = vmax.f32 %v1619, 0.0
      %v1628 = vmax.f32 %v1620, 0.0
      %v1629 = vmax.f32 %v1621, 0.0
      %v1630 = vmax.f32 %v1622, 0.0
      %v1631 = vmax.f32 %v1623, 0.0
      %v1632 = vpack.c.bf16 %v1625, %v1624
      %v1633 = vpack.c.bf16 %v1627, %v1626
      %v1634 = vpack.c.bf16 %v1629, %v1628
      %v1635 = vpack.c.bf16 %v1631, %v1630
      %v1640 = vunpack.c.l.b16 %v1632
      %v1641 = vunpack.c.h.b16 %v1632
      %v1642 = vunpack.c.l.b16 %v1633
      %v1643 = vunpack.c.h.b16 %v1633
      %v1644 = vunpack.c.l.b16 %v1634
      %v1645 = vunpack.c.h.b16 %v1634
      %v1646 = vunpack.c.l.b16 %v1635
      %v1647 = vunpack.c.h.b16 %v1635
      %v1648 = vpack.c.b16 %v1640, %v1640
      %v1649 = vpack.c.b16 %v1641, %v1641
      %v1650 = vpack.c.b16 %v1642, %v1642
      %v1651 = vpack.c.b16 %v1643, %v1643
      %v1652 = vpack.c.b16 %v1644, %v1644
      %v1653 = vpack.c.b16 %v1645, %v1645
      %v1654 = vpack.c.b16 %v1646, %v1646
      %v1655 = vpack.c.b16 %v1647, %v1647
      %1664 = vst [vmem:[%s197] sm:$0xf] %v1648
      %1665 = vst [vmem:[%s197 + $0x4] sm:$0xf] %v1649
      %1666 = vst [vmem:[%s197 + $0x8] sm:$0xf] %v1650
      %1667 = vst [vmem:[%s197 + $0xc] sm:$0xf] %v1651
      %1668 = vst [vmem:[%s197 + $0x10] sm:$0xf] %v1652
      %1669 = vst [vmem:[%s197 + $0x14] sm:$0xf] %v1653
      %1670 = vst [vmem:[%s197 + $0x18] sm:$0xf] %v1654
      %1671 = vst [vmem:[%s197 + $0x1c] sm:$0xf] %v1655
      %s1672 = smul.u32 8, %s15
      %p1673 = scmp.lt.s32.totalorder %s1672, 15
      %s1674 = scalar_select %p1673, %s1672, 15
      %s1675 = smul.addr %s1674, 4
      %s1676 = scalar_lea.vmem %s4, %s1675
      // Predicated region
      $region37: #{stage3_forward.9} parent=35 // pred_check
        %p1677 = pneg %p122
      $region38: #{stage3_forward.9} parent=35 // pred_check_branch
        %1679 = sbr.rel (%p1677) target = $region40
      $region39: #{stage3_forward.9} parent=35 // pred_region
        %s1680 = smul.u32 8, %s15
      $region40: #{stage3_forward.9} parent=35 // pred_fallthru
        _
    $region36: #{stage3_forward.9} parent=5 // pred_fallthru
      _
    %p1681 = scmp.le.s32.totalorder 2, %s10
    // Predicated region
    $region41: #{stage3_forward.9} parent=5 // pred_check
      %p1682 = pneg %p1681
    $region42: #{stage3_forward.9} parent=5 // pred_check_branch
      %1684 = sbr.rel (%p1682) target = $region44
    $region43: #{stage3_forward.9} parent=5 // pred_region
      %s1685 = ssub.s32 %s10, 2
      // Predicated region
      $region45: #{stage3_forward.9} parent=43 // pred_check
        %p1686 = pneg %p128
      $region46: #{stage3_forward.9} parent=43 // pred_check_branch
        %1688 = sbr.rel (%p1686) target = $region48
      $region47: #{stage3_forward.9} parent=43 // pred_region
        %s1689 = smul.u32 8, %s16
        %p1690 = scmp.lt.s32.totalorder %s1689, 15
        %s1691 = scalar_select %p1690, %s1689, 15
        %s1692 = smul.addr %s1691, 4
        %s1693 = scalar_lea.vmem %s4, %s1692
      $region48: #{stage3_forward.9} parent=43 // pred_fallthru
        _
    $region44: #{stage3_forward.9} parent=5 // pred_fallthru
      _
  $region6: #{stage3_forward.9} parent=0 // loop_footer
    %s14 = sadd.s32 1, %s10
  $region7: #{stage3_forward.9} parent=0 // loop_footer_branch
    %9 = sbr.rel target = $region3
  $region8: #{stage3_forward.9} parent=0 // loop_exit
    _

// kernel: stage3_forward.13
$region0: #{stage3_forward.13}
  #allocation0 [shape = 'u32[]', space=smem, size = 0x4, offset = 0x4, fixed_abs, tag = 'smem constant byte address 0x4 - core index']
  #allocation1 [shape = 'u32[144,128]{1,0:T(1,128)}', space=vmem, size = 0x12000, scoped, tag = 'internal scratch']
  %s0 = inlined_call_operand.vmem [shape: bf16[128,128], index: 0, kind: input, shape index: {}]
  %s1 = inlined_call_operand.vmem [shape: bf16[128,512], index: 1, kind: input, shape index: {}]
  %s2 = inlined_call_operand.vmem [shape: f32[1,512], index: 2, kind: input, shape index: {}]
  %s3 = inlined_call_operand.vmem [shape: f32[1,512], index: 3, kind: input, shape index: {}]
  %s4 = inlined_call_operand.hbm [shape: f32[128,512], index: 4, kind: output, shape index: {}]
  %s5 = sld [smem:[#allocation0]]
  $region87: #{stage3_forward.13} parent=0
    _
  %s7 = ssub.s32 1, %s5
  %s8 = scalar_select 0, %s7, %s5
  $region1: #{stage3_forward.13} parent=0
    #allocation2 [shape = 'u8[131072]{0}', space=vmem, size = 0x20000, scoped, tag = 'input window, operand 1']
    #allocation3 [shape = 'u8[262144]{0}', space=vmem, size = 0x40000, scoped, tag = 'output window, operand 0']
    #allocation4 [shape = 's32[2]{0}', space=sflag, size = 0x8, scoped, tag = 'scoped memory for stage3_forward.13']
    %9 = vsyncpa [#allocation4], 0
    %s10 = scalar_lea.sflag [#allocation4], 1
    %11 = vsyncpa %s10, 0
    loop: start=0, step=1, limit=4
    $region2: #{stage3_forward.13} parent=1 // loop_pre_header
      _
    $region3: #{stage3_forward.13} parent=1 // loop_header
      %s13 = sphi 0, %s17
      %p14 = scmp.ge.s32.totalorder %s13, 4
      %s20 = sphi 0, %s32
      %s21 = sphi 0, %s28
      %s22 = sphi 0, %s20
      %s23 = sphi 0, %s21
      %s24 = sphi 0, %s22
      %s25 = sphi 0, %s23
      %s35 = sphi 0, %s37
      %s38 = sphi 0, %s35
      %s39 = sphi 0, %s38
      %s55 = sphi 0, %s39
      %s61 = sphi 0, %s63
      %s64 = sphi 0, %s61
      %s65 = sphi 0, %s64
      %s81 = sphi 0, %s65
      %s87 = sphi 0, %s89
      %s90 = sphi 0, %s87
      %s91 = sphi 0, %s90
      %s107 = sphi 0, %s91
      %s113 = sphi 0, %s115
      %s116 = sphi 0, %s113
      %s117 = sphi 0, %s116
      %s133 = sphi 0, %s117
      %s141 = sphi 0, %s143
      %s144 = sphi 0, %s141
      %s145 = sphi 0, %s144
      %s161 = sphi 0, %s145
    $region4: #{stage3_forward.13} parent=1 // loop_header_branch
      %16 = sbr.rel (%p14) target = $region8
    $region5: #{stage3_forward.13} parent=1 // loop_body
      %s18 = ssub.s32 %s13, 1
      %s19 = ssub.s32 %s13, 2
      %s26 = sadd.s32 1, %s21
      %p27 = scmp.ge.s32.totalorder %s26, 2
      %s28 = scalar_select %p27, 0, %s26
      %s29 = sadd.s32 1, %s20
      %s30 = scalar_select %p27, %s29, %s20
      %p31 = scmp.ge.s32.totalorder %s30, 1
      %s32 = scalar_select %p31, 0, %s30
      %s33 = ssub.s32 %s20, %s32
      %p34 = scmp.eq.s32.totalorder %s33, 0
      %s36 = sadd.s32 %s35, 1
      %s37 = scalar_select %p34, %s35, %s36
      %p40 = pneg %p34
      %p41 = scmp.eq.s32.totalorder %s13, 1
      %p42 = por %p40, %p41
      %p43 = scmp.ne.s32.totalorder %s35, %s38
      %p44 = scmp.eq.s32.totalorder %s13, 0
      %p45 = por %p43, %p44
      %p46 = scmp.ne.s32.totalorder %s35, %s38
      %p47 = scmp.eq.s32.totalorder %s18, 1
      %p48 = por %p46, %p47
      %p49 = scmp.ne.s32.totalorder %s38, %s39
      %p50 = scmp.eq.s32.totalorder %s18, 0
      %p51 = por %p49, %p50
      %p52 = scmp.ne.s32.totalorder %s38, %s39
      %p53 = scmp.eq.s32.totalorder %s19, 1
      %p54 = por %p52, %p53
      %p56 = scmp.ne.s32.totalorder %s39, %s55
      %p57 = scmp.eq.s32.totalorder %s19, 0
      %p58 = por %p56, %p57
      %s59 = ssub.s32 %s21, %s28
      %p60 = scmp.eq.s32.totalorder %s59, 0
      %s62 = sadd.s32 %s61, 1
      %s63 = scalar_select %p60, %s61, %s62
      %p66 = pneg %p60
      %p67 = scmp.eq.s32.totalorder %s13, 1
      %p68 = por %p66, %p67
      %p69 = scmp.ne.s32.totalorder %s61, %s64
      %p70 = scmp.eq.s32.totalorder %s13, 0
      %p71 = por %p69, %p70
      %p72 = scmp.ne.s32.totalorder %s61, %s64
      %p73 = scmp.eq.s32.totalorder %s18, 1
      %p74 = por %p72, %p73
      %p75 = scmp.ne.s32.totalorder %s64, %s65
      %p76 = scmp.eq.s32.totalorder %s18, 0
      %p77 = por %p75, %p76
      %p78 = scmp.ne.s32.totalorder %s64, %s65
      %p79 = scmp.eq.s32.totalorder %s19, 1
      %p80 = por %p78, %p79
      %p82 = scmp.ne.s32.totalorder %s65, %s81
      %p83 = scmp.eq.s32.totalorder %s19, 0
      %p84 = por %p82, %p83
      %s85 = ssub.s32 %s21, %s28
      %p86 = scmp.eq.s32.totalorder %s85, 0
      %s88 = sadd.s32 %s87, 1
      %s89 = scalar_select %p86, %s87, %s88
      %p92 = pneg %p86
      %p93 = scmp.eq.s32.totalorder %s13, 1
      %p94 = por %p92, %p93
      %p95 = scmp.ne.s32.totalorder %s87, %s90
      %p96 = scmp.eq.s32.totalorder %s13, 0
      %p97 = por %p95, %p96
      %p98 = scmp.ne.s32.totalorder %s87, %s90
      %p99 = scmp.eq.s32.totalorder %s18, 1
      %p100 = por %p98, %p99
      %p101 = scmp.ne.s32.totalorder %s90, %s91
      %p102 = scmp.eq.s32.totalorder %s18, 0
      %p103 = por %p101, %p102
      %p104 = scmp.ne.s32.totalorder %s90, %s91
      %p105 = scmp.eq.s32.totalorder %s19, 1
      %p106 = por %p104, %p105
      %p108 = scmp.ne.s32.totalorder %s91, %s107
      %p109 = scmp.eq.s32.totalorder %s19, 0
      %p110 = por %p108, %p109
      %s111 = ssub.s32 %s21, %s28
      %p112 = scmp.eq.s32.totalorder %s111, 0
      %s114 = sadd.s32 %s113, 1
      %s115 = scalar_select %p112, %s113, %s114
      %p118 = pneg %p112
      %p119 = scmp.eq.s32.totalorder %s13, 1
      %p120 = por %p118, %p119
      %p121 = scmp.ne.s32.totalorder %s113, %s116
      %p122 = scmp.eq.s32.totalorder %s13, 0
      %p123 = por %p121, %p122
      %p124 = scmp.ne.s32.totalorder %s113, %s116
      %p125 = scmp.eq.s32.totalorder %s18, 1
      %p126 = por %p124, %p125
      %p127 = scmp.ne.s32.totalorder %s116, %s117
      %p128 = scmp.eq.s32.totalorder %s18, 0
      %p129 = por %p127, %p128
      %p130 = scmp.ne.s32.totalorder %s116, %s117
      %p131 = scmp.eq.s32.totalorder %s19, 1
      %p132 = por %p130, %p131
      %p134 = scmp.ne.s32.totalorder %s117, %s133
      %p135 = scmp.eq.s32.totalorder %s19, 0
      %p136 = por %p134, %p135
      %s137 = ssub.s32 %s20, %s32
      %s138 = ssub.s32 %s21, %s28
      %s139 = sor.u32 %s137, %s138
      %p140 = scmp.eq.s32.totalorder %s139, 0
      %s142 = sadd.s32 %s141, 1
      %s143 = scalar_select %p140, %s141, %s142
      %p146 = pneg %p140
      %p147 = scmp.eq.s32.totalorder %s13, 1
      %p148 = por %p146, %p147
      %p149 = scmp.ne.s32.totalorder %s141, %s144
      %p150 = scmp.eq.s32.totalorder %s13, 0
      %p151 = por %p149, %p150
      %p152 = scmp.ne.s32.totalorder %s141, %s144
      %p153 = scmp.eq.s32.totalorder %s18, 1
      %p154 = por %p152, %p153
      %p155 = scmp.ne.s32.totalorder %s144, %s145
      %p156 = scmp.eq.s32.totalorder %s18, 0
      %p157 = por %p155, %p156
      %p158 = scmp.ne.s32.totalorder %s144, %s145
      %p159 = scmp.eq.s32.totalorder %s19, 1
      %p160 = por %p158, %p159
      %p162 = scmp.ne.s32.totalorder %s145, %s161
      %p163 = scmp.eq.s32.totalorder %s19, 0
      %p164 = por %p162, %p163
      %p165 = scmp.le.s32.totalorder 1, %s13
      %p166 = scmp.lt.s32.totalorder %s13, 3
      %p167 = pnand %p165, %p166
      %p168 = pneg %p167
      // Predicated region
      $region9: #{stage3_forward.13} parent=5 // pred_check
        _
      $region10: #{stage3_forward.13} parent=5 // pred_check_branch
        %170 = sbr.rel (%p167) target = $region12
      $region11: #{stage3_forward.13} parent=5 // pred_region
        %s171 = ssub.s32 %s13, 1
        // Predicated region
        $region13: #{stage3_forward.13} parent=11 // pred_check
          %p172 = pneg %p51
        $region14: #{stage3_forward.13} parent=11 // pred_check_branch
          %174 = sbr.rel (%p172) target = $region16
        $region15: #{stage3_forward.13} parent=11 // pred_region
          %s175 = smul.u32 16, %s22
          %p176 = scmp.lt.s32.totalorder %s175, 15
          %s177 = scalar_select %p176, %s175, 15
          %s178 = smul.addr %s177, 4
          %s179 = scalar_lea.vmem %s0, %s178
          %s180 = smul.u32 16, %s22
        $region16: #{stage3_forward.13} parent=11 // pred_fallthru
          _
      $region12: #{stage3_forward.13} parent=5 // pred_fallthru
        _
      %p181 = scmp.lt.s32.totalorder %s13, 2
      // Predicated region
      $region17: #{stage3_forward.13} parent=5 // pred_check
        %p182 = pneg %p181
      $region18: #{stage3_forward.13} parent=5 // pred_check_branch
        %184 = sbr.rel (%p182) target = $region20
      $region19: #{stage3_forward.13} parent=5 // pred_region
        // Predicated region
        $region21: #{stage3_forward.13} parent=19 // pred_check
          %p185 = pneg %p71
        $region22: #{stage3_forward.13} parent=19 // pred_check_branch
          %187 = sbr.rel (%p185) target = $region24
        $region23: #{stage3_forward.13} parent=19 // pred_region
          %s188 = sand.u32 %s61, 1
          %s189 = sand.u32 %s61, 1
          %s190 = smul.addr %s189, 128
          %s191 = scalar_lea.vmem [#allocation2], %s190
          %s192 = smul.u32 2, %s21
          %s193 = smul.addr %s192, 4
          %s194 = scalar_lea.vmem %s1, %s193
          // Predicated region
          $region25: #{stage3_forward.13} parent=23 // pred_check
            _
          $region26: #{stage3_forward.13} parent=23 // pred_check_branch
            %196 = sbr.rel (0) target = $region28
          $region27: #{stage3_forward.13} parent=23 // pred_region
            // Predicated region
            $region29: #{stage3_forward.13} parent=27 // pred_check
              _
            $region30: #{stage3_forward.13} parent=27 // pred_check_branch
              %198 = sbr.rel (0) target = $region32
            $region31: #{stage3_forward.13} parent=27 // pred_region
              // Predicated region
              $region44: #{stage3_forward.13} parent=31 // pred_check
                _
              $region45: #{stage3_forward.13} parent=31 // pred_check_branch
                %243 = sbr.rel (0) target = $region47
              $region46: #{stage3_forward.13} parent=31 // pred_region
                loop: start=0, step=1, limit=1
                $region48: #{stage3_forward.13} parent=46 // loop_pre_header
                  _
                $region49: #{stage3_forward.13} parent=46 // loop_header
                  %s245 = sphi 0, %s249
                  %p246 = scmp.ge.s32.totalorder %s245, 1
                  %s250 = sphi %s194, %s194
                  %s251 = sphi %s191, %s191
                $region50: #{stage3_forward.13} parent=46 // loop_header_branch
                  %248 = sbr.rel (%p246) target = $region54
                $region51: #{stage3_forward.13} parent=46 // loop_body
                  %v252 = vld [vmem:[%s250] sm:$0xff]
                  %253 = vst [vmem:[%s251] sm:$0xff] %v252
                  %v254 = vld [vmem:[%s250 + $0x10] sm:$0xff]
                  %255 = vst [vmem:[%s251 + $0x8] sm:$0xff] %v254
                  %v256 = vld [vmem:[%s250 + $0x20] sm:$0xff]
                  %257 = vst [vmem:[%s251 + $0x10] sm:$0xff] %v256
                  %v258 = vld [vmem:[%s250 + $0x30] sm:$0xff]
                  %259 = vst [vmem:[%s251 + $0x18] sm:$0xff] %v258
                  %v260 = vld [vmem:[%s250 + $0x40] sm:$0xff]
                  %261 = vst [vmem:[%s251 + $0x20] sm:$0xff] %v260
                  %v262 = vld [vmem:[%s250 + $0x50] sm:$0xff]
                  %263 = vst [vmem:[%s251 + $0x28] sm:$0xff] %v262
                  %v264 = vld [vmem:[%s250 + $0x60] sm:$0xff]
                  %265 = vst [vmem:[%s251 + $0x30] sm:$0xff] %v264
                  %v266 = vld [vmem:[%s250 + $0x70] sm:$0xff]
                  %267 = vst [vmem:[%s251 + $0x38] sm:$0xff] %v266
                  %v268 = vld [vmem:[%s250 + $0x80] sm:$0xff]
                  %269 = vst [vmem:[%s251 + $0x40] sm:$0xff] %v268
                  %v270 = vld [vmem:[%s250 + $0x90] sm:$0xff]
                  %271 = vst [vmem:[%s251 + $0x48] sm:$0xff] %v270
                  %v272 = vld [vmem:[%s250 + $0xa0] sm:$0xff]
                  %273 = vst [vmem:[%s251 + $0x50] sm:$0xff] %v272
                  %v274 = vld [vmem:[%s250 + $0xb0] sm:$0xff]
                  %275 = vst [vmem:[%s251 + $0x58] sm:$0xff] %v274
                  %v276 = vld [vmem:[%s250 + $0xc0] sm:$0xff]
                  %277 = vst [vmem:[%s251 + $0x60] sm:$0xff] %v276
                  %v278 = vld [vmem:[%s250 + $0xd0] sm:$0xff]
                  %279 = vst [vmem:[%s251 + $0x68] sm:$0xff] %v278
                  %v280 = vld [vmem:[%s250 + $0xe0] sm:$0xff]
                  %281 = vst [vmem:[%s251 + $0x70] sm:$0xff] %v280
                  %v282 = vld [vmem:[%s250 + $0xf0] sm:$0xff]
                  %283 = vst [vmem:[%s251 + $0x78] sm:$0xff] %v282
                $region52: #{stage3_forward.13} parent=46 // loop_footer
                  %s249 = sadd.s32 1, %s245
                $region53: #{stage3_forward.13} parent=46 // loop_footer_branch
                  %244 = sbr.rel target = $region49
                $region54: #{stage3_forward.13} parent=46 // loop_exit
                  _
              $region47: #{stage3_forward.13} parent=31 // pred_fallthru
                _
              // Predicated region
              $region55: #{stage3_forward.13} parent=31 // pred_check
                _
              $region56: #{stage3_forward.13} parent=31 // pred_check_branch
                %285 = sbr.rel target = $region58
              $region57: #{stage3_forward.13} parent=31 // pred_region
                _
              $region58: #{stage3_forward.13} parent=31 // pred_fallthru
                _
            $region32: #{stage3_forward.13} parent=27 // pred_fallthru
              _
            // Predicated region
            $region33: #{stage3_forward.13} parent=27 // pred_check
              _
            $region34: #{stage3_forward.13} parent=27 // pred_check_branch
              %200 = sbr.rel target = $region36
            $region35: #{stage3_forward.13} parent=27 // pred_region
              loop: start=0, step=1, limit=1
              $region37: #{stage3_forward.13} parent=35 // loop_pre_header
                _
              $region38: #{stage3_forward.13} parent=35 // loop_header
                %s203 = sphi 0, %s207
                %p204 = scmp.ge.s32.totalorder %s203, 1
                %s208 = sphi %s194, %s194
                %s209 = sphi %s191, %s191
              $region39: #{stage3_forward.13} parent=35 // loop_header_branch
                %206 = sbr.rel (%p204) target = $region43
              $region40: #{stage3_forward.13} parent=35 // loop_body
                %v210 = vld [vmem:[%s208] sm:$0xff]
                %211 = vst [vmem:[%s209] sm:$0xff] %v210
                %v212 = vld [vmem:[%s208 + $0x10] sm:$0xff]
                %213 = vst [vmem:[%s209 + $0x8] sm:$0xff] %v212
                %v214 = vld [vmem:[%s208 + $0x20] sm:$0xff]
                %215 = vst [vmem:[%s209 + $0x10] sm:$0xff] %v214
                %v216 = vld [vmem:[%s208 + $0x30] sm:$0xff]
                %217 = vst [vmem:[%s209 + $0x18] sm:$0xff] %v216
                %v218 = vld [vmem:[%s208 + $0x40] sm:$0xff]
                %219 = vst [vmem:[%s209 + $0x20] sm:$0xff] %v218
                %v220 = vld [vmem:[%s208 + $0x50] sm:$0xff]
                %221 = vst [vmem:[%s209 + $0x28] sm:$0xff] %v220
                %v222 = vld [vmem:[%s208 + $0x60] sm:$0xff]
                %223 = vst [vmem:[%s209 + $0x30] sm:$0xff] %v222
                %v224 = vld [vmem:[%s208 + $0x70] sm:$0xff]
                %225 = vst [vmem:[%s209 + $0x38] sm:$0xff] %v224
                %v226 = vld [vmem:[%s208 + $0x80] sm:$0xff]
                %227 = vst [vmem:[%s209 + $0x40] sm:$0xff] %v226
                %v228 = vld [vmem:[%s208 + $0x90] sm:$0xff]
                %229 = vst [vmem:[%s209 + $0x48] sm:$0xff] %v228
                %v230 = vld [vmem:[%s208 + $0xa0] sm:$0xff]
                %231 = vst [vmem:[%s209 + $0x50] sm:$0xff] %v230
                %v232 = vld [vmem:[%s208 + $0xb0] sm:$0xff]
                %233 = vst [vmem:[%s209 + $0x58] sm:$0xff] %v232
                %v234 = vld [vmem:[%s208 + $0xc0] sm:$0xff]
                %235 = vst [vmem:[%s209 + $0x60] sm:$0xff] %v234
                %v236 = vld [vmem:[%s208 + $0xd0] sm:$0xff]
                %237 = vst [vmem:[%s209 + $0x68] sm:$0xff] %v236
                %v238 = vld [vmem:[%s208 + $0xe0] sm:$0xff]
                %239 = vst [vmem:[%s209 + $0x70] sm:$0xff] %v238
                %v240 = vld [vmem:[%s208 + $0xf0] sm:$0xff]
                %241 = vst [vmem:[%s209 + $0x78] sm:$0xff] %v240
              $region41: #{stage3_forward.13} parent=35 // loop_footer
                %s207 = sadd.s32 1, %s203
              $region42: #{stage3_forward.13} parent=35 // loop_footer_branch
                %202 = sbr.rel target = $region38
              $region43: #{stage3_forward.13} parent=35 // loop_exit
                _
            $region36: #{stage3_forward.13} parent=27 // pred_fallthru
              _
          $region28: #{stage3_forward.13} parent=23 // pred_fallthru
            _
          %286 = vnop
        $region24: #{stage3_forward.13} parent=19 // pred_fallthru
          _
        // Predicated region
        $region59: #{stage3_forward.13} parent=19 // pred_check
          %p287 = pneg %p97
        $region60: #{stage3_forward.13} parent=19 // pred_check_branch
          %289 = sbr.rel (%p287) target = $region62
        $region61: #{stage3_forward.13} parent=19 // pred_region
          %s290 = smul.u32 2, %s21
          %p291 = scmp.lt.s32.totalorder %s290, 3
          %s292 = scalar_select %p291, %s290, 3
          %s293 = scalar_lea.vmem %s2, %s292
          %s294 = smul.u32 2, %s21
        $region62: #{stage3_forward.13} parent=19 // pred_fallthru
          _
        // Predicated region
        $region63: #{stage3_forward.13} parent=19 // pred_check
          %p295 = pneg %p123
        $region64: #{stage3_forward.13} parent=19 // pred_check_branch
          %297 = sbr.rel (%p295) target = $region66
        $region65: #{stage3_forward.13} parent=19 // pred_region
          %s298 = smul.u32 2, %s21
          %p299 = scmp.lt.s32.totalorder %s298, 3
          %s300 = scalar_select %p299, %s298, 3
          %s301 = scalar_lea.vmem %s3, %s300
          %s302 = smul.u32 2, %s21
        $region66: #{stage3_forward.13} parent=19 // pred_fallthru
          _
      $region20: #{stage3_forward.13} parent=5 // pred_fallthru
        _
      %p303 = scmp.le.s32.totalorder 1, %s13
      %p304 = scmp.lt.s32.totalorder %s13, 3
      %p305 = pnand %p303, %p304
      %p306 = pneg %p305
      // Predicated region
      $region67: #{stage3_forward.13} parent=5 // pred_check
        _
      $region68: #{stage3_forward.13} parent=5 // pred_check_branch
        %308 = sbr.rel (%p305) target = $region70
      $region69: #{stage3_forward.13} parent=5 // pred_region
        %s309 = ssub.s32 %s13, 1
        %s310 = sand.u32 %s64, 1
        %s311 = sand.u32 %s64, 1
        %s312 = smul.addr %s311, 128
        %s313 = scalar_lea.vmem [#allocation2], %s312
        // Predicated region
        $region71: #{stage3_forward.13} parent=69 // pred_check
          %p314 = pneg %p77
        $region72: #{stage3_forward.13} parent=69 // pred_check_branch
          %316 = sbr.rel (%p314) target = $region74
        $region73: #{stage3_forward.13} parent=69 // pred_region
          _
        $region74: #{stage3_forward.13} parent=69 // pred_fallthru
          _
        %s317 = smul.u32 16, %s22
        %p318 = scmp.lt.s32.totalorder %s317, 15
        %s319 = scalar_select %p318, %s317, 15
        %s320 = smul.addr %s319, 4
        %s321 = scalar_lea.vmem %s0, %s320
        %p322 = pneg %p51
        %p323 = pneg %p48
        %s324 = sand.u32 %s64, 1
        %s325 = sand.u32 %s64, 1
        %s326 = smul.addr %s325, 128
        %s327 = scalar_lea.vmem [#allocation2], %s326
        %p328 = pneg %p77
        %p329 = pneg %p74
        %s330 = smul.u32 2, %s23
        %p331 = scmp.lt.s32.totalorder %s330, 3
        %s332 = scalar_select %p331, %s330, 3
        %s333 = scalar_lea.vmem %s2, %s332
        %p334 = pneg %p103
        %p335 = pneg %p100
        %s336 = smul.u32 2, %s23
        %p337 = scmp.lt.s32.totalorder %s336, 3
        %s338 = scalar_select %p337, %s336, 3
        %s339 = scalar_lea.vmem %s3, %s338
        %p340 = pneg %p129
        %p341 = pneg %p126
        %p342 = pneg %p157
        %p343 = pneg %p154
        %s344 = sand.u32 %s144, 1
        %s345 = scalar_lea.sflag [#allocation4], %s344
        %s346 = sand.u32 %s144, 1
        %s347 = smul.addr %s346, 256
        %s348 = scalar_lea.vmem [#allocation3], %s347
        %s349 = smul.u32 16, %s22
        %p350 = scmp.lt.s32.totalorder %s349, 15
        %s351 = scalar_select %p350, %s349, 15
        %s352 = smul.addr %s351, 4
        %s353 = scalar_lea.vmem %s0, %s352
        %s354 = smul.u32 16, %s22
        %s355 = smul.u32 2, %s23
        %s356 = smul.u32 2, %s23
        %p357 = scmp.lt.s32.totalorder %s356, 3
        %s358 = scalar_select %p357, %s356, 3
        %s359 = scalar_lea.vmem %s2, %s358
        %s360 = smul.u32 2, %s23
        %s361 = smul.u32 2, %s23
        %p362 = scmp.lt.s32.totalorder %s361, 3
        %s363 = scalar_select %p362, %s361, 3
        %s364 = scalar_lea.vmem %s3, %s363
        %s365 = smul.u32 2, %s23
        %s366 = smul.u32 16, %s22
        %s367 = smul.u32 2, %s23
        %v369 = vld [vmem:[%s353] sm:$0xf]
        %v370 = vld [vmem:[%s353 + $0x4] sm:$0xf]
        %v371 = vld [vmem:[%s353 + $0x8] sm:$0xf]
        %v372 = vld [vmem:[%s353 + $0xc] sm:$0xf]
        %v373 = vld [vmem:[%s353 + $0x10] sm:$0xf]
        %v374 = vld [vmem:[%s353 + $0x14] sm:$0xf]
        %v375 = vld [vmem:[%s353 + $0x18] sm:$0xf]
        %v376 = vld [vmem:[%s353 + $0x1c] sm:$0xf]
        %v377 = vld [vmem:[%s353 + $0x20] sm:$0xf]
        %v378 = vld [vmem:[%s353 + $0x24] sm:$0xf]
        %v379 = vld [vmem:[%s353 + $0x28] sm:$0xf]
        %v380 = vld [vmem:[%s353 + $0x2c] sm:$0xf]
        %v381 = vld [vmem:[%s353 + $0x30] sm:$0xf]
        %v382 = vld [vmem:[%s353 + $0x34] sm:$0xf]
        %v383 = vld [vmem:[%s353 + $0x38] sm:$0xf]
        %v384 = vld [vmem:[%s353 + $0x3c] sm:$0xf]
        %v385 = vld [vmem:[%s313] sm:$0xff]
        %v386 = vld [vmem:[%s313 + $0x8] sm:$0xff]
        %v387 = vld [vmem:[%s313 + $0x10] sm:$0xff]
        %v388 = vld [vmem:[%s313 + $0x18] sm:$0xff]
        %v389 = vld [vmem:[%s313 + $0x20] sm:$0xff]
        %v390 = vld [vmem:[%s313 + $0x28] sm:$0xff]
        %v391 = vld [vmem:[%s313 + $0x30] sm:$0xff]
        %v392 = vld [vmem:[%s313 + $0x38] sm:$0xff]
        %v393 = vld [vmem:[%s313 + $0x40] sm:$0xff]
        %v394 = vld [vmem:[%s313 + $0x48] sm:$0xff]
        %v395 = vld [vmem:[%s313 + $0x50] sm:$0xff]
        %v396 = vld [vmem:[%s313 + $0x58] sm:$0xff]
        %v397 = vld [vmem:[%s313 + $0x60] sm:$0xff]
        %v398 = vld [vmem:[%s313 + $0x68] sm:$0xff]
        %v399 = vld [vmem:[%s313 + $0x70] sm:$0xff]
        %v400 = vld [vmem:[%s313 + $0x78] sm:$0xff]
        %v417 = vunpack.c.l.b16 %v369
        %v418 = vunpack.c.l.b16 %v370
        %v419 = vunpack.c.l.b16 %v371
        %v420 = vunpack.c.l.b16 %v372
        %v421 = vunpack.c.l.b16 %v373
        %v422 = vunpack.c.l.b16 %v374
        %v423 = vunpack.c.l.b16 %v375
        %v424 = vunpack.c.l.b16 %v376
        %v425 = vunpack.c.l.b16 %v377
        %v426 = vunpack.c.l.b16 %v378
        %v427 = vunpack.c.l.b16 %v379
        %v428 = vunpack.c.l.b16 %v380
        %v429 = vunpack.c.l.b16 %v381
        %v430 = vunpack.c.l.b16 %v382
        %v431 = vunpack.c.l.b16 %v383
        %v432 = vunpack.c.l.b16 %v384
        %v433 = vpack.c.b16 %v418, %v417
        %v434 = vpack.c.b16 %v420, %v419
        %v435 = vpack.c.b16 %v422, %v421
        %v436 = vpack.c.b16 %v424, %v423
        %v437 = vpack.c.b16 %v426, %v425
        %v438 = vpack.c.b16 %v428, %v427
        %v439 = vpack.c.b16 %v430, %v429
        %v440 = vpack.c.b16 %v432, %v431
        %v465 = vunpack.c.l.b16 %v385
        %v466 = vunpack.c.h.b16 %v385
        %v467 = vunpack.c.l.b16 %v386
        %v468 = vunpack.c.h.b16 %v386
        %v469 = vunpack.c.l.b16 %v387
        %v470 = vunpack.c.h.b16 %v387
        %v471 = vunpack.c.l.b16 %v388
        %v472 = vunpack.c.h.b16 %v388
        %v473 = vunpack.c.l.b16 %v389
        %v474 = vunpack.c.h.b16 %v389
        %v475 = vunpack.c.l.b16 %v390
        %v476 = vunpack.c.h.b16 %v390
        %v477 = vunpack.c.l.b16 %v391
        %v478 = vunpack.c.h.b16 %v391
        %v479 = vunpack.c.l.b16 %v392
        %v480 = vunpack.c.h.b16 %v392
        %v481 = vunpack.c.l.b16 %v393
        %v482 = vunpack.c.h.b16 %v393
        %v483 = vunpack.c.l.b16 %v394
        %v484 = vunpack.c.h.b16 %v394
        %v485 = vunpack.c.l.b16 %v395
        %v486 = vunpack.c.h.b16 %v395
        %v487 = vunpack.c.l.b16 %v396
        %v488 = vunpack.c.h.b16 %v396
        %v489 = vunpack.c.l.b16 %v397
        %v490 = vunpack.c.h.b16 %v397
        %v491 = vunpack.c.l.b16 %v398
        %v492 = vunpack.c.h.b16 %v398
        %v493 = vunpack.c.l.b16 %v399
        %v494 = vunpack.c.h.b16 %v399
        %v495 = vunpack.c.l.b16 %v400
        %v496 = vunpack.c.h.b16 %v400
        %v497 = vpack.c.b16 %v467, %v465
        %v498 = vpack.c.b16 %v468, %v466
        %v499 = vpack.c.b16 %v471, %v469
        %v500 = vpack.c.b16 %v472, %v470
        %v501 = vpack.c.b16 %v475, %v473
        %v502 = vpack.c.b16 %v476, %v474
        %v503 = vpack.c.b16 %v479, %v477
        %v504 = vpack.c.b16 %v480, %v478
        %v505 = vpack.c.b16 %v483, %v481
        %v506 = vpack.c.b16 %v484, %v482
        %v507 = vpack.c.b16 %v487, %v485
        %v508 = vpack.c.b16 %v488, %v486
        %v509 = vpack.c.b16 %v491, %v489
        %v510 = vpack.c.b16 %v492, %v490
        %v511 = vpack.c.b16 %v495, %v493
        %v512 = vpack.c.b16 %v496, %v494
        %529 = vmatprep.subr.bf16.mxu0 %v498
        %530 = vmatpush1.bf16.msra.mxu0 %v497
        %531 = vmatprep.subr.bf16.mxu0 %v500
        %532 = vmatpush1.bf16.msra.mxu0 %v499
        %533 = vmatprep.subr.bf16.mxu0 %v502
        %534 = vmatpush1.bf16.msra.mxu0 %v501
        %535 = vmatprep.subr.bf16.mxu0 %v504
        %536 = vmatpush1.bf16.msra.mxu0 %v503
        %537 = vmatprep.subr.bf16.mxu0 %v506
        %538 = vmatpush1.bf16.msra.mxu0 %v505
        %539 = vmatprep.subr.bf16.mxu0 %v508
        %540 = vmatpush1.bf16.msra.mxu0 %v507
        %541 = vmatprep.subr.bf16.mxu0 %v510
        %542 = vmatpush1.bf16.msra.mxu0 %v509
        %543 = vmatprep.subr.bf16.mxu0 %v512
        %544 = vmatpush1.bf16.msra.mxu0 %v511
        %545 = vmatprep.subr.bf16.mxu0 0
        %546 = vmatpush1.bf16.msra.mxu0 0
        %547 = vmatprep.subr.bf16.mxu0 0
        %548 = vmatpush1.bf16.msra.mxu0 0
        %549 = vmatprep.subr.bf16.mxu0 0
        %550 = vmatpush1.bf16.msra.mxu0 0
        %551 = vmatprep.subr.bf16.mxu0 0
        %552 = vmatpush1.bf16.msra.mxu0 0
        %553 = vmatprep.subr.bf16.mxu0 0
        %554 = vmatpush1.bf16.msra.mxu0 0
        %555 = vmatprep.subr.bf16.mxu0 0
        %556 = vmatpush1.bf16.msra.mxu0 0
        %557 = vmatprep.subr.bf16.mxu0 0
        %558 = vmatpush1.bf16.msra.mxu0 0
        %559 = vmatprep.subr.bf16.mxu0 0
        %560 = vmatpush1.bf16.msra.mxu0 0
        %561 = vmatprep.mubr.bf16.mxu0 0
        %562 = vmatmul.mubr.bf16.gmra.mrb[0].mxu0 %v433
        %v563 = vpop.f32.mrb[0].mxu0
        %v564 = vadd.f32 0.0, %v563
        %v565 = vpop.f32.mrb[0].mxu0
        %v566 = vadd.f32 0.0, %v565
        %v567 = vpop.f32.mrb[0].mxu0
        %v568 = vadd.f32 0.0, %v567
        %v569 = vpop.f32.mrb[0].mxu0
        %v570 = vadd.f32 0.0, %v569
        %571 = vmatprep.mubr.bf16.mxu0 0
        %572 = vmatmul.mubr.bf16.gmra.mrb[0].mxu0 %v434
        %v573 = vpop.f32.mrb[0].mxu0
        %v574 = vadd.f32 0.0, %v573
        %v575 = vpop.f32.mrb[0].mxu0
        %v576 = vadd.f32 0.0, %v575
        %v577 = vpop.f32.mrb[0].mxu0
        %v578 = vadd.f32 0.0, %v577
        %v579 = vpop.f32.mrb[0].mxu0
        %v580 = vadd.f32 0.0, %v579
        %581 = vmatprep.mubr.bf16.mxu0 0
        %582 = vmatmul.mubr.bf16.gmra.mrb[0].mxu0 %v435
        %v583 = vpop.f32.mrb[0].mxu0
        %v584 = vadd.f32 0.0, %v583
        %v585 = vpop.f32.mrb[0].mxu0
        %v586 = vadd.f32 0.0, %v585
        %v587 = vpop.f32.mrb[0].mxu0
        %v588 = vadd.f32 0.0, %v587
        %v589 = vpop.f32.mrb[0].mxu0
        %v590 = vadd.f32 0.0, %v589
        %591 = vmatprep.mubr.bf16.mxu0 0
        %592 = vmatmul.mubr.bf16.gmra.mrb[0].mxu0 %v436
        %v593 = vpop.f32.mrb[0].mxu0
        %v594 = vadd.f32 0.0, %v593
        %v595 = vpop.f32.mrb[0].mxu0
        %v596 = vadd.f32 0.0, %v595
        %v597 = vpop.f32.mrb[0].mxu0
        %v598 = vadd.f32 0.0, %v597
        %v599 = vpop.f32.mrb[0].mxu0
        %v600 = vadd.f32 0.0, %v599
        %601 = vmatprep.mubr.bf16.mxu0 0
        %602 = vmatmul.mubr.bf16.gmra.mrb[0].mxu0 %v437
        %v603 = vpop.f32.mrb[0].mxu0
        %v604 = vadd.f32 0.0, %v603
        %v605 = vpop.f32.mrb[0].mxu0
        %v606 = vadd.f32 0.0, %v605
        %v607 = vpop.f32.mrb[0].mxu0
        %v608 = vadd.f32 0.0, %v607
        %v609 = vpop.f32.mrb[0].mxu0
        %v610 = vadd.f32 0.0, %v609
        %611 = vmatprep.mubr.bf16.mxu0 0
        %612 = vmatmul.mubr.bf16.gmra.mrb[0].mxu0 %v438
        %v613 = vpop.f32.mrb[0].mxu0
        %v614 = vadd.f32 0.0, %v613
        %v615 = vpop.f32.mrb[0].mxu0
        %v616 = vadd.f32 0.0, %v615
        %v617 = vpop.f32.mrb[0].mxu0
        %v618 = vadd.f32 0.0, %v617
        %v619 = vpop.f32.mrb[0].mxu0
        %v620 = vadd.f32 0.0, %v619
        %621 = vmatprep.mubr.bf16.mxu0 0
        %622 = vmatmul.mubr.bf16.gmra.mrb[0].mxu0 %v439
        %v623 = vpop.f32.mrb[0].mxu0
        %v624 = vadd.f32 0.0, %v623
        %v625 = vpop.f32.mrb[0].mxu0
        %v626 = vadd.f32 0.0, %v625
        %v627 = vpop.f32.mrb[0].mxu0
        %v628 = vadd.f32 0.0, %v627
        %v629 = vpop.f32.mrb[0].mxu0
        %v630 = vadd.f32 0.0, %v629
        %631 = vmatprep.mubr.bf16.mxu0 0
        %632 = vmatmul.mubr.bf16.gmra.mrb[0].mxu0 %v440
        %v633 = vpop.f32.mrb[0].mxu0
        %v634 = vadd.f32 0.0, %v633
        %v635 = vpop.f32.mrb[0].mxu0
        %v636 = vadd.f32 0.0, %v635
        %v637 = vpop.f32.mrb[0].mxu0
        %v638 = vadd.f32 0.0, %v637
        %v639 = vpop.f32.mrb[0].mxu0
        %v640 = vadd.f32 0.0, %v639
        %641 = vdwg.mxu0
        %v642 = vld [vmem:[%s359] sm:$0x3]
        %v644 = vlaneseq
        %v645 = vshrl.u32 %v644, 7
        %v646 = vsub.s32 0, %v645
        %v647 = vrot.slane %v642, %v646
        %v648 = vlaneseq
        %v649 = vshrl.u32 %v648, 7
        %v650 = vsub.s32 1, %v649
        %v651 = vrot.slane %v642, %v650
        %v654 = vmul.f32 %v564, %v647
        %v655 = vmul.f32 %v566, %v651
        %v656 = vmul.f32 %v568, %v647
        %v657 = vmul.f32 %v570, %v651
        %v658 = vmul.f32 %v574, %v647
        %v659 = vmul.f32 %v576, %v651
        %v660 = vmul.f32 %v578, %v647
        %v661 = vmul.f32 %v580, %v651
        %v662 = vmul.f32 %v584, %v647
        %v663 = vmul.f32 %v586, %v651
        %v664 = vmul.f32 %v588, %v647
        %v665 = vmul.f32 %v590, %v651
        %v666 = vmul.f32 %v594, %v647
        %v667 = vmul.f32 %v596, %v651
        %v668 = vmul.f32 %v598, %v647
        %v669 = vmul.f32 %v600, %v651
        %v670 = vmul.f32 %v604, %v647
        %v671 = vmul.f32 %v606, %v651
        %v672 = vmul.f32 %v608, %v647
        %v673 = vmul.f32 %v610, %v651
        %v674 = vmul.f32 %v614, %v647
        %v675 = vmul.f32 %v616, %v651
        %v676 = vmul.f32 %v618, %v647
        %v677 = vmul.f32 %v620, %v651
        %v678 = vmul.f32 %v624, %v647
        %v679 = vmul.f32 %v626, %v651
        %v680 = vmul.f32 %v628, %v647
        %v681 = vmul.f32 %v630, %v651
        %v682 = vmul.f32 %v634, %v647
        %v683 = vmul.f32 %v636, %v651
        %v684 = vmul.f32 %v638, %v647
        %v685 = vmul.f32 %v640, %v651
        %v686 = vld [vmem:[%s364] sm:$0x3]
        %v688 = vlaneseq
        %v689 = vshrl.u32 %v688, 7
        %v690 = vsub.s32 0, %v689
        %v691 = vrot.slane %v686, %v690
        %v692 = vlaneseq
        %v693 = vshrl.u32 %v692, 7
        %v694 = vsub.s32 1, %v693
        %v695 = vrot.slane %v686, %v694
        %v698 = vadd.f32 %v654, %v691
        %v699 = vadd.f32 %v655, %v695
        %v700 = vadd.f32 %v656, %v691
        %v701 = vadd.f32 %v657, %v695
        %v702 = vadd.f32 %v658, %v691
        %v703 = vadd.f32 %v659, %v695
        %v704 = vadd.f32 %v660, %v691
        %v705 = vadd.f32 %v661, %v695
        %v706 = vadd.f32 %v662, %v691
        %v707 = vadd.f32 %v663, %v695
        %v708 = vadd.f32 %v664, %v691
        %v709 = vadd.f32 %v665, %v695
        %v710 = vadd.f32 %v666, %v691
        %v711 = vadd.f32 %v667, %v695
        %v712 = vadd.f32 %v668, %v691
        %v713 = vadd.f32 %v669, %v695
        %v714 = vadd.f32 %v670, %v691
        %v715 = vadd.f32 %v671, %v695
        %v716 = vadd.f32 %v672, %v691
        %v717 = vadd.f32 %v673, %v695
        %v718 = vadd.f32 %v674, %v691
        %v719 = vadd.f32 %v675, %v695
        %v720 = vadd.f32 %v676, %v691
        %v721 = vadd.f32 %v677, %v695
        %v722 = vadd.f32 %v678, %v691
        %v723 = vadd.f32 %v679, %v695
        %v724 = vadd.f32 %v680, %v691
        %v725 = vadd.f32 %v681, %v695
        %v726 = vadd.f32 %v682, %v691
        %v727 = vadd.f32 %v683, %v695
        %v728 = vadd.f32 %v684, %v691
        %v729 = vadd.f32 %v685, %v695
        %730 = vst [vmem:[%s348] sm:$0xff] %v698
        %731 = vst [vmem:[%s348 + $0x8] sm:$0xff] %v699
        %732 = vst [vmem:[%s348 + $0x10] sm:$0xff] %v700
        %733 = vst [vmem:[%s348 + $0x18] sm:$0xff] %v701
        %734 = vst [vmem:[%s348 + $0x20] sm:$0xff] %v702
        %735 = vst [vmem:[%s348 + $0x28] sm:$0xff] %v703
        %736 = vst [vmem:[%s348 + $0x30] sm:$0xff] %v704
        %737 = vst [vmem:[%s348 + $0x38] sm:$0xff] %v705
        %738 = vst [vmem:[%s348 + $0x40] sm:$0xff] %v706
        %739 = vst [vmem:[%s348 + $0x48] sm:$0xff] %v707
        %740 = vst [vmem:[%s348 + $0x50] sm:$0xff] %v708
        %741 = vst [vmem:[%s348 + $0x58] sm:$0xff] %v709
        %742 = vst [vmem:[%s348 + $0x60] sm:$0xff] %v710
        %743 = vst [vmem:[%s348 + $0x68] sm:$0xff] %v711
        %744 = vst [vmem:[%s348 + $0x70] sm:$0xff] %v712
        %745 = vst [vmem:[%s348 + $0x78] sm:$0xff] %v713
        %746 = vst [vmem:[%s348 + $0x80] sm:$0xff] %v714
        %747 = vst [vmem:[%s348 + $0x88] sm:$0xff] %v715
        %748 = vst [vmem:[%s348 + $0x90] sm:$0xff] %v716
        %749 = vst [vmem:[%s348 + $0x98] sm:$0xff] %v717
        %750 = vst [vmem:[%s348 + $0xa0] sm:$0xff] %v718
        %751 = vst [vmem:[%s348 + $0xa8] sm:$0xff] %v719
        %752 = vst [vmem:[%s348 + $0xb0] sm:$0xff] %v720
        %753 = vst [vmem:[%s348 + $0xb8] sm:$0xff] %v721
        %754 = vst [vmem:[%s348 + $0xc0] sm:$0xff] %v722
        %755 = vst [vmem:[%s348 + $0xc8] sm:$0xff] %v723
        %756 = vst [vmem:[%s348 + $0xd0] sm:$0xff] %v724
        %757 = vst [vmem:[%s348 + $0xd8] sm:$0xff] %v725
        %758 = vst [vmem:[%s348 + $0xe0] sm:$0xff] %v726
        %759 = vst [vmem:[%s348 + $0xe8] sm:$0xff] %v727
        %760 = vst [vmem:[%s348 + $0xf0] sm:$0xff] %v728
        %761 = vst [vmem:[%s348 + $0xf8] sm:$0xff] %v729
        %s762 = sand.u32 %s144, 1
        %s763 = scalar_lea.sflag [#allocation4], %s762
        %s764 = sand.u32 %s144, 1
        %s765 = smul.addr %s764, 256
        %s766 = scalar_lea.vmem [#allocation3], %s765
        // Predicated region
        $region75: #{stage3_forward.13} parent=69 // pred_check
          %p767 = pneg %p154
        $region76: #{stage3_forward.13} parent=69 // pred_check_branch
          %769 = sbr.rel (%p767) target = $region78
        $region77: #{stage3_forward.13} parent=69 // pred_region
          %s770 = smul.u32 16, %s22
          %s771 = smul.u32 2, %s23
          %s773 = ssub.s32 4096, 4096
          %774 = vsyncadd %s763, %s773
          %s775 = smul.addr %s770, 4
          %s776 = sadd.s32 %s771, %s775
          %s777 = smul.addr %s776, 128
          %s778 = scalar_lea.hbm %s4, %s777
          %s779 = sshll.u32 %s766, 4
          %s780 = int_to_ptr.vmem [resolvable:$true] %s779
          %785 = dma.vmem_to_hbm [thread:$0]  %s780, 4096, %s778, %s763, 256, 512, 16
        $region78: #{stage3_forward.13} parent=69 // pred_fallthru
          _
      $region70: #{stage3_forward.13} parent=5 // pred_fallthru
        _
      %p786 = scmp.le.s32.totalorder 2, %s13
      // Predicated region
      $region79: #{stage3_forward.13} parent=5 // pred_check
        %p787 = pneg %p786
      $region80: #{stage3_forward.13} parent=5 // pred_check_branch
        %789 = sbr.rel (%p787) target = $region82
      $region81: #{stage3_forward.13} parent=5 // pred_region
        %s790 = ssub.s32 %s13, 2
        // Predicated region
        $region83: #{stage3_forward.13} parent=81 // pred_check
          %p791 = pneg %p160
        $region84: #{stage3_forward.13} parent=81 // pred_check_branch
          %793 = sbr.rel (%p791) target = $region86
        $region85: #{stage3_forward.13} parent=81 // pred_region
          %s794 = sand.u32 %s145, 1
          %s795 = scalar_lea.sflag [#allocation4], %s794
          %s796 = sand.u32 %s145, 1
          %s797 = smul.addr %s796, 256
          %s798 = scalar_lea.vmem [#allocation3], %s797
          %799 = dma.done %s795, 4096
        $region86: #{stage3_forward.13} parent=81 // pred_fallthru
          _
      $region82: #{stage3_forward.13} parent=5 // pred_fallthru
        _
    $region6: #{stage3_forward.13} parent=1 // loop_footer
      %s17 = sadd.s32 1, %s13
    $region7: #{stage3_forward.13} parent=1 // loop_footer_branch
      %12 = sbr.rel target = $region3
    $region8: #{stage3_forward.13} parent=1 // loop_exit
      _
    %800 = vsyncpa [#allocation4], 1
    %s801 = scalar_lea.sflag [#allocation4], 1
    %802 = vsyncpa %s801, 1

</llo_original>
